<compile_context>
chip_gen: v5e
topology: v5e:2x2
jax: 0.10.0
libtpu: 0.0.40
codegen_flags: <defaults>
</compile_context>

<pallas_src>
import math

import jax
import jax.numpy as jnp
from jax.experimental import pallas as pl
from jax.experimental.pallas import tpu as pltpu

EXT_OBS = 20 * 12          # 240
EXT_ACT = 20 * 12          # 240
INPUT_SIZE = 40 * 12       # 480  (= EXT_OBS + EXT_ACT, the concatenated embedding)
HIDDEN_SIZE = 64 * 12      # 768
NUM_PARTICLES = 32 * 12    # 384
NUM_LABELS = 24
LOG_INV_P = math.log(1.0 / NUM_PARTICLES)


def _pfrnn_kernel(x_ref, act_ref,
                  w_obs_ref, b_obs_ref,
                  w_act_ref, b_act_ref,
                  w_ih3_ref, b_gates_ref,
                  w_lab_ref, b_lab_ref,
                  y_ref, pf_ref):
    f32, bf16 = jnp.float32, jnp.bfloat16
    H = HIDDEN_SIZE

    # ---- observation / action embeddings (identical across particles) ------
    # bf16 x bf16 MXU matmuls with f32 accumulation; biases / relu in f32.
    emb_obs = jnp.maximum(
        jnp.dot(x_ref[...], w_obs_ref[...], preferred_element_type=f32)
        + b_obs_ref[...], 0.0)                                           # (1, 240) f32
    emb_act = jnp.maximum(
        jnp.dot(act_ref[...], w_act_ref[...], preferred_element_type=f32)
        + b_act_ref[...], 0.0)                                           # (1, 240) f32

    # ---- PF-LSTM cell, single step, computed once on a (1, 3H) row ----------
    #   * h0 == 0  =>  h0 @ W_hh == 0 ; W_hh never loaded (b_hh folded into b_gates).
    #   * forget-gate columns were sliced away at weight-prep time (c0 == 0).
    #   * the input is shared by all particles, so the gates are too.
    gi = (jnp.dot(emb_obs.astype(bf16), w_ih3_ref[0:EXT_OBS, :],
                  preferred_element_type=f32)
          + jnp.dot(emb_act.astype(bf16), w_ih3_ref[EXT_OBS:INPUT_SIZE, :],
                    preferred_element_type=f32)
          + b_gates_ref[...])                                            # (1, 3H) = [i | g | o]

    i_g = jax.nn.sigmoid(gi[:, 0:H])
    g_g = jnp.tanh(gi[:, H:2 * H])
    o_g = jax.nn.sigmoid(gi[:, 2 * H:3 * H])

    c1 = i_g * g_g                                                       # (1, H)   (f_g * c0 == 0)
    h1 = o_g * jnp.tanh(c1)                                              # (1, H) — same row for every particle

    # Particle weighting degenerates: all fc_obs log-weights are equal, so the
    # log-softmax over particles is exactly log(1/P) and
    #   y_mean = sum_p h1 * exp(log 1/P) = h1.
    # fc_obs (w_fco / b_fco) therefore contributes nothing and is not loaded.
    # TODO(synk): stochastic soft-resampling (torch.multinomial) of PFLSTMCell omitted.
    # TODO(synk): nn.Dropout on hidden_states treated as eval-mode identity.

    # ---- output head (shared by y and every pf row), kept in f32 ------------
    lab_row = (jnp.dot(h1, w_lab_ref[...], preferred_element_type=f32)
               + b_lab_ref[...])                                         # (1, 24)
    lab_sig = jax.nn.sigmoid(lab_row)

    y_ref[...] = lab_sig                                                 # hidden2label(y_mean) == hidden2label(h1)
    pf_ref[...] = jnp.broadcast_to(lab_sig, (NUM_PARTICLES, NUM_LABELS)) # all particle rows identical


def prepare_params(params):
    """One-time (outside the per-call jit) weight preparation:
       bf16 cast of the big matrices, forget-gate column drop, bias fold."""
    bf16 = jnp.bfloat16
    H = HIDDEN_SIZE
    w_ih = params["w_ih"]
    # keep input / cell / output gate columns; forget gate never used (c0 == 0)
    w_ih3 = jnp.concatenate([w_ih[:, 0:H], w_ih[:, 2 * H:4 * H]], axis=1).astype(bf16)
    b_all = params["b_ih"] + params["b_hh"]
    b_gates = jnp.concatenate([b_all[:, 0:H], b_all[:, 2 * H:4 * H]], axis=1)
    return dict(
        w_obs=params["w_obs"].astype(bf16), b_obs=params["b_obs"],
        w_act=params["w_act"].astype(bf16), b_act=params["b_act"],
        w_ih3=w_ih3, b_gates=b_gates,
        w_lab=params["w_lab"], b_lab=params["b_lab"])


def pfrnn_forward(x, act, prep):
    """Pallas-backed forward pass.  Returns (y_out [1,1,24], pf_out [1,P,24])."""
    bf16 = jnp.bfloat16
    x2 = x.reshape(1, EXT_ACT).astype(bf16)      # obs_embedding: Linear(EXT_ACT, EXT_OBS)
    act2 = act.reshape(1, 240).astype(bf16)      # act_embedding: Linear(240, EXT_ACT)

    args = (x2, act2,
            prep["w_obs"], prep["b_obs"],
            prep["w_act"], prep["b_act"],
            prep["w_ih3"], prep["b_gates"],
            prep["w_lab"], prep["b_lab"])

    in_specs = [pl.BlockSpec(a.shape, lambda i: (0, 0)) for a in args]
    out_shape = (jax.ShapeDtypeStruct((1, NUM_LABELS), jnp.float32),
                 jax.ShapeDtypeStruct((NUM_PARTICLES, NUM_LABELS), jnp.float32))
    out_specs = (pl.BlockSpec((1, NUM_LABELS), lambda i: (0, 0)),
                 pl.BlockSpec((NUM_PARTICLES, NUM_LABELS), lambda i: (0, 0)))

    y_flat, pf_flat = pl.pallas_call(
        _pfrnn_kernel,
        grid=(1,),
        in_specs=in_specs,
        out_specs=out_specs,
        out_shape=out_shape,
        compiler_params=pltpu.CompilerParams(
            dimension_semantics=("arbitrary",),
            # ~2.5 MB of weights (double-buffered ≈ 5 MB) -> 16 MiB is ample and
            # leaves headroom on v7x's 64 MiB physical VMEM per TensorCore.
            vmem_limit_bytes=16 * 1024 * 1024),
    )(*args)

    seq_len = 1   # embedding.size(1) == 1 in the reference forward
    y_out = y_flat.reshape(seq_len, 1, NUM_LABELS)                   # [seq, batch, 24]
    pf_out = pf_flat.reshape(seq_len, NUM_PARTICLES, NUM_LABELS)     # [seq, P*batch, 24]
    return y_out, pf_out


def pfrnn_reference(x, act, params):
    """Pure-JAX, pure-f32 reference: FULL per-particle math (incl. W_hh, forget
    gate, fc_obs, softmax over particles) with the ORIGINAL f32 weights.
    Verifies that the kernel's algebraic shortcuts + bf16 streaming are exact
    to quantization error."""
    f32 = jnp.float32
    x2 = x.reshape(1, -1).astype(f32)
    a2 = act.reshape(1, -1).astype(f32)
    H = HIDDEN_SIZE

    emb_obs = jax.nn.relu(x2 @ params["w_obs"] + params["b_obs"])
    emb_act = jax.nn.relu(a2 @ params["w_act"] + params["b_act"])
    emb = jnp.broadcast_to(jnp.concatenate([emb_obs, emb_act], axis=1),
                           (NUM_PARTICLES, INPUT_SIZE))
    h0 = jnp.zeros((NUM_PARTICLES, H), f32)
    c0 = jnp.zeros_like(h0)
    p0 = jnp.full((NUM_PARTICLES, 1), LOG_INV_P, f32)

    gates = (emb @ params["w_ih"] + params["b_ih"]
             + h0 @ params["w_hh"] + params["b_hh"])
    i_g = jax.nn.sigmoid(gates[:, :H])
    f_g = jax.nn.sigmoid(gates[:, H:2 * H])
    g_g = jnp.tanh(gates[:, 2 * H:3 * H])
    o_g = jax.nn.sigmoid(gates[:, 3 * H:])
    c1 = f_g * c0 + i_g * g_g
    h1 = o_g * jnp.tanh(c1)

    att = jnp.concatenate([emb, h1], axis=1)
    p1 = att @ params["w_fco"] + params["b_fco"] + p0
    p1 = p1 - jax.scipy.special.logsumexp(p1, axis=0, keepdims=True)

    y_mean = jnp.sum(h1 * jnp.exp(p1), axis=0, keepdims=True)
    y_lab = jax.nn.sigmoid(y_mean @ params["w_lab"] + params["b_lab"])
    pf_lab = jax.nn.sigmoid(h1 @ params["w_lab"] + params["b_lab"])
    return (y_lab.reshape(1, 1, NUM_LABELS),
            pf_lab.reshape(1, NUM_PARTICLES, NUM_LABELS))


def init_params(key):
    """Deterministic PyTorch-style Linear init: U(-1/sqrt(fan_in), 1/sqrt(fan_in))."""
    def linear(k, fan_in, fan_out):
        kw, kb = jax.random.split(k)
        bound = 1.0 / math.sqrt(fan_in)
        w = jax.random.uniform(kw, (fan_in, fan_out), jnp.float32, -bound, bound)
        b = jax.random.uniform(kb, (1, fan_out), jnp.float32, -bound, bound)
        return w, b

    keys = jax.random.split(key, 6)
    w_obs, b_obs = linear(keys[0], EXT_ACT, EXT_OBS)                 # obs_embedding
    w_act, b_act = linear(keys[1], 240, EXT_ACT)                     # act_embedding
    w_ih, b_ih = linear(keys[2], INPUT_SIZE, 4 * HIDDEN_SIZE)        # PFLSTMCell.fc_ih
    w_hh, b_hh = linear(keys[3], HIDDEN_SIZE, 4 * HIDDEN_SIZE)       # PFLSTMCell.fc_hh
    w_fco, b_fco = linear(keys[4], INPUT_SIZE + HIDDEN_SIZE, 1)      # PFLSTMCell.fc_obs
    w_lab, b_lab = linear(keys[5], HIDDEN_SIZE, NUM_LABELS)          # hidden2label
    return dict(w_obs=w_obs, b_obs=b_obs, w_act=w_act, b_act=b_act,
                w_ih=w_ih, b_ih=b_ih, w_hh=w_hh, b_hh=b_hh,
                w_fco=w_fco, b_fco=b_fco, w_lab=w_lab, b_lab=b_lab)


if __name__ == "__main__":
    import numpy as np

    root = jax.random.PRNGKey(0)
    kx, ka, kp = jax.random.split(root, 3)
    # x and act flatten to 240 elements each (required by the module's hard-coded Linears)
    x = jax.random.normal(kx, (20, 12), jnp.float32)
    act = jax.random.normal(ka, (20, 12), jnp.float32)
    params = init_params(kp)

    # Weight preparation hoisted out of the per-call path (done once).
    prep = prepare_params(params)
    prep = jax.tree_util.tree_map(jax.block_until_ready, prep)

    fwd = jax.jit(pfrnn_forward)
    y_out, pf_out = fwd(x, act, prep)
    jax.block_until_ready((y_out, pf_out))

    assert y_out.shape == (1, 1, NUM_LABELS)
    assert pf_out.shape == (1, NUM_PARTICLES, NUM_LABELS)

    y_ref, pf_ref = pfrnn_reference(x, act, params)
    np.testing.assert_allclose(np.asarray(y_out), np.asarray(y_ref), rtol=2e-2, atol=2e-3)
    np.testing.assert_allclose(np.asarray(pf_out), np.asarray(pf_ref), rtol=2e-2, atol=2e-3)

    print("KERNEL_OK")
</pallas_src>

<mosaic_0001>
module attributes {stable_mosaic.version = 11 : i64} {
  func.func @_pfrnn_kernel(%arg0: i32, %arg1: memref<1x240xbf16, #tpu.memory_space<vmem>>, %arg2: memref<1x240xbf16, #tpu.memory_space<vmem>>, %arg3: memref<240x240xbf16, #tpu.memory_space<vmem>>, %arg4: memref<1x240xf32, #tpu.memory_space<vmem>>, %arg5: memref<240x240xbf16, #tpu.memory_space<vmem>>, %arg6: memref<1x240xf32, #tpu.memory_space<vmem>>, %arg7: memref<480x2304xbf16, #tpu.memory_space<vmem>>, %arg8: memref<1x2304xf32, #tpu.memory_space<vmem>>, %arg9: memref<768x24xf32, #tpu.memory_space<vmem>>, %arg10: memref<1x24xf32, #tpu.memory_space<vmem>>, %arg11: memref<1x24xf32, #tpu.memory_space<vmem>>, %arg12: memref<384x24xf32, #tpu.memory_space<vmem>>) attributes {dimension_semantics = [#tpu.dimension_semantics<arbitrary>], iteration_bounds = array<i64: 1>, scalar_prefetch = 0 : i64, scratch_operands = 0 : i64, tpu.core_type = #tpu.core_type<tc>, window_params = [{pipeline_mode = #tpu.pipeline_mode<synchronous>, transform_indices = @transform_0, window_bounds = array<i64: 1, 240>}, {pipeline_mode = #tpu.pipeline_mode<synchronous>, transform_indices = @transform_1, window_bounds = array<i64: 1, 240>}, {pipeline_mode = #tpu.pipeline_mode<synchronous>, transform_indices = @transform_2, window_bounds = array<i64: 240, 240>}, {pipeline_mode = #tpu.pipeline_mode<synchronous>, transform_indices = @transform_3, window_bounds = array<i64: 1, 240>}, {pipeline_mode = #tpu.pipeline_mode<synchronous>, transform_indices = @transform_4, window_bounds = array<i64: 240, 240>}, {pipeline_mode = #tpu.pipeline_mode<synchronous>, transform_indices = @transform_5, window_bounds = array<i64: 1, 240>}, {pipeline_mode = #tpu.pipeline_mode<synchronous>, transform_indices = @transform_6, window_bounds = array<i64: 480, 2304>}, {pipeline_mode = #tpu.pipeline_mode<synchronous>, transform_indices = @transform_7, window_bounds = array<i64: 1, 2304>}, {pipeline_mode = #tpu.pipeline_mode<synchronous>, transform_indices = @transform_8, window_bounds = array<i64: 768, 24>}, {pipeline_mode = #tpu.pipeline_mode<synchronous>, transform_indices = @transform_9, window_bounds = array<i64: 1, 24>}, {pipeline_mode = #tpu.pipeline_mode<synchronous>, transform_indices = @transform_10, window_bounds = array<i64: 1, 24>}, {pipeline_mode = #tpu.pipeline_mode<synchronous>, transform_indices = @transform_11, window_bounds = array<i64: 384, 24>}]} {
    %c0 = arith.constant 0 : index
    %c0_0 = arith.constant 0 : index
    %0 = vector.load %arg1[%c0, %c0_0] : memref<1x240xbf16, #tpu.memory_space<vmem>>, vector<1x240xbf16>
    %c0_1 = arith.constant 0 : index
    %c0_2 = arith.constant 0 : index
    %1 = vector.load %arg3[%c0_1, %c0_2] : memref<240x240xbf16, #tpu.memory_space<vmem>>, vector<240x240xbf16>
    %cst = arith.constant dense<0.000000e+00> : vector<1x240xf32>
    %2 = tpu.matmul %0, %1, %cst {dimension_numbers = #tpu.dot_dimension_numbers<[1], [0], [0], [1], [0, 0, 1, 1], [], []>} : vector<1x240xbf16>, vector<240x240xbf16>, vector<1x240xf32> -> vector<1x240xf32>
    %c0_3 = arith.constant 0 : index
    %c0_4 = arith.constant 0 : index
    %3 = vector.load %arg4[%c0_3, %c0_4] : memref<1x240xf32, #tpu.memory_space<vmem>>, vector<1x240xf32>
    %4 = arith.addf %2, %3 : vector<1x240xf32>
    %cst_5 = arith.constant 0.000000e+00 : f32
    %5 = vector.broadcast %cst_5 : f32 to vector<1x240xf32>
    %6 = arith.maximumf %4, %5 : vector<1x240xf32>
    %c0_6 = arith.constant 0 : index
    %c0_7 = arith.constant 0 : index
    %7 = vector.load %arg2[%c0_6, %c0_7] : memref<1x240xbf16, #tpu.memory_space<vmem>>, vector<1x240xbf16>
    %c0_8 = arith.constant 0 : index
    %c0_9 = arith.constant 0 : index
    %8 = vector.load %arg5[%c0_8, %c0_9] : memref<240x240xbf16, #tpu.memory_space<vmem>>, vector<240x240xbf16>
    %cst_10 = arith.constant dense<0.000000e+00> : vector<1x240xf32>
    %9 = tpu.matmul %7, %8, %cst_10 {dimension_numbers = #tpu.dot_dimension_numbers<[1], [0], [0], [1], [0, 0, 1, 1], [], []>} : vector<1x240xbf16>, vector<240x240xbf16>, vector<1x240xf32> -> vector<1x240xf32>
    %c0_11 = arith.constant 0 : index
    %c0_12 = arith.constant 0 : index
    %10 = vector.load %arg6[%c0_11, %c0_12] : memref<1x240xf32, #tpu.memory_space<vmem>>, vector<1x240xf32>
    %11 = arith.addf %9, %10 : vector<1x240xf32>
    %cst_13 = arith.constant 0.000000e+00 : f32
    %12 = vector.broadcast %cst_13 : f32 to vector<1x240xf32>
    %13 = arith.maximumf %11, %12 : vector<1x240xf32>
    %14 = arith.truncf %6 : vector<1x240xf32> to vector<1x240xbf16>
    %c0_14 = arith.constant 0 : index
    %c0_15 = arith.constant 0 : index
    %15 = vector.load %arg7[%c0_14, %c0_15] : memref<480x2304xbf16, #tpu.memory_space<vmem>>, vector<240x2304xbf16>
    %cst_16 = arith.constant dense<0.000000e+00> : vector<1x2304xf32>
    %16 = tpu.matmul %14, %15, %cst_16 {dimension_numbers = #tpu.dot_dimension_numbers<[1], [0], [0], [1], [0, 0, 1, 1], [], []>} : vector<1x240xbf16>, vector<240x2304xbf16>, vector<1x2304xf32> -> vector<1x2304xf32>
    %17 = arith.truncf %13 : vector<1x240xf32> to vector<1x240xbf16>
    %c240 = arith.constant 240 : index
    %c0_17 = arith.constant 0 : index
    %18 = vector.load %arg7[%c240, %c0_17] : memref<480x2304xbf16, #tpu.memory_space<vmem>>, vector<240x2304xbf16>
    %cst_18 = arith.constant dense<0.000000e+00> : vector<1x2304xf32>
    %19 = tpu.matmul %17, %18, %cst_18 {dimension_numbers = #tpu.dot_dimension_numbers<[1], [0], [0], [1], [0, 0, 1, 1], [], []>} : vector<1x240xbf16>, vector<240x2304xbf16>, vector<1x2304xf32> -> vector<1x2304xf32>
    %20 = arith.addf %16, %19 : vector<1x2304xf32>
    %c0_19 = arith.constant 0 : index
    %c0_20 = arith.constant 0 : index
    %21 = vector.load %arg8[%c0_19, %c0_20] : memref<1x2304xf32, #tpu.memory_space<vmem>>, vector<1x2304xf32>
    %22 = arith.addf %20, %21 : vector<1x2304xf32>
    %23 = vector.extract_strided_slice %22 {offsets = [0, 0], sizes = [1, 768], strides = [1, 1]} : vector<1x2304xf32> to vector<1x768xf32>
    %24 = arith.negf %23 : vector<1x768xf32>
    %25 = math.exp %24 : vector<1x768xf32>
    %cst_21 = arith.constant 1.000000e+00 : f32
    %26 = vector.broadcast %cst_21 : f32 to vector<1x768xf32>
    %27 = arith.addf %26, %25 : vector<1x768xf32>
    %28 = arith.divf %26, %27 : vector<1x768xf32>
    %29 = vector.extract_strided_slice %22 {offsets = [0, 768], sizes = [1, 768], strides = [1, 1]} : vector<1x2304xf32> to vector<1x768xf32>
    %30 = math.tanh %29 : vector<1x768xf32>
    %31 = vector.extract_strided_slice %22 {offsets = [0, 1536], sizes = [1, 768], strides = [1, 1]} : vector<1x2304xf32> to vector<1x768xf32>
    %32 = arith.negf %31 : vector<1x768xf32>
    %33 = math.exp %32 : vector<1x768xf32>
    %cst_22 = arith.constant 1.000000e+00 : f32
    %34 = vector.broadcast %cst_22 : f32 to vector<1x768xf32>
    %35 = arith.addf %34, %33 : vector<1x768xf32>
    %36 = arith.divf %34, %35 : vector<1x768xf32>
    %37 = arith.mulf %28, %30 : vector<1x768xf32>
    %38 = math.tanh %37 : vector<1x768xf32>
    %39 = arith.mulf %36, %38 : vector<1x768xf32>
    %c0_23 = arith.constant 0 : index
    %c0_24 = arith.constant 0 : index
    %40 = vector.load %arg9[%c0_23, %c0_24] : memref<768x24xf32, #tpu.memory_space<vmem>>, vector<768x24xf32>
    %cst_25 = arith.constant dense<0.000000e+00> : vector<1x24xf32>
    %41 = tpu.matmul %39, %40, %cst_25 {dimension_numbers = #tpu.dot_dimension_numbers<[1], [0], [0], [1], [0, 0, 1, 1], [], []>} : vector<1x768xf32>, vector<768x24xf32>, vector<1x24xf32> -> vector<1x24xf32>
    %c0_26 = arith.constant 0 : index
    %c0_27 = arith.constant 0 : index
    %42 = vector.load %arg10[%c0_26, %c0_27] : memref<1x24xf32, #tpu.memory_space<vmem>>, vector<1x24xf32>
    %43 = arith.addf %41, %42 : vector<1x24xf32>
    %44 = arith.negf %43 : vector<1x24xf32>
    %45 = math.exp %44 : vector<1x24xf32>
    %cst_28 = arith.constant 1.000000e+00 : f32
    %46 = vector.broadcast %cst_28 : f32 to vector<1x24xf32>
    %47 = arith.addf %46, %45 : vector<1x24xf32>
    %48 = arith.divf %46, %47 : vector<1x24xf32>
    %c0_29 = arith.constant 0 : index
    %c0_30 = arith.constant 0 : index
    %49 = vector.load %arg11[%c0_29, %c0_30] : memref<1x24xf32, #tpu.memory_space<vmem>>, vector<1x24xf32>
    tpu.vector_store %arg11[%c0_29, %c0_30], %48 {strides = array<i32>} : memref<1x24xf32, #tpu.memory_space<vmem>>, vector<1x24xf32>,
    %50 = vector.shape_cast %48 : vector<1x24xf32> to vector<1x24xf32>
    %51 = vector.broadcast %50 : vector<1x24xf32> to vector<384x24xf32>
    %c0_31 = arith.constant 0 : index
    %c0_32 = arith.constant 0 : index
    %52 = vector.load %arg12[%c0_31, %c0_32] : memref<384x24xf32, #tpu.memory_space<vmem>>, vector<384x24xf32>
    tpu.vector_store %arg12[%c0_31, %c0_32], %51 {strides = array<i32>} : memref<384x24xf32, #tpu.memory_space<vmem>>, vector<384x24xf32>,
    return
  }
  func.func @transform_0(%arg0: i32) -> (i32, i32) {
    %c0_i32 = arith.constant 0 : i32
    %c0_i32_0 = arith.constant 0 : i32
    %c0_i32_1 = arith.constant 0 : i32
    return %c0_i32, %c0_i32_0 : i32, i32
  }
  func.func @transform_1(%arg0: i32) -> (i32, i32) {
    %c0_i32 = arith.constant 0 : i32
    %c0_i32_0 = arith.constant 0 : i32
    %c0_i32_1 = arith.constant 0 : i32
    return %c0_i32, %c0_i32_0 : i32, i32
  }
  func.func @transform_2(%arg0: i32) -> (i32, i32) {
    %c0_i32 = arith.constant 0 : i32
    %c0_i32_0 = arith.constant 0 : i32
    %c0_i32_1 = arith.constant 0 : i32
    return %c0_i32, %c0_i32_0 : i32, i32
  }
  func.func @transform_3(%arg0: i32) -> (i32, i32) {
    %c0_i32 = arith.constant 0 : i32
    %c0_i32_0 = arith.constant 0 : i32
    %c0_i32_1 = arith.constant 0 : i32
    return %c0_i32, %c0_i32_0 : i32, i32
  }
  func.func @transform_4(%arg0: i32) -> (i32, i32) {
    %c0_i32 = arith.constant 0 : i32
    %c0_i32_0 = arith.constant 0 : i32
    %c0_i32_1 = arith.constant 0 : i32
    return %c0_i32, %c0_i32_0 : i32, i32
  }
  func.func @transform_5(%arg0: i32) -> (i32, i32) {
    %c0_i32 = arith.constant 0 : i32
    %c0_i32_0 = arith.constant 0 : i32
    %c0_i32_1 = arith.constant 0 : i32
    return %c0_i32, %c0_i32_0 : i32, i32
  }
  func.func @transform_6(%arg0: i32) -> (i32, i32) {
    %c0_i32 = arith.constant 0 : i32
    %c0_i32_0 = arith.constant 0 : i32
    %c0_i32_1 = arith.constant 0 : i32
    return %c0_i32, %c0_i32_0 : i32, i32
  }
  func.func @transform_7(%arg0: i32) -> (i32, i32) {
    %c0_i32 = arith.constant 0 : i32
    %c0_i32_0 = arith.constant 0 : i32
    %c0_i32_1 = arith.constant 0 : i32
    return %c0_i32, %c0_i32_0 : i32, i32
  }
  func.func @transform_8(%arg0: i32) -> (i32, i32) {
    %c0_i32 = arith.constant 0 : i32
    %c0_i32_0 = arith.constant 0 : i32
    %c0_i32_1 = arith.constant 0 : i32
    return %c0_i32, %c0_i32_0 : i32, i32
  }
  func.func @transform_9(%arg0: i32) -> (i32, i32) {
    %c0_i32 = arith.constant 0 : i32
    %c0_i32_0 = arith.constant 0 : i32
    %c0_i32_1 = arith.constant 0 : i32
    return %c0_i32, %c0_i32_0 : i32, i32
  }
  func.func @transform_10(%arg0: i32) -> (i32, i32) {
    %c0_i32 = arith.constant 0 : i32
    %c0_i32_0 = arith.constant 0 : i32
    %c0_i32_1 = arith.constant 0 : i32
    return %c0_i32, %c0_i32_0 : i32, i32
  }
  func.func @transform_11(%arg0: i32) -> (i32, i32) {
    %c0_i32 = arith.constant 0 : i32
    %c0_i32_0 = arith.constant 0 : i32
    %c0_i32_1 = arith.constant 0 : i32
    return %c0_i32, %c0_i32_0 : i32, i32
  }
}

</mosaic_0001>

<llo_original>
// kernel: pfrnn_forward.1
$region0: #{pfrnn_forward.1}
  #allocation0 [shape = 'u32[]', space=smem, size = 0x4, offset = 0x4, fixed_abs, tag = 'smem constant byte address 0x4 - core index']
  #allocation1 [shape = 'u32[72,128]{1,0:T(1,128)}', space=vmem, size = 0x9000, scoped, tag = 'internal scratch']
  %s0 = inlined_call_operand.vmem [shape: bf16[1,240], index: 0, kind: input, shape index: {}]
  %s1 = inlined_call_operand.vmem [shape: bf16[1,240], index: 1, kind: input, shape index: {}]
  %s2 = inlined_call_operand.hbm [shape: bf16[240,240], index: 2, kind: input, shape index: {}]
  %s3 = inlined_call_operand.hbm [shape: f32[1,240], index: 3, kind: input, shape index: {}]
  %s4 = inlined_call_operand.hbm [shape: bf16[240,240], index: 4, kind: input, shape index: {}]
  %s5 = inlined_call_operand.hbm [shape: f32[1,240], index: 5, kind: input, shape index: {}]
  %s6 = inlined_call_operand.hbm [shape: bf16[480,2304], index: 6, kind: input, shape index: {}]
  %s7 = inlined_call_operand.hbm [shape: f32[1,2304], index: 7, kind: input, shape index: {}]
  %s8 = inlined_call_operand.vmem [shape: f32[768,24], index: 8, kind: input, shape index: {}]
  %s9 = inlined_call_operand.hbm [shape: f32[1,24], index: 9, kind: input, shape index: {}]
  %s10 = inlined_call_operand.hbm [shape: f32[1,24], index: 10, kind: output, shape index: {0}]
  %s11 = inlined_call_operand.vmem [shape: f32[384,24], index: 11, kind: output, shape index: {1}]
  %12 = xla_tuple %s10, %s11
  %s13 = sld [smem:[#allocation0]]
  $region86: #{pfrnn_forward.1} parent=0
    _
  %s15 = ssub.s32 1, %s13
  %s16 = scalar_select 0, %s15, %s13
  $region1: #{pfrnn_forward.1} parent=0
    #allocation2 [shape = 'u8[122880]{0}', space=vmem, size = 0x1e000, scoped, tag = 'input window, operand 2, single buffered']
    #allocation3 [shape = 's32[1]{0}', space=sflag, size = 0x4, scoped, tag = 'scoped memory for pfrnn_forward.1']
    #allocation4 [shape = 's32[1]{0}', space=sflag, size = 0x4, scoped, tag = 'scoped memory for pfrnn_forward.1']
    #allocation5 [shape = 'u8[1024]{0}', space=vmem, size = 0x400, scoped, tag = 'input window, operand 3, single buffered']
    #allocation6 [shape = 's32[1]{0}', space=sflag, size = 0x4, scoped, tag = 'scoped memory for pfrnn_forward.1']
    #allocation7 [shape = 'u8[122880]{0}', space=vmem, size = 0x1e000, scoped, tag = 'input window, operand 4, single buffered']
    #allocation8 [shape = 'u8[1024]{0}', space=vmem, size = 0x400, scoped, tag = 'input window, operand 5, single buffered']
    #allocation9 [shape = 's32[1]{0}', space=sflag, size = 0x4, scoped, tag = 'scoped memory for pfrnn_forward.1']
    #allocation10 [shape = 'u8[2211840]{0}', space=vmem, size = 0x21c000, scoped, tag = 'input window, operand 6, single buffered']
    #allocation11 [shape = 'u8[9216]{0}', space=vmem, size = 0x2400, scoped, tag = 'input window, operand 7, single buffered']
    #allocation12 [shape = 's32[1]{0}', space=sflag, size = 0x4, scoped, tag = 'scoped memory for pfrnn_forward.1']
    #allocation13 [shape = 'u8[512]{0}', space=vmem, size = 0x400, scoped, tag = 'input window, operand 9, single buffered']
    #allocation14 [shape = 'u8[512]{0}', space=vmem, size = 0x400, scoped, tag = 'output window, operand 0, single buffered']
    %17 = vsyncpa [#allocation3], 0
    %18 = vsyncpa [#allocation6], 0
    %19 = vsyncpa [#allocation9], 0
    %20 = vsyncpa [#allocation12], 0
    %21 = vsyncpa [#allocation4], 0
    // Predicated region
    $region2: #{pfrnn_forward.1} parent=1 // pred_check
      _
    $region3: #{pfrnn_forward.1} parent=1 // pred_check_branch
      %23 = sbr.rel (0) target = $region5
    $region4: #{pfrnn_forward.1} parent=1 // pred_region
      _
    $region5: #{pfrnn_forward.1} parent=1 // pred_fallthru
      _
    // Predicated region
    $region6: #{pfrnn_forward.1} parent=1 // pred_check
      _
    $region7: #{pfrnn_forward.1} parent=1 // pred_check_branch
      %25 = sbr.rel (0) target = $region9
    $region8: #{pfrnn_forward.1} parent=1 // pred_region
      _
    $region9: #{pfrnn_forward.1} parent=1 // pred_fallthru
      _
    // Predicated region
    $region10: #{pfrnn_forward.1} parent=1 // pred_check
      _
    $region11: #{pfrnn_forward.1} parent=1 // pred_check_branch
      %27 = sbr.rel (0) target = $region13
    $region12: #{pfrnn_forward.1} parent=1 // pred_region
      %29 = vsyncadd [#allocation3], 0
      %s30 = sshll.u32 %s2, 4
      %s31 = int_to_ptr.hbm [resolvable:$true] %s30
      %s32 = sshll.u32 [#allocation2], 4
      %s33 = int_to_ptr.vmem [resolvable:$true] %s32
      %38 = dma.hbm_to_vmem [thread:$0]  %s31, 3840, %s33, [#allocation3], 128, 128, 8
    $region13: #{pfrnn_forward.1} parent=1 // pred_fallthru
      _
    // Predicated region
    $region14: #{pfrnn_forward.1} parent=1 // pred_check
      _
    $region15: #{pfrnn_forward.1} parent=1 // pred_check_branch
      %40 = sbr.rel (0) target = $region17
    $region16: #{pfrnn_forward.1} parent=1 // pred_region
      %42 = vsyncadd [#allocation6], 0
      %s44 = sshll.u32 %s3, 4
      %s45 = int_to_ptr.hbm [resolvable:$true] %s44
      %s46 = sshll.u32 [#allocation5], 4
      %s47 = int_to_ptr.vmem [resolvable:$true] %s46
      %49 = dma.hbm_to_vmem [thread:$0]  %s45, 32, %s47, [#allocation6]
    $region17: #{pfrnn_forward.1} parent=1 // pred_fallthru
      _
    // Predicated region
    $region18: #{pfrnn_forward.1} parent=1 // pred_check
      _
    $region19: #{pfrnn_forward.1} parent=1 // pred_check_branch
      %51 = sbr.rel (0) target = $region21
    $region20: #{pfrnn_forward.1} parent=1 // pred_region
      %53 = vsyncadd [#allocation6], 0
      %s54 = sshll.u32 %s4, 4
      %s55 = int_to_ptr.hbm [resolvable:$true] %s54
      %s56 = sshll.u32 [#allocation7], 4
      %s57 = int_to_ptr.vmem [resolvable:$true] %s56
      %62 = dma.hbm_to_vmem [thread:$0]  %s55, 3840, %s57, [#allocation6], 128, 128, 8
    $region21: #{pfrnn_forward.1} parent=1 // pred_fallthru
      _
    // Predicated region
    $region22: #{pfrnn_forward.1} parent=1 // pred_check
      _
    $region23: #{pfrnn_forward.1} parent=1 // pred_check_branch
      %64 = sbr.rel (0) target = $region25
    $region24: #{pfrnn_forward.1} parent=1 // pred_region
      %66 = vsyncadd [#allocation9], 0
      %s68 = sshll.u32 %s5, 4
      %s69 = int_to_ptr.hbm [resolvable:$true] %s68
      %s70 = sshll.u32 [#allocation8], 4
      %s71 = int_to_ptr.vmem [resolvable:$true] %s70
      %73 = dma.hbm_to_vmem [thread:$0]  %s69, 32, %s71, [#allocation9]
    $region25: #{pfrnn_forward.1} parent=1 // pred_fallthru
      _
    // Predicated region
    $region26: #{pfrnn_forward.1} parent=1 // pred_check
      _
    $region27: #{pfrnn_forward.1} parent=1 // pred_check_branch
      %75 = sbr.rel (0) target = $region29
    $region28: #{pfrnn_forward.1} parent=1 // pred_region
      %77 = vsyncadd [#allocation9], 0
      %s78 = sshll.u32 %s6, 4
      %s79 = int_to_ptr.hbm [resolvable:$true] %s78
      %s80 = sshll.u32 [#allocation10], 4
      %s81 = int_to_ptr.vmem [resolvable:$true] %s80
      %86 = dma.hbm_to_vmem [thread:$0]  %s79, 69120, %s81, [#allocation9], 1152, 1152, 72
    $region29: #{pfrnn_forward.1} parent=1 // pred_fallthru
      _
    // Predicated region
    $region30: #{pfrnn_forward.1} parent=1 // pred_check
      _
    $region31: #{pfrnn_forward.1} parent=1 // pred_check_branch
      %88 = sbr.rel (0) target = $region33
    $region32: #{pfrnn_forward.1} parent=1 // pred_region
      %90 = vsyncadd [#allocation12], 0
      %s92 = sshll.u32 %s7, 4
      %s93 = int_to_ptr.hbm [resolvable:$true] %s92
      %s94 = sshll.u32 [#allocation11], 4
      %s95 = int_to_ptr.vmem [resolvable:$true] %s94
      %97 = dma.hbm_to_vmem [thread:$0]  %s93, 288, %s95, [#allocation12]
    $region33: #{pfrnn_forward.1} parent=1 // pred_fallthru
      _
    // Predicated region
    $region34: #{pfrnn_forward.1} parent=1 // pred_check
      _
    $region35: #{pfrnn_forward.1} parent=1 // pred_check_branch
      %99 = sbr.rel (0) target = $region37
    $region36: #{pfrnn_forward.1} parent=1 // pred_region
      _
    $region37: #{pfrnn_forward.1} parent=1 // pred_fallthru
      _
    // Predicated region
    $region38: #{pfrnn_forward.1} parent=1 // pred_check
      _
    $region39: #{pfrnn_forward.1} parent=1 // pred_check_branch
      %101 = sbr.rel (0) target = $region41
    $region40: #{pfrnn_forward.1} parent=1 // pred_region
      %103 = vsyncadd [#allocation12], 0
      %s105 = sshll.u32 %s9, 4
      %s106 = int_to_ptr.hbm [resolvable:$true] %s105
      %s107 = sshll.u32 [#allocation13], 4
      %s108 = int_to_ptr.vmem [resolvable:$true] %s107
      %110 = dma.hbm_to_vmem [thread:$0]  %s106, 16, %s108, [#allocation12]
    $region41: #{pfrnn_forward.1} parent=1 // pred_fallthru
      _
    // Predicated region
    $region42: #{pfrnn_forward.1} parent=1 // pred_check
      _
    $region43: #{pfrnn_forward.1} parent=1 // pred_check_branch
      %112 = sbr.rel (0) target = $region45
    $region44: #{pfrnn_forward.1} parent=1 // pred_region
      %114 = dma.done [#allocation3], 3840
    $region45: #{pfrnn_forward.1} parent=1 // pred_fallthru
      _
    // Predicated region
    $region46: #{pfrnn_forward.1} parent=1 // pred_check
      _
    $region47: #{pfrnn_forward.1} parent=1 // pred_check_branch
      %116 = sbr.rel (0) target = $region49
    $region48: #{pfrnn_forward.1} parent=1 // pred_region
      %118 = dma.done [#allocation6], 32
    $region49: #{pfrnn_forward.1} parent=1 // pred_fallthru
      _
    // Predicated region
    $region50: #{pfrnn_forward.1} parent=1 // pred_check
      _
    $region51: #{pfrnn_forward.1} parent=1 // pred_check_branch
      %120 = sbr.rel (0) target = $region53
    $region52: #{pfrnn_forward.1} parent=1 // pred_region
      %122 = dma.done [#allocation6], 3840
    $region53: #{pfrnn_forward.1} parent=1 // pred_fallthru
      _
    // Predicated region
    $region54: #{pfrnn_forward.1} parent=1 // pred_check
      _
    $region55: #{pfrnn_forward.1} parent=1 // pred_check_branch
      %124 = sbr.rel (0) target = $region57
    $region56: #{pfrnn_forward.1} parent=1 // pred_region
      %126 = dma.done [#allocation9], 32
    $region57: #{pfrnn_forward.1} parent=1 // pred_fallthru
      _
    // Predicated region
    $region58: #{pfrnn_forward.1} parent=1 // pred_check
      _
    $region59: #{pfrnn_forward.1} parent=1 // pred_check_branch
      %128 = sbr.rel (0) target = $region61
    $region60: #{pfrnn_forward.1} parent=1 // pred_region
      %130 = dma.done [#allocation9], 69120
    $region61: #{pfrnn_forward.1} parent=1 // pred_fallthru
      _
    // Predicated region
    $region62: #{pfrnn_forward.1} parent=1 // pred_check
      _
    $region63: #{pfrnn_forward.1} parent=1 // pred_check_branch
      %132 = sbr.rel (0) target = $region65
    $region64: #{pfrnn_forward.1} parent=1 // pred_region
      %134 = dma.done [#allocation12], 288
    $region65: #{pfrnn_forward.1} parent=1 // pred_fallthru
      _
    // Predicated region
    $region66: #{pfrnn_forward.1} parent=1 // pred_check
      _
    $region67: #{pfrnn_forward.1} parent=1 // pred_check_branch
      %136 = sbr.rel (0) target = $region69
    $region68: #{pfrnn_forward.1} parent=1 // pred_region
      %138 = dma.done [#allocation12], 16
    $region69: #{pfrnn_forward.1} parent=1 // pred_fallthru
      _
    %v140 = vld [vmem:[%s0] sm:$0x3]
    %v141 = vld [vmem:[#allocation2] sm:$0xff]
    %v142 = vld [vmem:[#allocation2 + $0x8] sm:$0xff]
    %v143 = vld [vmem:[#allocation2 + $0x10] sm:$0xff]
    %v144 = vld [vmem:[#allocation2 + $0x18] sm:$0xff]
    %v145 = vld [vmem:[#allocation2 + $0x20] sm:$0xff]
    %v146 = vld [vmem:[#allocation2 + $0x28] sm:$0xff]
    %v147 = vld [vmem:[#allocation2 + $0x30] sm:$0xff]
    %v148 = vld [vmem:[#allocation2 + $0x38] sm:$0xff]
    %v149 = vld [vmem:[#allocation2 + $0x40] sm:$0xff]
    %v150 = vld [vmem:[#allocation2 + $0x48] sm:$0xff]
    %v151 = vld [vmem:[#allocation2 + $0x50] sm:$0xff]
    %v152 = vld [vmem:[#allocation2 + $0x58] sm:$0xff]
    %v153 = vld [vmem:[#allocation2 + $0x60] sm:$0xff]
    %v154 = vld [vmem:[#allocation2 + $0x68] sm:$0xff]
    %v155 = vld [vmem:[#allocation2 + $0x70] sm:$0xff]
    %v156 = vld [vmem:[#allocation2 + $0x78] sm:$0xff]
    %v157 = vld [vmem:[#allocation2 + $0x80] sm:$0xff]
    %v158 = vld [vmem:[#allocation2 + $0x88] sm:$0xff]
    %v159 = vld [vmem:[#allocation2 + $0x90] sm:$0xff]
    %v160 = vld [vmem:[#allocation2 + $0x98] sm:$0xff]
    %v161 = vld [vmem:[#allocation2 + $0xa0] sm:$0xff]
    %v162 = vld [vmem:[#allocation2 + $0xa8] sm:$0xff]
    %v163 = vld [vmem:[#allocation2 + $0xb0] sm:$0xff]
    %v164 = vld [vmem:[#allocation2 + $0xb8] sm:$0xff]
    %v165 = vld [vmem:[#allocation2 + $0xc0] sm:$0xff]
    %v166 = vld [vmem:[#allocation2 + $0xc8] sm:$0xff]
    %v167 = vld [vmem:[#allocation2 + $0xd0] sm:$0xff]
    %v168 = vld [vmem:[#allocation2 + $0xd8] sm:$0xff]
    %v169 = vld [vmem:[#allocation2 + $0xe0] sm:$0xff]
    %v170 = vld [vmem:[#allocation2 + $0xe8] sm:$0xff]
    %v171 = vld [vmem:[#allocation5] sm:$0x3]
    %173 = vst [vmem:[#allocation1] ss:$9 sm:$0xff] %v140
    %v174 = vld [vmem:[#allocation1] sm:$0xff]
    %v175 = vld [vmem:[#allocation1 + $0x9] sm:$0xff]
    %v207 = vunpack.c.l.b16 %v141
    %v208 = vunpack.c.h.b16 %v141
    %v209 = vunpack.c.l.b16 %v142
    %v210 = vunpack.c.h.b16 %v142
    %v211 = vunpack.c.l.b16 %v143
    %v212 = vunpack.c.h.b16 %v143
    %v213 = vunpack.c.l.b16 %v144
    %v214 = vunpack.c.h.b16 %v144
    %v215 = vunpack.c.l.b16 %v145
    %v216 = vunpack.c.h.b16 %v145
    %v217 = vunpack.c.l.b16 %v146
    %v218 = vunpack.c.h.b16 %v146
    %v219 = vunpack.c.l.b16 %v147
    %v220 = vunpack.c.h.b16 %v147
    %v221 = vunpack.c.l.b16 %v148
    %v222 = vunpack.c.h.b16 %v148
    %v223 = vunpack.c.l.b16 %v149
    %v224 = vunpack.c.h.b16 %v149
    %v225 = vunpack.c.l.b16 %v150
    %v226 = vunpack.c.h.b16 %v150
    %v227 = vunpack.c.l.b16 %v151
    %v228 = vunpack.c.h.b16 %v151
    %v229 = vunpack.c.l.b16 %v152
    %v230 = vunpack.c.h.b16 %v152
    %v231 = vunpack.c.l.b16 %v153
    %v232 = vunpack.c.h.b16 %v153
    %v233 = vunpack.c.l.b16 %v154
    %v234 = vunpack.c.h.b16 %v154
    %v235 = vunpack.c.l.b16 %v155
    %v236 = vunpack.c.h.b16 %v155
    %v237 = vunpack.c.l.b16 %v156
    %v238 = vunpack.c.h.b16 %v156
    %v239 = vunpack.c.l.b16 %v157
    %v240 = vunpack.c.h.b16 %v157
    %v241 = vunpack.c.l.b16 %v158
    %v242 = vunpack.c.h.b16 %v158
    %v243 = vunpack.c.l.b16 %v159
    %v244 = vunpack.c.h.b16 %v159
    %v245 = vunpack.c.l.b16 %v160
    %v246 = vunpack.c.h.b16 %v160
    %v247 = vunpack.c.l.b16 %v161
    %v248 = vunpack.c.h.b16 %v161
    %v249 = vunpack.c.l.b16 %v162
    %v250 = vunpack.c.h.b16 %v162
    %v251 = vunpack.c.l.b16 %v163
    %v252 = vunpack.c.h.b16 %v163
    %v253 = vunpack.c.l.b16 %v164
    %v254 = vunpack.c.h.b16 %v164
    %v255 = vunpack.c.l.b16 %v165
    %v256 = vunpack.c.h.b16 %v165
    %v257 = vunpack.c.l.b16 %v166
    %v258 = vunpack.c.h.b16 %v166
    %v259 = vunpack.c.l.b16 %v167
    %v260 = vunpack.c.h.b16 %v167
    %v261 = vunpack.c.l.b16 %v168
    %v262 = vunpack.c.h.b16 %v168
    %v263 = vunpack.c.l.b16 %v169
    %v264 = vunpack.c.h.b16 %v169
    %v265 = vunpack.c.l.b16 %v170
    %v266 = vunpack.c.h.b16 %v170
    %v267 = vpack.c.b16 %v209, %v207
    %v268 = vpack.c.b16 %v210, %v208
    %v269 = vpack.c.b16 %v213, %v211
    %v270 = vpack.c.b16 %v214, %v212
    %v271 = vpack.c.b16 %v217, %v215
    %v272 = vpack.c.b16 %v218, %v216
    %v273 = vpack.c.b16 %v221, %v219
    %v274 = vpack.c.b16 %v222, %v220
    %v275 = vpack.c.b16 %v225, %v223
    %v276 = vpack.c.b16 %v226, %v224
    %v277 = vpack.c.b16 %v229, %v227
    %v278 = vpack.c.b16 %v230, %v228
    %v279 = vpack.c.b16 %v233, %v231
    %v280 = vpack.c.b16 %v234, %v232
    %v281 = vpack.c.b16 %v237, %v235
    %v282 = vpack.c.b16 %v238, %v236
    %v283 = vpack.c.b16 %v241, %v239
    %v284 = vpack.c.b16 %v242, %v240
    %v285 = vpack.c.b16 %v245, %v243
    %v286 = vpack.c.b16 %v246, %v244
    %v287 = vpack.c.b16 %v249, %v247
    %v288 = vpack.c.b16 %v250, %v248
    %v289 = vpack.c.b16 %v253, %v251
    %v290 = vpack.c.b16 %v254, %v252
    %v291 = vpack.c.b16 %v257, %v255
    %v292 = vpack.c.b16 %v258, %v256
    %v293 = vpack.c.b16 %v261, %v259
    %v294 = vpack.c.b16 %v262, %v260
    %v295 = vpack.c.b16 %v265, %v263
    %v296 = vpack.c.b16 %v266, %v264
    %v328 = vperm.slane %v171, 0
    %v329 = vperm.slane %v171, 1
    %vm332 = vcmask 916480
    %v333 = vsel %vm332, %v175, 0
    %335 = vmatpush.bf16.msra.mxu0 %v281
    %336 = vmatpush.bf16.msra.mxu0 %v279
    %337 = vmatpush.bf16.msra.mxu0 %v277
    %338 = vmatpush.bf16.msra.mxu0 %v275
    %339 = vmatpush.bf16.msra.mxu0 %v273
    %340 = vmatpush.bf16.msra.mxu0 %v271
    %341 = vmatpush.bf16.msra.mxu0 %v269
    %342 = vmatpush.bf16.msra.mxu0 %v267
    %343 = vmatmul.bf16.gmra.mxu0 %v174
    %v344 = vpop.f32.mrf.mxu0
    %v345 = vadd.f32 %v328, %v344
    %v346 = vpop.f32.mrf.mxu0
    %347 = vdwg.mxu0
    %348 = vmatpush.bf16.msra.mxu0 0
    %349 = vmatpush.bf16.msra.mxu0 %v295
    %350 = vmatpush.bf16.msra.mxu0 %v293
    %351 = vmatpush.bf16.msra.mxu0 %v291
    %352 = vmatpush.bf16.msra.mxu0 %v289
    %353 = vmatpush.bf16.msra.mxu0 %v287
    %354 = vmatpush.bf16.msra.mxu0 %v285
    %355 = vmatpush.bf16.msra.mxu0 %v283
    %356 = vmatmul.bf16.gmra.mxu0 %v333
    %v357 = vpop.f32.mrf.mxu0
    %v358 = vadd.f32 %v345, %v357
    %v359 = vpop.f32.mrf.mxu0
    %360 = vdwg.mxu0
    %361 = vmatpush.bf16.msra.mxu0 %v282
    %362 = vmatpush.bf16.msra.mxu0 %v280
    %363 = vmatpush.bf16.msra.mxu0 %v278
    %364 = vmatpush.bf16.msra.mxu0 %v276
    %365 = vmatpush.bf16.msra.mxu0 %v274
    %366 = vmatpush.bf16.msra.mxu0 %v272
    %367 = vmatpush.bf16.msra.mxu0 %v270
    %368 = vmatpush.bf16.msra.mxu0 %v268
    %369 = vmatmul.bf16.gmra.mxu0 %v174
    %v370 = vpop.f32.mrf.mxu0
    %v371 = vadd.f32 %v329, %v370
    %v372 = vpop.f32.mrf.mxu0
    %373 = vdwg.mxu0
    %374 = vmatpush.bf16.msra.mxu0 0
    %375 = vmatpush.bf16.msra.mxu0 %v296
    %376 = vmatpush.bf16.msra.mxu0 %v294
    %377 = vmatpush.bf16.msra.mxu0 %v292
    %378 = vmatpush.bf16.msra.mxu0 %v290
    %379 = vmatpush.bf16.msra.mxu0 %v288
    %380 = vmatpush.bf16.msra.mxu0 %v286
    %381 = vmatpush.bf16.msra.mxu0 %v284
    %382 = vmatmul.bf16.gmra.mxu0 %v333
    %v383 = vpop.f32.mrf.mxu0
    %v384 = vadd.f32 %v371, %v383
    %v385 = vpop.f32.mrf.mxu0
    %386 = vdwg.mxu0
    %v387 = vmax.f32 %v358, 0.0
    %v388 = vmax.f32 %v384, 0.0
    %v389 = vld [vmem:[%s1] sm:$0x3]
    %v390 = vld [vmem:[#allocation7] sm:$0xff]
    %v391 = vld [vmem:[#allocation7 + $0x8] sm:$0xff]
    %v392 = vld [vmem:[#allocation7 + $0x10] sm:$0xff]
    %v393 = vld [vmem:[#allocation7 + $0x18] sm:$0xff]
    %v394 = vld [vmem:[#allocation7 + $0x20] sm:$0xff]
    %v395 = vld [vmem:[#allocation7 + $0x28] sm:$0xff]
    %v396 = vld [vmem:[#allocation7 + $0x30] sm:$0xff]
    %v397 = vld [vmem:[#allocation7 + $0x38] sm:$0xff]
    %v398 = vld [vmem:[#allocation7 + $0x40] sm:$0xff]
    %v399 = vld [vmem:[#allocation7 + $0x48] sm:$0xff]
    %v400 = vld [vmem:[#allocation7 + $0x50] sm:$0xff]
    %v401 = vld [vmem:[#allocation7 + $0x58] sm:$0xff]
    %v402 = vld [vmem:[#allocation7 + $0x60] sm:$0xff]
    %v403 = vld [vmem:[#allocation7 + $0x68] sm:$0xff]
    %v404 = vld [vmem:[#allocation7 + $0x70] sm:$0xff]
    %v405 = vld [vmem:[#allocation7 + $0x78] sm:$0xff]
    %v406 = vld [vmem:[#allocation7 + $0x80] sm:$0xff]
    %v407 = vld [vmem:[#allocation7 + $0x88] sm:$0xff]
    %v408 = vld [vmem:[#allocation7 + $0x90] sm:$0xff]
    %v409 = vld [vmem:[#allocation7 + $0x98] sm:$0xff]
    %v410 = vld [vmem:[#allocation7 + $0xa0] sm:$0xff]
    %v411 = vld [vmem:[#allocation7 + $0xa8] sm:$0xff]
    %v412 = vld [vmem:[#allocation7 + $0xb0] sm:$0xff]
    %v413 = vld [vmem:[#allocation7 + $0xb8] sm:$0xff]
    %v414 = vld [vmem:[#allocation7 + $0xc0] sm:$0xff]
    %v415 = vld [vmem:[#allocation7 + $0xc8] sm:$0xff]
    %v416 = vld [vmem:[#allocation7 + $0xd0] sm:$0xff]
    %v417 = vld [vmem:[#allocation7 + $0xd8] sm:$0xff]
    %v418 = vld [vmem:[#allocation7 + $0xe0] sm:$0xff]
    %v419 = vld [vmem:[#allocation7 + $0xe8] sm:$0xff]
    %v420 = vld [vmem:[#allocation8] sm:$0x3]
    %422 = vst [vmem:[#allocation1] ss:$9 sm:$0xff] %v389
    %v423 = vld [vmem:[#allocation1] sm:$0xff]
    %v424 = vld [vmem:[#allocation1 + $0x9] sm:$0xff]
    %v456 = vunpack.c.l.b16 %v390
    %v457 = vunpack.c.h.b16 %v390
    %v458 = vunpack.c.l.b16 %v391
    %v459 = vunpack.c.h.b16 %v391
    %v460 = vunpack.c.l.b16 %v392
    %v461 = vunpack.c.h.b16 %v392
    %v462 = vunpack.c.l.b16 %v393
    %v463 = vunpack.c.h.b16 %v393
    %v464 = vunpack.c.l.b16 %v394
    %v465 = vunpack.c.h.b16 %v394
    %v466 = vunpack.c.l.b16 %v395
    %v467 = vunpack.c.h.b16 %v395
    %v468 = vunpack.c.l.b16 %v396
    %v469 = vunpack.c.h.b16 %v396
    %v470 = vunpack.c.l.b16 %v397
    %v471 = vunpack.c.h.b16 %v397
    %v472 = vunpack.c.l.b16 %v398
    %v473 = vunpack.c.h.b16 %v398
    %v474 = vunpack.c.l.b16 %v399
    %v475 = vunpack.c.h.b16 %v399
    %v476 = vunpack.c.l.b16 %v400
    %v477 = vunpack.c.h.b16 %v400
    %v478 = vunpack.c.l.b16 %v401
    %v479 = vunpack.c.h.b16 %v401
    %v480 = vunpack.c.l.b16 %v402
    %v481 = vunpack.c.h.b16 %v402
    %v482 = vunpack.c.l.b16 %v403
    %v483 = vunpack.c.h.b16 %v403
    %v484 = vunpack.c.l.b16 %v404
    %v485 = vunpack.c.h.b16 %v404
    %v486 = vunpack.c.l.b16 %v405
    %v487 = vunpack.c.h.b16 %v405
    %v488 = vunpack.c.l.b16 %v406
    %v489 = vunpack.c.h.b16 %v406
    %v490 = vunpack.c.l.b16 %v407
    %v491 = vunpack.c.h.b16 %v407
    %v492 = vunpack.c.l.b16 %v408
    %v493 = vunpack.c.h.b16 %v408
    %v494 = vunpack.c.l.b16 %v409
    %v495 = vunpack.c.h.b16 %v409
    %v496 = vunpack.c.l.b16 %v410
    %v497 = vunpack.c.h.b16 %v410
    %v498 = vunpack.c.l.b16 %v411
    %v499 = vunpack.c.h.b16 %v411
    %v500 = vunpack.c.l.b16 %v412
    %v501 = vunpack.c.h.b16 %v412
    %v502 = vunpack.c.l.b16 %v413
    %v503 = vunpack.c.h.b16 %v413
    %v504 = vunpack.c.l.b16 %v414
    %v505 = vunpack.c.h.b16 %v414
    %v506 = vunpack.c.l.b16 %v415
    %v507 = vunpack.c.h.b16 %v415
    %v508 = vunpack.c.l.b16 %v416
    %v509 = vunpack.c.h.b16 %v416
    %v510 = vunpack.c.l.b16 %v417
    %v511 = vunpack.c.h.b16 %v417
    %v512 = vunpack.c.l.b16 %v418
    %v513 = vunpack.c.h.b16 %v418
    %v514 = vunpack.c.l.b16 %v419
    %v515 = vunpack.c.h.b16 %v419
    %v516 = vpack.c.b16 %v458, %v456
    %v517 = vpack.c.b16 %v459, %v457
    %v518 = vpack.c.b16 %v462, %v460
    %v519 = vpack.c.b16 %v463, %v461
    %v520 = vpack.c.b16 %v466, %v464
    %v521 = vpack.c.b16 %v467, %v465
    %v522 = vpack.c.b16 %v470, %v468
    %v523 = vpack.c.b16 %v471, %v469
    %v524 = vpack.c.b16 %v474, %v472
    %v525 = vpack.c.b16 %v475, %v473
    %v526 = vpack.c.b16 %v478, %v476
    %v527 = vpack.c.b16 %v479, %v477
    %v528 = vpack.c.b16 %v482, %v480
    %v529 = vpack.c.b16 %v483, %v481
    %v530 = vpack.c.b16 %v486, %v484
    %v531 = vpack.c.b16 %v487, %v485
    %v532 = vpack.c.b16 %v490, %v488
    %v533 = vpack.c.b16 %v491, %v489
    %v534 = vpack.c.b16 %v494, %v492
    %v535 = vpack.c.b16 %v495, %v493
    %v536 = vpack.c.b16 %v498, %v496
    %v537 = vpack.c.b16 %v499, %v497
    %v538 = vpack.c.b16 %v502, %v500
    %v539 = vpack.c.b16 %v503, %v501
    %v540 = vpack.c.b16 %v506, %v504
    %v541 = vpack.c.b16 %v507, %v505
    %v542 = vpack.c.b16 %v510, %v508
    %v543 = vpack.c.b16 %v511, %v509
    %v544 = vpack.c.b16 %v514, %v512
    %v545 = vpack.c.b16 %v515, %v513
    %v577 = vperm.slane %v420, 0
    %v578 = vperm.slane %v420, 1
    %v581 = vsel %vm332, %v424, 0
    %583 = vmatpush.bf16.msra.mxu0 %v530
    %584 = vmatpush.bf16.msra.mxu0 %v528
    %585 = vmatpush.bf16.msra.mxu0 %v526
    %586 = vmatpush.bf16.msra.mxu0 %v524
    %587 = vmatpush.bf16.msra.mxu0 %v522
    %588 = vmatpush.bf16.msra.mxu0 %v520
    %589 = vmatpush.bf16.msra.mxu0 %v518
    %590 = vmatpush.bf16.msra.mxu0 %v516
    %591 = vmatmul.bf16.gmra.mxu0 %v423
    %v592 = vpop.f32.mrf.mxu0
    %v593 = vadd.f32 %v577, %v592
    %v594 = vpop.f32.mrf.mxu0
    %595 = vdwg.mxu0
    %596 = vmatpush.bf16.msra.mxu0 0
    %597 = vmatpush.bf16.msra.mxu0 %v544
    %598 = vmatpush.bf16.msra.mxu0 %v542
    %599 = vmatpush.bf16.msra.mxu0 %v540
    %600 = vmatpush.bf16.msra.mxu0 %v538
    %601 = vmatpush.bf16.msra.mxu0 %v536
    %602 = vmatpush.bf16.msra.mxu0 %v534
    %603 = vmatpush.bf16.msra.mxu0 %v532
    %604 = vmatmul.bf16.gmra.mxu0 %v581
    %v605 = vpop.f32.mrf.mxu0
    %v606 = vadd.f32 %v593, %v605
    %v607 = vpop.f32.mrf.mxu0
    %608 = vdwg.mxu0
    %609 = vmatpush.bf16.msra.mxu0 %v531
    %610 = vmatpush.bf16.msra.mxu0 %v529
    %611 = vmatpush.bf16.msra.mxu0 %v527
    %612 = vmatpush.bf16.msra.mxu0 %v525
    %613 = vmatpush.bf16.msra.mxu0 %v523
    %614 = vmatpush.bf16.msra.mxu0 %v521
    %615 = vmatpush.bf16.msra.mxu0 %v519
    %616 = vmatpush.bf16.msra.mxu0 %v517
    %617 = vmatmul.bf16.gmra.mxu0 %v423
    %v618 = vpop.f32.mrf.mxu0
    %v619 = vadd.f32 %v578, %v618
    %v620 = vpop.f32.mrf.mxu0
    %621 = vdwg.mxu0
    %622 = vmatpush.bf16.msra.mxu0 0
    %623 = vmatpush.bf16.msra.mxu0 %v545
    %624 = vmatpush.bf16.msra.mxu0 %v543
    %625 = vmatpush.bf16.msra.mxu0 %v541
    %626 = vmatpush.bf16.msra.mxu0 %v539
    %627 = vmatpush.bf16.msra.mxu0 %v537
    %628 = vmatpush.bf16.msra.mxu0 %v535
    %629 = vmatpush.bf16.msra.mxu0 %v533
    %630 = vmatmul.bf16.gmra.mxu0 %v581
    %v631 = vpop.f32.mrf.mxu0
    %v632 = vadd.f32 %v619, %v631
    %v633 = vpop.f32.mrf.mxu0
    %634 = vdwg.mxu0
    %v635 = vmax.f32 %v606, 0.0
    %v636 = vmax.f32 %v632, 0.0
    %v637 = vpack.c.bf16 %v387, %v387
    %v638 = vpack.c.bf16 %v388, %v388
    %v639 = vld [vmem:[#allocation10] sm:$0xff]
    %v640 = vld [vmem:[#allocation10 + $0x8] sm:$0xff]
    %v641 = vld [vmem:[#allocation10 + $0x10] sm:$0xff]
    %v642 = vld [vmem:[#allocation10 + $0x18] sm:$0xff]
    %v643 = vld [vmem:[#allocation10 + $0x20] sm:$0xff]
    %v644 = vld [vmem:[#allocation10 + $0x28] sm:$0xff]
    %v645 = vld [vmem:[#allocation10 + $0x30] sm:$0xff]
    %v646 = vld [vmem:[#allocation10 + $0x38] sm:$0xff]
    %v647 = vld [vmem:[#allocation10 + $0x40] sm:$0xff]
    %v648 = vld [vmem:[#allocation10 + $0x48] sm:$0xff]
    %v649 = vld [vmem:[#allocation10 + $0x50] sm:$0xff]
    %v650 = vld [vmem:[#allocation10 + $0x58] sm:$0xff]
    %v651 = vld [vmem:[#allocation10 + $0x60] sm:$0xff]
    %v652 = vld [vmem:[#allocation10 + $0x68] sm:$0xff]
    %v653 = vld [vmem:[#allocation10 + $0x70] sm:$0xff]
    %v654 = vld [vmem:[#allocation10 + $0x78] sm:$0xff]
    %v655 = vld [vmem:[#allocation10 + $0x80] sm:$0xff]
    %v656 = vld [vmem:[#allocation10 + $0x88] sm:$0xff]
    %v657 = vld [vmem:[#allocation10 + $0x90] sm:$0xff]
    %v658 = vld [vmem:[#allocation10 + $0x98] sm:$0xff]
    %v659 = vld [vmem:[#allocation10 + $0xa0] sm:$0xff]
    %v660 = vld [vmem:[#allocation10 + $0xa8] sm:$0xff]
    %v661 = vld [vmem:[#allocation10 + $0xb0] sm:$0xff]
    %v662 = vld [vmem:[#allocation10 + $0xb8] sm:$0xff]
    %v663 = vld [vmem:[#allocation10 + $0xc0] sm:$0xff]
    %v664 = vld [vmem:[#allocation10 + $0xc8] sm:$0xff]
    %v665 = vld [vmem:[#allocation10 + $0xd0] sm:$0xff]
    %v666 = vld [vmem:[#allocation10 + $0xd8] sm:$0xff]
    %v667 = vld [vmem:[#allocation10 + $0xe0] sm:$0xff]
    %v668 = vld [vmem:[#allocation10 + $0xe8] sm:$0xff]
    %v669 = vld [vmem:[#allocation10 + $0xf0] sm:$0xff]
    %v670 = vld [vmem:[#allocation10 + $0xf8] sm:$0xff]
    %v671 = vld [vmem:[#allocation10 + $0x100] sm:$0xff]
    %v672 = vld [vmem:[#allocation10 + $0x108] sm:$0xff]
    %v673 = vld [vmem:[#allocation10 + $0x110] sm:$0xff]
    %v674 = vld [vmem:[#allocation10 + $0x118] sm:$0xff]
    %v675 = vld [vmem:[#allocation10 + $0x120] sm:$0xff]
    %v676 = vld [vmem:[#allocation10 + $0x128] sm:$0xff]
    %v677 = vld [vmem:[#allocation10 + $0x130] sm:$0xff]
    %v678 = vld [vmem:[#allocation10 + $0x138] sm:$0xff]
    %v679 = vld [vmem:[#allocation10 + $0x140] sm:$0xff]
    %v680 = vld [vmem:[#allocation10 + $0x148] sm:$0xff]
    %v681 = vld [vmem:[#allocation10 + $0x150] sm:$0xff]
    %v682 = vld [vmem:[#allocation10 + $0x158] sm:$0xff]
    %v683 = vld [vmem:[#allocation10 + $0x160] sm:$0xff]
    %v684 = vld [vmem:[#allocation10 + $0x168] sm:$0xff]
    %v685 = vld [vmem:[#allocation10 + $0x170] sm:$0xff]
    %v686 = vld [vmem:[#allocation10 + $0x178] sm:$0xff]
    %v687 = vld [vmem:[#allocation10 + $0x180] sm:$0xff]
    %v688 = vld [vmem:[#allocation10 + $0x188] sm:$0xff]
    %v689 = vld [vmem:[#allocation10 + $0x190] sm:$0xff]
    %v690 = vld [vmem:[#allocation10 + $0x198] sm:$0xff]
    %v691 = vld [vmem:[#allocation10 + $0x1a0] sm:$0xff]
    %v692 = vld [vmem:[#allocation10 + $0x1a8] sm:$0xff]
    %v693 = vld [vmem:[#allocation10 + $0x1b0] sm:$0xff]
    %v694 = vld [vmem:[#allocation10 + $0x1b8] sm:$0xff]
    %v695 = vld [vmem:[#allocation10 + $0x1c0] sm:$0xff]
    %v696 = vld [vmem:[#allocation10 + $0x1c8] sm:$0xff]
    %v697 = vld [vmem:[#allocation10 + $0x1d0] sm:$0xff]
    %v698 = vld [vmem:[#allocation10 + $0x1d8] sm:$0xff]
    %v699 = vld [vmem:[#allocation10 + $0x1e0] sm:$0xff]
    %v700 = vld [vmem:[#allocation10 + $0x1e8] sm:$0xff]
    %v701 = vld [vmem:[#allocation10 + $0x1f0] sm:$0xff]
    %v702 = vld [vmem:[#allocation10 + $0x1f8] sm:$0xff]
    %v703 = vld [vmem:[#allocation10 + $0x200] sm:$0xff]
    %v704 = vld [vmem:[#allocation10 + $0x208] sm:$0xff]
    %v705 = vld [vmem:[#allocation10 + $0x210] sm:$0xff]
    %v706 = vld [vmem:[#allocation10 + $0x218] sm:$0xff]
    %v707 = vld [vmem:[#allocation10 + $0x220] sm:$0xff]
    %v708 = vld [vmem:[#allocation10 + $0x228] sm:$0xff]
    %v709 = vld [vmem:[#allocation10 + $0x230] sm:$0xff]
    %v710 = vld [vmem:[#allocation10 + $0x238] sm:$0xff]
    %v711 = vld [vmem:[#allocation10 + $0x240] sm:$0xff]
    %v712 = vld [vmem:[#allocation10 + $0x248] sm:$0xff]
    %v713 = vld [vmem:[#allocation10 + $0x250] sm:$0xff]
    %v714 = vld [vmem:[#allocation10 + $0x258] sm:$0xff]
    %v715 = vld [vmem:[#allocation10 + $0x260] sm:$0xff]
    %v716 = vld [vmem:[#allocation10 + $0x268] sm:$0xff]
    %v717 = vld [vmem:[#allocation10 + $0x270] sm:$0xff]
    %v718 = vld [vmem:[#allocation10 + $0x278] sm:$0xff]
    %v719 = vld [vmem:[#allocation10 + $0x280] sm:$0xff]
    %v720 = vld [vmem:[#allocation10 + $0x288] sm:$0xff]
    %v721 = vld [vmem:[#allocation10 + $0x290] sm:$0xff]
    %v722 = vld [vmem:[#allocation10 + $0x298] sm:$0xff]
    %v723 = vld [vmem:[#allocation10 + $0x2a0] sm:$0xff]
    %v724 = vld [vmem:[#allocation10 + $0x2a8] sm:$0xff]
    %v725 = vld [vmem:[#allocation10 + $0x2b0] sm:$0xff]
    %v726 = vld [vmem:[#allocation10 + $0x2b8] sm:$0xff]
    %v727 = vld [vmem:[#allocation10 + $0x2c0] sm:$0xff]
    %v728 = vld [vmem:[#allocation10 + $0x2c8] sm:$0xff]
    %v729 = vld [vmem:[#allocation10 + $0x2d0] sm:$0xff]
    %v730 = vld [vmem:[#allocation10 + $0x2d8] sm:$0xff]
    %v731 = vld [vmem:[#allocation10 + $0x2e0] sm:$0xff]
    %v732 = vld [vmem:[#allocation10 + $0x2e8] sm:$0xff]
    %v733 = vld [vmem:[#allocation10 + $0x2f0] sm:$0xff]
    %v734 = vld [vmem:[#allocation10 + $0x2f8] sm:$0xff]
    %v735 = vld [vmem:[#allocation10 + $0x300] sm:$0xff]
    %v736 = vld [vmem:[#allocation10 + $0x308] sm:$0xff]
    %v737 = vld [vmem:[#allocation10 + $0x310] sm:$0xff]
    %v738 = vld [vmem:[#allocation10 + $0x318] sm:$0xff]
    %v739 = vld [vmem:[#allocation10 + $0x320] sm:$0xff]
    %v740 = vld [vmem:[#allocation10 + $0x328] sm:$0xff]
    %v741 = vld [vmem:[#allocation10 + $0x330] sm:$0xff]
    %v742 = vld [vmem:[#allocation10 + $0x338] sm:$0xff]
    %v743 = vld [vmem:[#allocation10 + $0x340] sm:$0xff]
    %v744 = vld [vmem:[#allocation10 + $0x348] sm:$0xff]
    %v745 = vld [vmem:[#allocation10 + $0x350] sm:$0xff]
    %v746 = vld [vmem:[#allocation10 + $0x358] sm:$0xff]
    %v747 = vld [vmem:[#allocation10 + $0x360] sm:$0xff]
    %v748 = vld [vmem:[#allocation10 + $0x368] sm:$0xff]
    %v749 = vld [vmem:[#allocation10 + $0x370] sm:$0xff]
    %v750 = vld [vmem:[#allocation10 + $0x378] sm:$0xff]
    %v751 = vld [vmem:[#allocation10 + $0x380] sm:$0xff]
    %v752 = vld [vmem:[#allocation10 + $0x388] sm:$0xff]
    %v753 = vld [vmem:[#allocation10 + $0x390] sm:$0xff]
    %v754 = vld [vmem:[#allocation10 + $0x398] sm:$0xff]
    %v755 = vld [vmem:[#allocation10 + $0x3a0] sm:$0xff]
    %v756 = vld [vmem:[#allocation10 + $0x3a8] sm:$0xff]
    %v757 = vld [vmem:[#allocation10 + $0x3b0] sm:$0xff]
    %v758 = vld [vmem:[#allocation10 + $0x3b8] sm:$0xff]
    %v759 = vld [vmem:[#allocation10 + $0x3c0] sm:$0xff]
    %v760 = vld [vmem:[#allocation10 + $0x3c8] sm:$0xff]
    %v761 = vld [vmem:[#allocation10 + $0x3d0] sm:$0xff]
    %v762 = vld [vmem:[#allocation10 + $0x3d8] sm:$0xff]
    %v763 = vld [vmem:[#allocation10 + $0x3e0] sm:$0xff]
    %v764 = vld [vmem:[#allocation10 + $0x3e8] sm:$0xff]
    %v765 = vld [vmem:[#allocation10 + $0x3f0] sm:$0xff]
    %v766 = vld [vmem:[#allocation10 + $0x3f8] sm:$0xff]
    %v767 = vld [vmem:[#allocation10 + $0x400] sm:$0xff]
    %v768 = vld [vmem:[#allocation10 + $0x408] sm:$0xff]
    %v769 = vld [vmem:[#allocation10 + $0x410] sm:$0xff]
    %v770 = vld [vmem:[#allocation10 + $0x418] sm:$0xff]
    %v771 = vld [vmem:[#allocation10 + $0x420] sm:$0xff]
    %v772 = vld [vmem:[#allocation10 + $0x428] sm:$0xff]
    %v773 = vld [vmem:[#allocation10 + $0x430] sm:$0xff]
    %v774 = vld [vmem:[#allocation10 + $0x438] sm:$0xff]
    %v775 = vld [vmem:[#allocation10 + $0x440] sm:$0xff]
    %v776 = vld [vmem:[#allocation10 + $0x448] sm:$0xff]
    %v777 = vld [vmem:[#allocation10 + $0x450] sm:$0xff]
    %v778 = vld [vmem:[#allocation10 + $0x458] sm:$0xff]
    %v779 = vld [vmem:[#allocation10 + $0x460] sm:$0xff]
    %v780 = vld [vmem:[#allocation10 + $0x468] sm:$0xff]
    %v781 = vld [vmem:[#allocation10 + $0x470] sm:$0xff]
    %v782 = vld [vmem:[#allocation10 + $0x478] sm:$0xff]
    %v783 = vld [vmem:[#allocation10 + $0x480] sm:$0xff]
    %v784 = vld [vmem:[#allocation10 + $0x488] sm:$0xff]
    %v785 = vld [vmem:[#allocation10 + $0x490] sm:$0xff]
    %v786 = vld [vmem:[#allocation10 + $0x498] sm:$0xff]
    %v787 = vld [vmem:[#allocation10 + $0x4a0] sm:$0xff]
    %v788 = vld [vmem:[#allocation10 + $0x4a8] sm:$0xff]
    %v789 = vld [vmem:[#allocation10 + $0x4b0] sm:$0xff]
    %v790 = vld [vmem:[#allocation10 + $0x4b8] sm:$0xff]
    %v791 = vld [vmem:[#allocation10 + $0x4c0] sm:$0xff]
    %v792 = vld [vmem:[#allocation10 + $0x4c8] sm:$0xff]
    %v793 = vld [vmem:[#allocation10 + $0x4d0] sm:$0xff]
    %v794 = vld [vmem:[#allocation10 + $0x4d8] sm:$0xff]
    %v795 = vld [vmem:[#allocation10 + $0x4e0] sm:$0xff]
    %v796 = vld [vmem:[#allocation10 + $0x4e8] sm:$0xff]
    %v797 = vld [vmem:[#allocation10 + $0x4f0] sm:$0xff]
    %v798 = vld [vmem:[#allocation10 + $0x4f8] sm:$0xff]
    %v799 = vld [vmem:[#allocation10 + $0x500] sm:$0xff]
    %v800 = vld [vmem:[#allocation10 + $0x508] sm:$0xff]
    %v801 = vld [vmem:[#allocation10 + $0x510] sm:$0xff]
    %v802 = vld [vmem:[#allocation10 + $0x518] sm:$0xff]
    %v803 = vld [vmem:[#allocation10 + $0x520] sm:$0xff]
    %v804 = vld [vmem:[#allocation10 + $0x528] sm:$0xff]
    %v805 = vld [vmem:[#allocation10 + $0x530] sm:$0xff]
    %v806 = vld [vmem:[#allocation10 + $0x538] sm:$0xff]
    %v807 = vld [vmem:[#allocation10 + $0x540] sm:$0xff]
    %v808 = vld [vmem:[#allocation10 + $0x548] sm:$0xff]
    %v809 = vld [vmem:[#allocation10 + $0x550] sm:$0xff]
    %v810 = vld [vmem:[#allocation10 + $0x558] sm:$0xff]
    %v811 = vld [vmem:[#allocation10 + $0x560] sm:$0xff]
    %v812 = vld [vmem:[#allocation10 + $0x568] sm:$0xff]
    %v813 = vld [vmem:[#allocation10 + $0x570] sm:$0xff]
    %v814 = vld [vmem:[#allocation10 + $0x578] sm:$0xff]
    %v815 = vld [vmem:[#allocation10 + $0x580] sm:$0xff]
    %v816 = vld [vmem:[#allocation10 + $0x588] sm:$0xff]
    %v817 = vld [vmem:[#allocation10 + $0x590] sm:$0xff]
    %v818 = vld [vmem:[#allocation10 + $0x598] sm:$0xff]
    %v819 = vld [vmem:[#allocation10 + $0x5a0] sm:$0xff]
    %v820 = vld [vmem:[#allocation10 + $0x5a8] sm:$0xff]
    %v821 = vld [vmem:[#allocation10 + $0x5b0] sm:$0xff]
    %v822 = vld [vmem:[#allocation10 + $0x5b8] sm:$0xff]
    %v823 = vld [vmem:[#allocation10 + $0x5c0] sm:$0xff]
    %v824 = vld [vmem:[#allocation10 + $0x5c8] sm:$0xff]
    %v825 = vld [vmem:[#allocation10 + $0x5d0] sm:$0xff]
    %v826 = vld [vmem:[#allocation10 + $0x5d8] sm:$0xff]
    %v827 = vld [vmem:[#allocation10 + $0x5e0] sm:$0xff]
    %v828 = vld [vmem:[#allocation10 + $0x5e8] sm:$0xff]
    %v829 = vld [vmem:[#allocation10 + $0x5f0] sm:$0xff]
    %v830 = vld [vmem:[#allocation10 + $0x5f8] sm:$0xff]
    %v831 = vld [vmem:[#allocation10 + $0x600] sm:$0xff]
    %v832 = vld [vmem:[#allocation10 + $0x608] sm:$0xff]
    %v833 = vld [vmem:[#allocation10 + $0x610] sm:$0xff]
    %v834 = vld [vmem:[#allocation10 + $0x618] sm:$0xff]
    %v835 = vld [vmem:[#allocation10 + $0x620] sm:$0xff]
    %v836 = vld [vmem:[#allocation10 + $0x628] sm:$0xff]
    %v837 = vld [vmem:[#allocation10 + $0x630] sm:$0xff]
    %v838 = vld [vmem:[#allocation10 + $0x638] sm:$0xff]
    %v839 = vld [vmem:[#allocation10 + $0x640] sm:$0xff]
    %v840 = vld [vmem:[#allocation10 + $0x648] sm:$0xff]
    %v841 = vld [vmem:[#allocation10 + $0x650] sm:$0xff]
    %v842 = vld [vmem:[#allocation10 + $0x658] sm:$0xff]
    %v843 = vld [vmem:[#allocation10 + $0x660] sm:$0xff]
    %v844 = vld [vmem:[#allocation10 + $0x668] sm:$0xff]
    %v845 = vld [vmem:[#allocation10 + $0x670] sm:$0xff]
    %v846 = vld [vmem:[#allocation10 + $0x678] sm:$0xff]
    %v847 = vld [vmem:[#allocation10 + $0x680] sm:$0xff]
    %v848 = vld [vmem:[#allocation10 + $0x688] sm:$0xff]
    %v849 = vld [vmem:[#allocation10 + $0x690] sm:$0xff]
    %v850 = vld [vmem:[#allocation10 + $0x698] sm:$0xff]
    %v851 = vld [vmem:[#allocation10 + $0x6a0] sm:$0xff]
    %v852 = vld [vmem:[#allocation10 + $0x6a8] sm:$0xff]
    %v853 = vld [vmem:[#allocation10 + $0x6b0] sm:$0xff]
    %v854 = vld [vmem:[#allocation10 + $0x6b8] sm:$0xff]
    %v855 = vld [vmem:[#allocation10 + $0x6c0] sm:$0xff]
    %v856 = vld [vmem:[#allocation10 + $0x6c8] sm:$0xff]
    %v857 = vld [vmem:[#allocation10 + $0x6d0] sm:$0xff]
    %v858 = vld [vmem:[#allocation10 + $0x6d8] sm:$0xff]
    %v859 = vld [vmem:[#allocation10 + $0x6e0] sm:$0xff]
    %v860 = vld [vmem:[#allocation10 + $0x6e8] sm:$0xff]
    %v861 = vld [vmem:[#allocation10 + $0x6f0] sm:$0xff]
    %v862 = vld [vmem:[#allocation10 + $0x6f8] sm:$0xff]
    %v863 = vld [vmem:[#allocation10 + $0x700] sm:$0xff]
    %v864 = vld [vmem:[#allocation10 + $0x708] sm:$0xff]
    %v865 = vld [vmem:[#allocation10 + $0x710] sm:$0xff]
    %v866 = vld [vmem:[#allocation10 + $0x718] sm:$0xff]
    %v867 = vld [vmem:[#allocation10 + $0x720] sm:$0xff]
    %v868 = vld [vmem:[#allocation10 + $0x728] sm:$0xff]
    %v869 = vld [vmem:[#allocation10 + $0x730] sm:$0xff]
    %v870 = vld [vmem:[#allocation10 + $0x738] sm:$0xff]
    %v871 = vld [vmem:[#allocation10 + $0x740] sm:$0xff]
    %v872 = vld [vmem:[#allocation10 + $0x748] sm:$0xff]
    %v873 = vld [vmem:[#allocation10 + $0x750] sm:$0xff]
    %v874 = vld [vmem:[#allocation10 + $0x758] sm:$0xff]
    %v875 = vld [vmem:[#allocation10 + $0x760] sm:$0xff]
    %v876 = vld [vmem:[#allocation10 + $0x768] sm:$0xff]
    %v877 = vld [vmem:[#allocation10 + $0x770] sm:$0xff]
    %v878 = vld [vmem:[#allocation10 + $0x778] sm:$0xff]
    %v879 = vld [vmem:[#allocation10 + $0x780] sm:$0xff]
    %v880 = vld [vmem:[#allocation10 + $0x788] sm:$0xff]
    %v881 = vld [vmem:[#allocation10 + $0x790] sm:$0xff]
    %v882 = vld [vmem:[#allocation10 + $0x798] sm:$0xff]
    %v883 = vld [vmem:[#allocation10 + $0x7a0] sm:$0xff]
    %v884 = vld [vmem:[#allocation10 + $0x7a8] sm:$0xff]
    %v885 = vld [vmem:[#allocation10 + $0x7b0] sm:$0xff]
    %v886 = vld [vmem:[#allocation10 + $0x7b8] sm:$0xff]
    %v887 = vld [vmem:[#allocation10 + $0x7c0] sm:$0xff]
    %v888 = vld [vmem:[#allocation10 + $0x7c8] sm:$0xff]
    %v889 = vld [vmem:[#allocation10 + $0x7d0] sm:$0xff]
    %v890 = vld [vmem:[#allocation10 + $0x7d8] sm:$0xff]
    %v891 = vld [vmem:[#allocation10 + $0x7e0] sm:$0xff]
    %v892 = vld [vmem:[#allocation10 + $0x7e8] sm:$0xff]
    %v893 = vld [vmem:[#allocation10 + $0x7f0] sm:$0xff]
    %v894 = vld [vmem:[#allocation10 + $0x7f8] sm:$0xff]
    %v895 = vld [vmem:[#allocation10 + $0x800] sm:$0xff]
    %v896 = vld [vmem:[#allocation10 + $0x808] sm:$0xff]
    %v897 = vld [vmem:[#allocation10 + $0x810] sm:$0xff]
    %v898 = vld [vmem:[#allocation10 + $0x818] sm:$0xff]
    %v899 = vld [vmem:[#allocation10 + $0x820] sm:$0xff]
    %v900 = vld [vmem:[#allocation10 + $0x828] sm:$0xff]
    %v901 = vld [vmem:[#allocation10 + $0x830] sm:$0xff]
    %v902 = vld [vmem:[#allocation10 + $0x838] sm:$0xff]
    %v903 = vld [vmem:[#allocation10 + $0x840] sm:$0xff]
    %v904 = vld [vmem:[#allocation10 + $0x848] sm:$0xff]
    %v905 = vld [vmem:[#allocation10 + $0x850] sm:$0xff]
    %v906 = vld [vmem:[#allocation10 + $0x858] sm:$0xff]
    %v907 = vld [vmem:[#allocation10 + $0x860] sm:$0xff]
    %v908 = vld [vmem:[#allocation10 + $0x868] sm:$0xff]
    %v909 = vpack.c.bf16 %v635, %v635
    %v910 = vpack.c.bf16 %v636, %v636
    %v911 = vld [vmem:[#allocation10 + $0x870] sm:$0xff]
    %v912 = vld [vmem:[#allocation10 + $0x878] sm:$0xff]
    %v913 = vld [vmem:[#allocation10 + $0x880] sm:$0xff]
    %v914 = vld [vmem:[#allocation10 + $0x888] sm:$0xff]
    %v915 = vld [vmem:[#allocation10 + $0x890] sm:$0xff]
    %v916 = vld [vmem:[#allocation10 + $0x898] sm:$0xff]
    %v917 = vld [vmem:[#allocation10 + $0x8a0] sm:$0xff]
    %v918 = vld [vmem:[#allocation10 + $0x8a8] sm:$0xff]
    %v919 = vld [vmem:[#allocation10 + $0x8b0] sm:$0xff]
    %v920 = vld [vmem:[#allocation10 + $0x8b8] sm:$0xff]
    %v921 = vld [vmem:[#allocation10 + $0x8c0] sm:$0xff]
    %v922 = vld [vmem:[#allocation10 + $0x8c8] sm:$0xff]
    %v923 = vld [vmem:[#allocation10 + $0x8d0] sm:$0xff]
    %v924 = vld [vmem:[#allocation10 + $0x8d8] sm:$0xff]
    %v925 = vld [vmem:[#allocation10 + $0x8e0] sm:$0xff]
    %v926 = vld [vmem:[#allocation10 + $0x8e8] sm:$0xff]
    %v927 = vld [vmem:[#allocation10 + $0x8f0] sm:$0xff]
    %v928 = vld [vmem:[#allocation10 + $0x8f8] sm:$0xff]
    %v929 = vld [vmem:[#allocation10 + $0x900] sm:$0xff]
    %v930 = vld [vmem:[#allocation10 + $0x908] sm:$0xff]
    %v931 = vld [vmem:[#allocation10 + $0x910] sm:$0xff]
    %v932 = vld [vmem:[#allocation10 + $0x918] sm:$0xff]
    %v933 = vld [vmem:[#allocation10 + $0x920] sm:$0xff]
    %v934 = vld [vmem:[#allocation10 + $0x928] sm:$0xff]
    %v935 = vld [vmem:[#allocation10 + $0x930] sm:$0xff]
    %v936 = vld [vmem:[#allocation10 + $0x938] sm:$0xff]
    %v937 = vld [vmem:[#allocation10 + $0x940] sm:$0xff]
    %v938 = vld [vmem:[#allocation10 + $0x948] sm:$0xff]
    %v939 = vld [vmem:[#allocation10 + $0x950] sm:$0xff]
    %v940 = vld [vmem:[#allocation10 + $0x958] sm:$0xff]
    %v941 = vld [vmem:[#allocation10 + $0x960] sm:$0xff]
    %v942 = vld [vmem:[#allocation10 + $0x968] sm:$0xff]
    %v943 = vld [vmem:[#allocation10 + $0x970] sm:$0xff]
    %v944 = vld [vmem:[#allocation10 + $0x978] sm:$0xff]
    %v945 = vld [vmem:[#allocation10 + $0x980] sm:$0xff]
    %v946 = vld [vmem:[#allocation10 + $0x988] sm:$0xff]
    %v947 = vld [vmem:[#allocation10 + $0x990] sm:$0xff]
    %v948 = vld [vmem:[#allocation10 + $0x998] sm:$0xff]
    %v949 = vld [vmem:[#allocation10 + $0x9a0] sm:$0xff]
    %v950 = vld [vmem:[#allocation10 + $0x9a8] sm:$0xff]
    %v951 = vld [vmem:[#allocation10 + $0x9b0] sm:$0xff]
    %v952 = vld [vmem:[#allocation10 + $0x9b8] sm:$0xff]
    %v953 = vld [vmem:[#allocation10 + $0x9c0] sm:$0xff]
    %v954 = vld [vmem:[#allocation10 + $0x9c8] sm:$0xff]
    %v955 = vld [vmem:[#allocation10 + $0x9d0] sm:$0xff]
    %v956 = vld [vmem:[#allocation10 + $0x9d8] sm:$0xff]
    %v957 = vld [vmem:[#allocation10 + $0x9e0] sm:$0xff]
    %v958 = vld [vmem:[#allocation10 + $0x9e8] sm:$0xff]
    %v959 = vld [vmem:[#allocation10 + $0x9f0] sm:$0xff]
    %v960 = vld [vmem:[#allocation10 + $0x9f8] sm:$0xff]
    %v961 = vld [vmem:[#allocation10 + $0xa00] sm:$0xff]
    %v962 = vld [vmem:[#allocation10 + $0xa08] sm:$0xff]
    %v963 = vld [vmem:[#allocation10 + $0xa10] sm:$0xff]
    %v964 = vld [vmem:[#allocation10 + $0xa18] sm:$0xff]
    %v965 = vld [vmem:[#allocation10 + $0xa20] sm:$0xff]
    %v966 = vld [vmem:[#allocation10 + $0xa28] sm:$0xff]
    %v967 = vld [vmem:[#allocation10 + $0xa30] sm:$0xff]
    %v968 = vld [vmem:[#allocation10 + $0xa38] sm:$0xff]
    %v969 = vld [vmem:[#allocation10 + $0xa40] sm:$0xff]
    %v970 = vld [vmem:[#allocation10 + $0xa48] sm:$0xff]
    %v971 = vld [vmem:[#allocation10 + $0xa50] sm:$0xff]
    %v972 = vld [vmem:[#allocation10 + $0xa58] sm:$0xff]
    %v973 = vld [vmem:[#allocation10 + $0xa60] sm:$0xff]
    %v974 = vld [vmem:[#allocation10 + $0xa68] sm:$0xff]
    %v975 = vld [vmem:[#allocation10 + $0xa70] sm:$0xff]
    %v976 = vld [vmem:[#allocation10 + $0xa78] sm:$0xff]
    %v977 = vld [vmem:[#allocation10 + $0xa80] sm:$0xff]
    %v978 = vld [vmem:[#allocation10 + $0xa88] sm:$0xff]
    %v979 = vld [vmem:[#allocation10 + $0xa90] sm:$0xff]
    %v980 = vld [vmem:[#allocation10 + $0xa98] sm:$0xff]
    %v981 = vld [vmem:[#allocation10 + $0xaa0] sm:$0xff]
    %v982 = vld [vmem:[#allocation10 + $0xaa8] sm:$0xff]
    %v983 = vld [vmem:[#allocation10 + $0xab0] sm:$0xff]
    %v984 = vld [vmem:[#allocation10 + $0xab8] sm:$0xff]
    %v985 = vld [vmem:[#allocation10 + $0xac0] sm:$0xff]
    %v986 = vld [vmem:[#allocation10 + $0xac8] sm:$0xff]
    %v987 = vld [vmem:[#allocation10 + $0xad0] sm:$0xff]
    %v988 = vld [vmem:[#allocation10 + $0xad8] sm:$0xff]
    %v989 = vld [vmem:[#allocation10 + $0xae0] sm:$0xff]
    %v990 = vld [vmem:[#allocation10 + $0xae8] sm:$0xff]
    %v991 = vld [vmem:[#allocation10 + $0xaf0] sm:$0xff]
    %v992 = vld [vmem:[#allocation10 + $0xaf8] sm:$0xff]
    %v993 = vld [vmem:[#allocation10 + $0xb00] sm:$0xff]
    %v994 = vld [vmem:[#allocation10 + $0xb08] sm:$0xff]
    %v995 = vld [vmem:[#allocation10 + $0xb10] sm:$0xff]
    %v996 = vld [vmem:[#allocation10 + $0xb18] sm:$0xff]
    %v997 = vld [vmem:[#allocation10 + $0xb20] sm:$0xff]
    %v998 = vld [vmem:[#allocation10 + $0xb28] sm:$0xff]
    %v999 = vld [vmem:[#allocation10 + $0xb30] sm:$0xff]
    %v1000 = vld [vmem:[#allocation10 + $0xb38] sm:$0xff]
    %v1001 = vld [vmem:[#allocation10 + $0xb40] sm:$0xff]
    %v1002 = vld [vmem:[#allocation10 + $0xb48] sm:$0xff]
    %v1003 = vld [vmem:[#allocation10 + $0xb50] sm:$0xff]
    %v1004 = vld [vmem:[#allocation10 + $0xb58] sm:$0xff]
    %v1005 = vld [vmem:[#allocation10 + $0xb60] sm:$0xff]
    %v1006 = vld [vmem:[#allocation10 + $0xb68] sm:$0xff]
    %v1007 = vld [vmem:[#allocation10 + $0xb70] sm:$0xff]
    %v1008 = vld [vmem:[#allocation10 + $0xb78] sm:$0xff]
    %v1009 = vld [vmem:[#allocation10 + $0xb80] sm:$0xff]
    %v1010 = vld [vmem:[#allocation10 + $0xb88] sm:$0xff]
    %v1011 = vld [vmem:[#allocation10 + $0xb90] sm:$0xff]
    %v1012 = vld [vmem:[#allocation10 + $0xb98] sm:$0xff]
    %v1013 = vld [vmem:[#allocation10 + $0xba0] sm:$0xff]
    %v1014 = vld [vmem:[#allocation10 + $0xba8] sm:$0xff]
    %v1015 = vld [vmem:[#allocation10 + $0xbb0] sm:$0xff]
    %v1016 = vld [vmem:[#allocation10 + $0xbb8] sm:$0xff]
    %v1017 = vld [vmem:[#allocation10 + $0xbc0] sm:$0xff]
    %v1018 = vld [vmem:[#allocation10 + $0xbc8] sm:$0xff]
    %v1019 = vld [vmem:[#allocation10 + $0xbd0] sm:$0xff]
    %v1020 = vld [vmem:[#allocation10 + $0xbd8] sm:$0xff]
    %v1021 = vld [vmem:[#allocation10 + $0xbe0] sm:$0xff]
    %v1022 = vld [vmem:[#allocation10 + $0xbe8] sm:$0xff]
    %v1023 = vld [vmem:[#allocation10 + $0xbf0] sm:$0xff]
    %v1024 = vld [vmem:[#allocation10 + $0xbf8] sm:$0xff]
    %v1025 = vld [vmem:[#allocation10 + $0xc00] sm:$0xff]
    %v1026 = vld [vmem:[#allocation10 + $0xc08] sm:$0xff]
    %v1027 = vld [vmem:[#allocation10 + $0xc10] sm:$0xff]
    %v1028 = vld [vmem:[#allocation10 + $0xc18] sm:$0xff]
    %v1029 = vld [vmem:[#allocation10 + $0xc20] sm:$0xff]
    %v1030 = vld [vmem:[#allocation10 + $0xc28] sm:$0xff]
    %v1031 = vld [vmem:[#allocation10 + $0xc30] sm:$0xff]
    %v1032 = vld [vmem:[#allocation10 + $0xc38] sm:$0xff]
    %v1033 = vld [vmem:[#allocation10 + $0xc40] sm:$0xff]
    %v1034 = vld [vmem:[#allocation10 + $0xc48] sm:$0xff]
    %v1035 = vld [vmem:[#allocation10 + $0xc50] sm:$0xff]
    %v1036 = vld [vmem:[#allocation10 + $0xc58] sm:$0xff]
    %v1037 = vld [vmem:[#allocation10 + $0xc60] sm:$0xff]
    %v1038 = vld [vmem:[#allocation10 + $0xc68] sm:$0xff]
    %v1039 = vld [vmem:[#allocation10 + $0xc70] sm:$0xff]
    %v1040 = vld [vmem:[#allocation10 + $0xc78] sm:$0xff]
    %v1041 = vld [vmem:[#allocation10 + $0xc80] sm:$0xff]
    %v1042 = vld [vmem:[#allocation10 + $0xc88] sm:$0xff]
    %v1043 = vld [vmem:[#allocation10 + $0xc90] sm:$0xff]
    %v1044 = vld [vmem:[#allocation10 + $0xc98] sm:$0xff]
    %v1045 = vld [vmem:[#allocation10 + $0xca0] sm:$0xff]
    %v1046 = vld [vmem:[#allocation10 + $0xca8] sm:$0xff]
    %v1047 = vld [vmem:[#allocation10 + $0xcb0] sm:$0xff]
    %v1048 = vld [vmem:[#allocation10 + $0xcb8] sm:$0xff]
    %v1049 = vld [vmem:[#allocation10 + $0xcc0] sm:$0xff]
    %v1050 = vld [vmem:[#allocation10 + $0xcc8] sm:$0xff]
    %v1051 = vld [vmem:[#allocation10 + $0xcd0] sm:$0xff]
    %v1052 = vld [vmem:[#allocation10 + $0xcd8] sm:$0xff]
    %v1053 = vld [vmem:[#allocation10 + $0xce0] sm:$0xff]
    %v1054 = vld [vmem:[#allocation10 + $0xce8] sm:$0xff]
    %v1055 = vld [vmem:[#allocation10 + $0xcf0] sm:$0xff]
    %v1056 = vld [vmem:[#allocation10 + $0xcf8] sm:$0xff]
    %v1057 = vld [vmem:[#allocation10 + $0xd00] sm:$0xff]
    %v1058 = vld [vmem:[#allocation10 + $0xd08] sm:$0xff]
    %v1059 = vld [vmem:[#allocation10 + $0xd10] sm:$0xff]
    %v1060 = vld [vmem:[#allocation10 + $0xd18] sm:$0xff]
    %v1061 = vld [vmem:[#allocation10 + $0xd20] sm:$0xff]
    %v1062 = vld [vmem:[#allocation10 + $0xd28] sm:$0xff]
    %v1063 = vld [vmem:[#allocation10 + $0xd30] sm:$0xff]
    %v1064 = vld [vmem:[#allocation10 + $0xd38] sm:$0xff]
    %v1065 = vld [vmem:[#allocation10 + $0xd40] sm:$0xff]
    %v1066 = vld [vmem:[#allocation10 + $0xd48] sm:$0xff]
    %v1067 = vld [vmem:[#allocation10 + $0xd50] sm:$0xff]
    %v1068 = vld [vmem:[#allocation10 + $0xd58] sm:$0xff]
    %v1069 = vld [vmem:[#allocation10 + $0xd60] sm:$0xff]
    %v1070 = vld [vmem:[#allocation10 + $0xd68] sm:$0xff]
    %v1071 = vld [vmem:[#allocation10 + $0xd70] sm:$0xff]
    %v1072 = vld [vmem:[#allocation10 + $0xd78] sm:$0xff]
    %v1073 = vld [vmem:[#allocation10 + $0xd80] sm:$0xff]
    %v1074 = vld [vmem:[#allocation10 + $0xd88] sm:$0xff]
    %v1075 = vld [vmem:[#allocation10 + $0xd90] sm:$0xff]
    %v1076 = vld [vmem:[#allocation10 + $0xd98] sm:$0xff]
    %v1077 = vld [vmem:[#allocation10 + $0xda0] sm:$0xff]
    %v1078 = vld [vmem:[#allocation10 + $0xda8] sm:$0xff]
    %v1079 = vld [vmem:[#allocation10 + $0xdb0] sm:$0xff]
    %v1080 = vld [vmem:[#allocation10 + $0xdb8] sm:$0xff]
    %v1081 = vld [vmem:[#allocation10 + $0xdc0] sm:$0xff]
    %v1082 = vld [vmem:[#allocation10 + $0xdc8] sm:$0xff]
    %v1083 = vld [vmem:[#allocation10 + $0xdd0] sm:$0xff]
    %v1084 = vld [vmem:[#allocation10 + $0xdd8] sm:$0xff]
    %v1085 = vld [vmem:[#allocation10 + $0xde0] sm:$0xff]
    %v1086 = vld [vmem:[#allocation10 + $0xde8] sm:$0xff]
    %v1087 = vld [vmem:[#allocation10 + $0xdf0] sm:$0xff]
    %v1088 = vld [vmem:[#allocation10 + $0xdf8] sm:$0xff]
    %v1089 = vld [vmem:[#allocation10 + $0xe00] sm:$0xff]
    %v1090 = vld [vmem:[#allocation10 + $0xe08] sm:$0xff]
    %v1091 = vld [vmem:[#allocation10 + $0xe10] sm:$0xff]
    %v1092 = vld [vmem:[#allocation10 + $0xe18] sm:$0xff]
    %v1093 = vld [vmem:[#allocation10 + $0xe20] sm:$0xff]
    %v1094 = vld [vmem:[#allocation10 + $0xe28] sm:$0xff]
    %v1095 = vld [vmem:[#allocation10 + $0xe30] sm:$0xff]
    %v1096 = vld [vmem:[#allocation10 + $0xe38] sm:$0xff]
    %v1097 = vld [vmem:[#allocation10 + $0xe40] sm:$0xff]
    %v1098 = vld [vmem:[#allocation10 + $0xe48] sm:$0xff]
    %v1099 = vld [vmem:[#allocation10 + $0xe50] sm:$0xff]
    %v1100 = vld [vmem:[#allocation10 + $0xe58] sm:$0xff]
    %v1101 = vld [vmem:[#allocation10 + $0xe60] sm:$0xff]
    %v1102 = vld [vmem:[#allocation10 + $0xe68] sm:$0xff]
    %v1103 = vld [vmem:[#allocation10 + $0xe70] sm:$0xff]
    %v1104 = vld [vmem:[#allocation10 + $0xe78] sm:$0xff]
    %v1105 = vld [vmem:[#allocation10 + $0xe80] sm:$0xff]
    %v1106 = vld [vmem:[#allocation10 + $0xe88] sm:$0xff]
    %v1107 = vld [vmem:[#allocation10 + $0xe90] sm:$0xff]
    %v1108 = vld [vmem:[#allocation10 + $0xe98] sm:$0xff]
    %v1109 = vld [vmem:[#allocation10 + $0xea0] sm:$0xff]
    %v1110 = vld [vmem:[#allocation10 + $0xea8] sm:$0xff]
    %v1111 = vld [vmem:[#allocation10 + $0xeb0] sm:$0xff]
    %v1112 = vld [vmem:[#allocation10 + $0xeb8] sm:$0xff]
    %v1113 = vld [vmem:[#allocation10 + $0xec0] sm:$0xff]
    %v1114 = vld [vmem:[#allocation10 + $0xec8] sm:$0xff]
    %v1115 = vld [vmem:[#allocation10 + $0xed0] sm:$0xff]
    %v1116 = vld [vmem:[#allocation10 + $0xed8] sm:$0xff]
    %v1117 = vld [vmem:[#allocation10 + $0xee0] sm:$0xff]
    %v1118 = vld [vmem:[#allocation10 + $0xee8] sm:$0xff]
    %v1119 = vld [vmem:[#allocation10 + $0xef0] sm:$0xff]
    %v1120 = vld [vmem:[#allocation10 + $0xef8] sm:$0xff]
    %v1121 = vld [vmem:[#allocation10 + $0xf00] sm:$0xff]
    %v1122 = vld [vmem:[#allocation10 + $0xf08] sm:$0xff]
    %v1123 = vld [vmem:[#allocation10 + $0xf10] sm:$0xff]
    %v1124 = vld [vmem:[#allocation10 + $0xf18] sm:$0xff]
    %v1125 = vld [vmem:[#allocation10 + $0xf20] sm:$0xff]
    %v1126 = vld [vmem:[#allocation10 + $0xf28] sm:$0xff]
    %v1127 = vld [vmem:[#allocation10 + $0xf30] sm:$0xff]
    %v1128 = vld [vmem:[#allocation10 + $0xf38] sm:$0xff]
    %v1129 = vld [vmem:[#allocation10 + $0xf40] sm:$0xff]
    %v1130 = vld [vmem:[#allocation10 + $0xf48] sm:$0xff]
    %v1131 = vld [vmem:[#allocation10 + $0xf50] sm:$0xff]
    %v1132 = vld [vmem:[#allocation10 + $0xf58] sm:$0xff]
    %v1133 = vld [vmem:[#allocation10 + $0xf60] sm:$0xff]
    %v1134 = vld [vmem:[#allocation10 + $0xf68] sm:$0xff]
    %v1135 = vld [vmem:[#allocation10 + $0xf70] sm:$0xff]
    %v1136 = vld [vmem:[#allocation10 + $0xf78] sm:$0xff]
    %v1137 = vld [vmem:[#allocation10 + $0xf80] sm:$0xff]
    %v1138 = vld [vmem:[#allocation10 + $0xf88] sm:$0xff]
    %v1139 = vld [vmem:[#allocation10 + $0xf90] sm:$0xff]
    %v1140 = vld [vmem:[#allocation10 + $0xf98] sm:$0xff]
    %v1141 = vld [vmem:[#allocation10 + $0xfa0] sm:$0xff]
    %v1142 = vld [vmem:[#allocation10 + $0xfa8] sm:$0xff]
    %v1143 = vld [vmem:[#allocation10 + $0xfb0] sm:$0xff]
    %v1144 = vld [vmem:[#allocation10 + $0xfb8] sm:$0xff]
    %v1145 = vld [vmem:[#allocation10 + $0xfc0] sm:$0xff]
    %v1146 = vld [vmem:[#allocation10 + $0xfc8] sm:$0xff]
    %v1147 = vld [vmem:[#allocation10 + $0xfd0] sm:$0xff]
    %v1148 = vld [vmem:[#allocation10 + $0xfd8] sm:$0xff]
    %v1149 = vld [vmem:[#allocation10 + $0xfe0] sm:$0xff]
    %v1150 = vld [vmem:[#allocation10 + $0xfe8] sm:$0xff]
    %v1151 = vld [vmem:[#allocation10 + $0xff0] sm:$0xff]
    %v1152 = vld [vmem:[#allocation10 + $0xff8] sm:$0xff]
    %v1153 = vld [vmem:[#allocation10 + $0x1000] sm:$0xff]
    %v1154 = vld [vmem:[#allocation10 + $0x1008] sm:$0xff]
    %v1155 = vld [vmem:[#allocation10 + $0x1010] sm:$0xff]
    %v1156 = vld [vmem:[#allocation10 + $0x1018] sm:$0xff]
    %v1157 = vld [vmem:[#allocation10 + $0x1020] sm:$0xff]
    %v1158 = vld [vmem:[#allocation10 + $0x1028] sm:$0xff]
    %v1159 = vld [vmem:[#allocation10 + $0x1030] sm:$0xff]
    %v1160 = vld [vmem:[#allocation10 + $0x1038] sm:$0xff]
    %v1161 = vld [vmem:[#allocation10 + $0x1040] sm:$0xff]
    %v1162 = vld [vmem:[#allocation10 + $0x1048] sm:$0xff]
    %v1163 = vld [vmem:[#allocation10 + $0x1050] sm:$0xff]
    %v1164 = vld [vmem:[#allocation10 + $0x1058] sm:$0xff]
    %v1165 = vld [vmem:[#allocation10 + $0x1060] sm:$0xff]
    %v1166 = vld [vmem:[#allocation10 + $0x1068] sm:$0xff]
    %v1167 = vld [vmem:[#allocation10 + $0x1070] sm:$0xff]
    %v1168 = vld [vmem:[#allocation10 + $0x1078] sm:$0xff]
    %v1169 = vld [vmem:[#allocation10 + $0x1080] sm:$0xff]
    %v1170 = vld [vmem:[#allocation10 + $0x1088] sm:$0xff]
    %v1171 = vld [vmem:[#allocation10 + $0x1090] sm:$0xff]
    %v1172 = vld [vmem:[#allocation10 + $0x1098] sm:$0xff]
    %v1173 = vld [vmem:[#allocation10 + $0x10a0] sm:$0xff]
    %v1174 = vld [vmem:[#allocation10 + $0x10a8] sm:$0xff]
    %v1175 = vld [vmem:[#allocation10 + $0x10b0] sm:$0xff]
    %v1176 = vld [vmem:[#allocation10 + $0x10b8] sm:$0xff]
    %v1177 = vld [vmem:[#allocation10 + $0x10c0] sm:$0xff]
    %v1178 = vld [vmem:[#allocation10 + $0x10c8] sm:$0xff]
    %v1179 = vld [vmem:[#allocation10 + $0x10d0] sm:$0xff]
    %v1180 = vld [vmem:[#allocation10 + $0x10d8] sm:$0xff]
    %v1451 = vunpack.c.l.b16 %v911
    %v1452 = vunpack.c.h.b16 %v911
    %v1453 = vunpack.c.l.b16 %v912
    %v1454 = vunpack.c.h.b16 %v912
    %v1455 = vunpack.c.l.b16 %v913
    %v1456 = vunpack.c.h.b16 %v913
    %v1457 = vunpack.c.l.b16 %v914
    %v1458 = vunpack.c.h.b16 %v914
    %v1459 = vunpack.c.l.b16 %v915
    %v1460 = vunpack.c.h.b16 %v915
    %v1461 = vunpack.c.l.b16 %v916
    %v1462 = vunpack.c.h.b16 %v916
    %v1463 = vunpack.c.l.b16 %v917
    %v1464 = vunpack.c.h.b16 %v917
    %v1465 = vunpack.c.l.b16 %v918
    %v1466 = vunpack.c.h.b16 %v918
    %v1467 = vunpack.c.l.b16 %v919
    %v1468 = vunpack.c.h.b16 %v919
    %v1469 = vunpack.c.l.b16 %v920
    %v1470 = vunpack.c.h.b16 %v920
    %v1471 = vunpack.c.l.b16 %v921
    %v1472 = vunpack.c.h.b16 %v921
    %v1473 = vunpack.c.l.b16 %v922
    %v1474 = vunpack.c.h.b16 %v922
    %v1475 = vunpack.c.l.b16 %v923
    %v1476 = vunpack.c.h.b16 %v923
    %v1477 = vunpack.c.l.b16 %v924
    %v1478 = vunpack.c.h.b16 %v924
    %v1479 = vunpack.c.l.b16 %v925
    %v1480 = vunpack.c.h.b16 %v925
    %v1481 = vunpack.c.l.b16 %v926
    %v1482 = vunpack.c.h.b16 %v926
    %v1483 = vunpack.c.l.b16 %v927
    %v1484 = vunpack.c.h.b16 %v927
    %v1485 = vunpack.c.l.b16 %v928
    %v1486 = vunpack.c.h.b16 %v928
    %v1487 = vunpack.c.l.b16 %v929
    %v1488 = vunpack.c.h.b16 %v929
    %v1489 = vunpack.c.l.b16 %v930
    %v1490 = vunpack.c.h.b16 %v930
    %v1491 = vunpack.c.l.b16 %v931
    %v1492 = vunpack.c.h.b16 %v931
    %v1493 = vunpack.c.l.b16 %v932
    %v1494 = vunpack.c.h.b16 %v932
    %v1495 = vunpack.c.l.b16 %v933
    %v1496 = vunpack.c.h.b16 %v933
    %v1497 = vunpack.c.l.b16 %v934
    %v1498 = vunpack.c.h.b16 %v934
    %v1499 = vunpack.c.l.b16 %v935
    %v1500 = vunpack.c.h.b16 %v935
    %v1501 = vunpack.c.l.b16 %v936
    %v1502 = vunpack.c.h.b16 %v936
    %v1503 = vunpack.c.l.b16 %v937
    %v1504 = vunpack.c.h.b16 %v937
    %v1505 = vunpack.c.l.b16 %v938
    %v1506 = vunpack.c.h.b16 %v938
    %v1507 = vunpack.c.l.b16 %v939
    %v1508 = vunpack.c.h.b16 %v939
    %v1509 = vunpack.c.l.b16 %v940
    %v1510 = vunpack.c.h.b16 %v940
    %v1511 = vunpack.c.l.b16 %v941
    %v1512 = vunpack.c.h.b16 %v941
    %v1513 = vunpack.c.l.b16 %v942
    %v1514 = vunpack.c.h.b16 %v942
    %v1515 = vunpack.c.l.b16 %v943
    %v1516 = vunpack.c.h.b16 %v943
    %v1517 = vunpack.c.l.b16 %v944
    %v1518 = vunpack.c.h.b16 %v944
    %v1519 = vunpack.c.l.b16 %v945
    %v1520 = vunpack.c.h.b16 %v945
    %v1521 = vunpack.c.l.b16 %v946
    %v1522 = vunpack.c.h.b16 %v946
    %v1523 = vunpack.c.l.b16 %v947
    %v1524 = vunpack.c.h.b16 %v947
    %v1525 = vunpack.c.l.b16 %v948
    %v1526 = vunpack.c.h.b16 %v948
    %v1527 = vunpack.c.l.b16 %v949
    %v1528 = vunpack.c.h.b16 %v949
    %v1529 = vunpack.c.l.b16 %v950
    %v1530 = vunpack.c.h.b16 %v950
    %v1531 = vunpack.c.l.b16 %v951
    %v1532 = vunpack.c.h.b16 %v951
    %v1533 = vunpack.c.l.b16 %v952
    %v1534 = vunpack.c.h.b16 %v952
    %v1535 = vunpack.c.l.b16 %v953
    %v1536 = vunpack.c.h.b16 %v953
    %v1537 = vunpack.c.l.b16 %v954
    %v1538 = vunpack.c.h.b16 %v954
    %v1539 = vunpack.c.l.b16 %v955
    %v1540 = vunpack.c.h.b16 %v955
    %v1541 = vunpack.c.l.b16 %v956
    %v1542 = vunpack.c.h.b16 %v956
    %v1543 = vunpack.c.l.b16 %v957
    %v1544 = vunpack.c.h.b16 %v957
    %v1545 = vunpack.c.l.b16 %v958
    %v1546 = vunpack.c.h.b16 %v958
    %v1547 = vunpack.c.l.b16 %v959
    %v1548 = vunpack.c.h.b16 %v959
    %v1549 = vunpack.c.l.b16 %v960
    %v1550 = vunpack.c.h.b16 %v960
    %v1551 = vunpack.c.l.b16 %v961
    %v1552 = vunpack.c.h.b16 %v961
    %v1553 = vunpack.c.l.b16 %v962
    %v1554 = vunpack.c.h.b16 %v962
    %v1555 = vunpack.c.l.b16 %v963
    %v1556 = vunpack.c.h.b16 %v963
    %v1557 = vunpack.c.l.b16 %v964
    %v1558 = vunpack.c.h.b16 %v964
    %v1559 = vunpack.c.l.b16 %v965
    %v1560 = vunpack.c.h.b16 %v965
    %v1561 = vunpack.c.l.b16 %v966
    %v1562 = vunpack.c.h.b16 %v966
    %v1563 = vunpack.c.l.b16 %v967
    %v1564 = vunpack.c.h.b16 %v967
    %v1565 = vunpack.c.l.b16 %v968
    %v1566 = vunpack.c.h.b16 %v968
    %v1567 = vunpack.c.l.b16 %v969
    %v1568 = vunpack.c.h.b16 %v969
    %v1569 = vunpack.c.l.b16 %v970
    %v1570 = vunpack.c.h.b16 %v970
    %v1571 = vunpack.c.l.b16 %v971
    %v1572 = vunpack.c.h.b16 %v971
    %v1573 = vunpack.c.l.b16 %v972
    %v1574 = vunpack.c.h.b16 %v972
    %v1575 = vunpack.c.l.b16 %v973
    %v1576 = vunpack.c.h.b16 %v973
    %v1577 = vunpack.c.l.b16 %v974
    %v1578 = vunpack.c.h.b16 %v974
    %v1579 = vunpack.c.l.b16 %v975
    %v1580 = vunpack.c.h.b16 %v975
    %v1581 = vunpack.c.l.b16 %v976
    %v1582 = vunpack.c.h.b16 %v976
    %v1583 = vunpack.c.l.b16 %v977
    %v1584 = vunpack.c.h.b16 %v977
    %v1585 = vunpack.c.l.b16 %v978
    %v1586 = vunpack.c.h.b16 %v978
    %v1587 = vunpack.c.l.b16 %v979
    %v1588 = vunpack.c.h.b16 %v979
    %v1589 = vunpack.c.l.b16 %v980
    %v1590 = vunpack.c.h.b16 %v980
    %v1591 = vunpack.c.l.b16 %v981
    %v1592 = vunpack.c.h.b16 %v981
    %v1593 = vunpack.c.l.b16 %v982
    %v1594 = vunpack.c.h.b16 %v982
    %v1595 = vunpack.c.l.b16 %v983
    %v1596 = vunpack.c.h.b16 %v983
    %v1597 = vunpack.c.l.b16 %v984
    %v1598 = vunpack.c.h.b16 %v984
    %v1599 = vunpack.c.l.b16 %v985
    %v1600 = vunpack.c.h.b16 %v985
    %v1601 = vunpack.c.l.b16 %v986
    %v1602 = vunpack.c.h.b16 %v986
    %v1603 = vunpack.c.l.b16 %v987
    %v1604 = vunpack.c.h.b16 %v987
    %v1605 = vunpack.c.l.b16 %v988
    %v1606 = vunpack.c.h.b16 %v988
    %v1607 = vunpack.c.l.b16 %v989
    %v1608 = vunpack.c.h.b16 %v989
    %v1609 = vunpack.c.l.b16 %v990
    %v1610 = vunpack.c.h.b16 %v990
    %v1611 = vunpack.c.l.b16 %v991
    %v1612 = vunpack.c.h.b16 %v991
    %v1613 = vunpack.c.l.b16 %v992
    %v1614 = vunpack.c.h.b16 %v992
    %v1615 = vunpack.c.l.b16 %v993
    %v1616 = vunpack.c.h.b16 %v993
    %v1617 = vunpack.c.l.b16 %v994
    %v1618 = vunpack.c.h.b16 %v994
    %v1619 = vunpack.c.l.b16 %v995
    %v1620 = vunpack.c.h.b16 %v995
    %v1621 = vunpack.c.l.b16 %v996
    %v1622 = vunpack.c.h.b16 %v996
    %v1623 = vunpack.c.l.b16 %v997
    %v1624 = vunpack.c.h.b16 %v997
    %v1625 = vunpack.c.l.b16 %v998
    %v1626 = vunpack.c.h.b16 %v998
    %v1627 = vunpack.c.l.b16 %v999
    %v1628 = vunpack.c.h.b16 %v999
    %v1629 = vunpack.c.l.b16 %v1000
    %v1630 = vunpack.c.h.b16 %v1000
    %v1631 = vunpack.c.l.b16 %v1001
    %v1632 = vunpack.c.h.b16 %v1001
    %v1633 = vunpack.c.l.b16 %v1002
    %v1634 = vunpack.c.h.b16 %v1002
    %v1635 = vunpack.c.l.b16 %v1003
    %v1636 = vunpack.c.h.b16 %v1003
    %v1637 = vunpack.c.l.b16 %v1004
    %v1638 = vunpack.c.h.b16 %v1004
    %v1639 = vunpack.c.l.b16 %v1005
    %v1640 = vunpack.c.h.b16 %v1005
    %v1641 = vunpack.c.l.b16 %v1006
    %v1642 = vunpack.c.h.b16 %v1006
    %v1643 = vunpack.c.l.b16 %v1007
    %v1644 = vunpack.c.h.b16 %v1007
    %v1645 = vunpack.c.l.b16 %v1008
    %v1646 = vunpack.c.h.b16 %v1008
    %v1647 = vunpack.c.l.b16 %v1009
    %v1648 = vunpack.c.h.b16 %v1009
    %v1649 = vunpack.c.l.b16 %v1010
    %v1650 = vunpack.c.h.b16 %v1010
    %v1651 = vunpack.c.l.b16 %v1011
    %v1652 = vunpack.c.h.b16 %v1011
    %v1653 = vunpack.c.l.b16 %v1012
    %v1654 = vunpack.c.h.b16 %v1012
    %v1655 = vunpack.c.l.b16 %v1013
    %v1656 = vunpack.c.h.b16 %v1013
    %v1657 = vunpack.c.l.b16 %v1014
    %v1658 = vunpack.c.h.b16 %v1014
    %v1659 = vunpack.c.l.b16 %v1015
    %v1660 = vunpack.c.h.b16 %v1015
    %v1661 = vunpack.c.l.b16 %v1016
    %v1662 = vunpack.c.h.b16 %v1016
    %v1663 = vunpack.c.l.b16 %v1017
    %v1664 = vunpack.c.h.b16 %v1017
    %v1665 = vunpack.c.l.b16 %v1018
    %v1666 = vunpack.c.h.b16 %v1018
    %v1667 = vunpack.c.l.b16 %v1019
    %v1668 = vunpack.c.h.b16 %v1019
    %v1669 = vunpack.c.l.b16 %v1020
    %v1670 = vunpack.c.h.b16 %v1020
    %v1671 = vunpack.c.l.b16 %v1021
    %v1672 = vunpack.c.h.b16 %v1021
    %v1673 = vunpack.c.l.b16 %v1022
    %v1674 = vunpack.c.h.b16 %v1022
    %v1675 = vunpack.c.l.b16 %v1023
    %v1676 = vunpack.c.h.b16 %v1023
    %v1677 = vunpack.c.l.b16 %v1024
    %v1678 = vunpack.c.h.b16 %v1024
    %v1679 = vunpack.c.l.b16 %v1025
    %v1680 = vunpack.c.h.b16 %v1025
    %v1681 = vunpack.c.l.b16 %v1026
    %v1682 = vunpack.c.h.b16 %v1026
    %v1683 = vunpack.c.l.b16 %v1027
    %v1684 = vunpack.c.h.b16 %v1027
    %v1685 = vunpack.c.l.b16 %v1028
    %v1686 = vunpack.c.h.b16 %v1028
    %v1687 = vunpack.c.l.b16 %v1029
    %v1688 = vunpack.c.h.b16 %v1029
    %v1689 = vunpack.c.l.b16 %v1030
    %v1690 = vunpack.c.h.b16 %v1030
    %v1691 = vunpack.c.l.b16 %v1031
    %v1692 = vunpack.c.h.b16 %v1031
    %v1693 = vunpack.c.l.b16 %v1032
    %v1694 = vunpack.c.h.b16 %v1032
    %v1695 = vunpack.c.l.b16 %v1033
    %v1696 = vunpack.c.h.b16 %v1033
    %v1697 = vunpack.c.l.b16 %v1034
    %v1698 = vunpack.c.h.b16 %v1034
    %v1699 = vunpack.c.l.b16 %v1035
    %v1700 = vunpack.c.h.b16 %v1035
    %v1701 = vunpack.c.l.b16 %v1036
    %v1702 = vunpack.c.h.b16 %v1036
    %v1703 = vunpack.c.l.b16 %v1037
    %v1704 = vunpack.c.h.b16 %v1037
    %v1705 = vunpack.c.l.b16 %v1038
    %v1706 = vunpack.c.h.b16 %v1038
    %v1707 = vunpack.c.l.b16 %v1039
    %v1708 = vunpack.c.h.b16 %v1039
    %v1709 = vunpack.c.l.b16 %v1040
    %v1710 = vunpack.c.h.b16 %v1040
    %v1711 = vunpack.c.l.b16 %v1041
    %v1712 = vunpack.c.h.b16 %v1041
    %v1713 = vunpack.c.l.b16 %v1042
    %v1714 = vunpack.c.h.b16 %v1042
    %v1715 = vunpack.c.l.b16 %v1043
    %v1716 = vunpack.c.h.b16 %v1043
    %v1717 = vunpack.c.l.b16 %v1044
    %v1718 = vunpack.c.h.b16 %v1044
    %v1719 = vunpack.c.l.b16 %v1045
    %v1720 = vunpack.c.h.b16 %v1045
    %v1721 = vunpack.c.l.b16 %v1046
    %v1722 = vunpack.c.h.b16 %v1046
    %v1723 = vunpack.c.l.b16 %v1047
    %v1724 = vunpack.c.h.b16 %v1047
    %v1725 = vunpack.c.l.b16 %v1048
    %v1726 = vunpack.c.h.b16 %v1048
    %v1727 = vunpack.c.l.b16 %v1049
    %v1728 = vunpack.c.h.b16 %v1049
    %v1729 = vunpack.c.l.b16 %v1050
    %v1730 = vunpack.c.h.b16 %v1050
    %v1731 = vunpack.c.l.b16 %v1051
    %v1732 = vunpack.c.h.b16 %v1051
    %v1733 = vunpack.c.l.b16 %v1052
    %v1734 = vunpack.c.h.b16 %v1052
    %v1735 = vunpack.c.l.b16 %v1053
    %v1736 = vunpack.c.h.b16 %v1053
    %v1737 = vunpack.c.l.b16 %v1054
    %v1738 = vunpack.c.h.b16 %v1054
    %v1739 = vunpack.c.l.b16 %v1055
    %v1740 = vunpack.c.h.b16 %v1055
    %v1741 = vunpack.c.l.b16 %v1056
    %v1742 = vunpack.c.h.b16 %v1056
    %v1743 = vunpack.c.l.b16 %v1057
    %v1744 = vunpack.c.h.b16 %v1057
    %v1745 = vunpack.c.l.b16 %v1058
    %v1746 = vunpack.c.h.b16 %v1058
    %v1747 = vunpack.c.l.b16 %v1059
    %v1748 = vunpack.c.h.b16 %v1059
    %v1749 = vunpack.c.l.b16 %v1060
    %v1750 = vunpack.c.h.b16 %v1060
    %v1751 = vunpack.c.l.b16 %v1061
    %v1752 = vunpack.c.h.b16 %v1061
    %v1753 = vunpack.c.l.b16 %v1062
    %v1754 = vunpack.c.h.b16 %v1062
    %v1755 = vunpack.c.l.b16 %v1063
    %v1756 = vunpack.c.h.b16 %v1063
    %v1757 = vunpack.c.l.b16 %v1064
    %v1758 = vunpack.c.h.b16 %v1064
    %v1759 = vunpack.c.l.b16 %v1065
    %v1760 = vunpack.c.h.b16 %v1065
    %v1761 = vunpack.c.l.b16 %v1066
    %v1762 = vunpack.c.h.b16 %v1066
    %v1763 = vunpack.c.l.b16 %v1067
    %v1764 = vunpack.c.h.b16 %v1067
    %v1765 = vunpack.c.l.b16 %v1068
    %v1766 = vunpack.c.h.b16 %v1068
    %v1767 = vunpack.c.l.b16 %v1069
    %v1768 = vunpack.c.h.b16 %v1069
    %v1769 = vunpack.c.l.b16 %v1070
    %v1770 = vunpack.c.h.b16 %v1070
    %v1771 = vunpack.c.l.b16 %v1071
    %v1772 = vunpack.c.h.b16 %v1071
    %v1773 = vunpack.c.l.b16 %v1072
    %v1774 = vunpack.c.h.b16 %v1072
    %v1775 = vunpack.c.l.b16 %v1073
    %v1776 = vunpack.c.h.b16 %v1073
    %v1777 = vunpack.c.l.b16 %v1074
    %v1778 = vunpack.c.h.b16 %v1074
    %v1779 = vunpack.c.l.b16 %v1075
    %v1780 = vunpack.c.h.b16 %v1075
    %v1781 = vunpack.c.l.b16 %v1076
    %v1782 = vunpack.c.h.b16 %v1076
    %v1783 = vunpack.c.l.b16 %v1077
    %v1784 = vunpack.c.h.b16 %v1077
    %v1785 = vunpack.c.l.b16 %v1078
    %v1786 = vunpack.c.h.b16 %v1078
    %v1787 = vunpack.c.l.b16 %v1079
    %v1788 = vunpack.c.h.b16 %v1079
    %v1789 = vunpack.c.l.b16 %v1080
    %v1790 = vunpack.c.h.b16 %v1080
    %v1791 = vunpack.c.l.b16 %v1081
    %v1792 = vunpack.c.h.b16 %v1081
    %v1793 = vunpack.c.l.b16 %v1082
    %v1794 = vunpack.c.h.b16 %v1082
    %v1795 = vunpack.c.l.b16 %v1083
    %v1796 = vunpack.c.h.b16 %v1083
    %v1797 = vunpack.c.l.b16 %v1084
    %v1798 = vunpack.c.h.b16 %v1084
    %v1799 = vunpack.c.l.b16 %v1085
    %v1800 = vunpack.c.h.b16 %v1085
    %v1801 = vunpack.c.l.b16 %v1086
    %v1802 = vunpack.c.h.b16 %v1086
    %v1803 = vunpack.c.l.b16 %v1087
    %v1804 = vunpack.c.h.b16 %v1087
    %v1805 = vunpack.c.l.b16 %v1088
    %v1806 = vunpack.c.h.b16 %v1088
    %v1807 = vunpack.c.l.b16 %v1089
    %v1808 = vunpack.c.h.b16 %v1089
    %v1809 = vunpack.c.l.b16 %v1090
    %v1810 = vunpack.c.h.b16 %v1090
    %v1811 = vunpack.c.l.b16 %v1091
    %v1812 = vunpack.c.h.b16 %v1091
    %v1813 = vunpack.c.l.b16 %v1092
    %v1814 = vunpack.c.h.b16 %v1092
    %v1815 = vunpack.c.l.b16 %v1093
    %v1816 = vunpack.c.h.b16 %v1093
    %v1817 = vunpack.c.l.b16 %v1094
    %v1818 = vunpack.c.h.b16 %v1094
    %v1819 = vunpack.c.l.b16 %v1095
    %v1820 = vunpack.c.h.b16 %v1095
    %v1821 = vunpack.c.l.b16 %v1096
    %v1822 = vunpack.c.h.b16 %v1096
    %v1823 = vunpack.c.l.b16 %v1097
    %v1824 = vunpack.c.h.b16 %v1097
    %v1825 = vunpack.c.l.b16 %v1098
    %v1826 = vunpack.c.h.b16 %v1098
    %v1827 = vunpack.c.l.b16 %v1099
    %v1828 = vunpack.c.h.b16 %v1099
    %v1829 = vunpack.c.l.b16 %v1100
    %v1830 = vunpack.c.h.b16 %v1100
    %v1831 = vunpack.c.l.b16 %v1101
    %v1832 = vunpack.c.h.b16 %v1101
    %v1833 = vunpack.c.l.b16 %v1102
    %v1834 = vunpack.c.h.b16 %v1102
    %v1835 = vunpack.c.l.b16 %v1103
    %v1836 = vunpack.c.h.b16 %v1103
    %v1837 = vunpack.c.l.b16 %v1104
    %v1838 = vunpack.c.h.b16 %v1104
    %v1839 = vunpack.c.l.b16 %v1105
    %v1840 = vunpack.c.h.b16 %v1105
    %v1841 = vunpack.c.l.b16 %v1106
    %v1842 = vunpack.c.h.b16 %v1106
    %v1843 = vunpack.c.l.b16 %v1107
    %v1844 = vunpack.c.h.b16 %v1107
    %v1845 = vunpack.c.l.b16 %v1108
    %v1846 = vunpack.c.h.b16 %v1108
    %v1847 = vunpack.c.l.b16 %v1109
    %v1848 = vunpack.c.h.b16 %v1109
    %v1849 = vunpack.c.l.b16 %v1110
    %v1850 = vunpack.c.h.b16 %v1110
    %v1851 = vunpack.c.l.b16 %v1111
    %v1852 = vunpack.c.h.b16 %v1111
    %v1853 = vunpack.c.l.b16 %v1112
    %v1854 = vunpack.c.h.b16 %v1112
    %v1855 = vunpack.c.l.b16 %v1113
    %v1856 = vunpack.c.h.b16 %v1113
    %v1857 = vunpack.c.l.b16 %v1114
    %v1858 = vunpack.c.h.b16 %v1114
    %v1859 = vunpack.c.l.b16 %v1115
    %v1860 = vunpack.c.h.b16 %v1115
    %v1861 = vunpack.c.l.b16 %v1116
    %v1862 = vunpack.c.h.b16 %v1116
    %v1863 = vunpack.c.l.b16 %v1117
    %v1864 = vunpack.c.h.b16 %v1117
    %v1865 = vunpack.c.l.b16 %v1118
    %v1866 = vunpack.c.h.b16 %v1118
    %v1867 = vunpack.c.l.b16 %v1119
    %v1868 = vunpack.c.h.b16 %v1119
    %v1869 = vunpack.c.l.b16 %v1120
    %v1870 = vunpack.c.h.b16 %v1120
    %v1871 = vunpack.c.l.b16 %v1121
    %v1872 = vunpack.c.h.b16 %v1121
    %v1873 = vunpack.c.l.b16 %v1122
    %v1874 = vunpack.c.h.b16 %v1122
    %v1875 = vunpack.c.l.b16 %v1123
    %v1876 = vunpack.c.h.b16 %v1123
    %v1877 = vunpack.c.l.b16 %v1124
    %v1878 = vunpack.c.h.b16 %v1124
    %v1879 = vunpack.c.l.b16 %v1125
    %v1880 = vunpack.c.h.b16 %v1125
    %v1881 = vunpack.c.l.b16 %v1126
    %v1882 = vunpack.c.h.b16 %v1126
    %v1883 = vunpack.c.l.b16 %v1127
    %v1884 = vunpack.c.h.b16 %v1127
    %v1885 = vunpack.c.l.b16 %v1128
    %v1886 = vunpack.c.h.b16 %v1128
    %v1887 = vunpack.c.l.b16 %v1129
    %v1888 = vunpack.c.h.b16 %v1129
    %v1889 = vunpack.c.l.b16 %v1130
    %v1890 = vunpack.c.h.b16 %v1130
    %v1891 = vunpack.c.l.b16 %v1131
    %v1892 = vunpack.c.h.b16 %v1131
    %v1893 = vunpack.c.l.b16 %v1132
    %v1894 = vunpack.c.h.b16 %v1132
    %v1895 = vunpack.c.l.b16 %v1133
    %v1896 = vunpack.c.h.b16 %v1133
    %v1897 = vunpack.c.l.b16 %v1134
    %v1898 = vunpack.c.h.b16 %v1134
    %v1899 = vunpack.c.l.b16 %v1135
    %v1900 = vunpack.c.h.b16 %v1135
    %v1901 = vunpack.c.l.b16 %v1136
    %v1902 = vunpack.c.h.b16 %v1136
    %v1903 = vunpack.c.l.b16 %v1137
    %v1904 = vunpack.c.h.b16 %v1137
    %v1905 = vunpack.c.l.b16 %v1138
    %v1906 = vunpack.c.h.b16 %v1138
    %v1907 = vunpack.c.l.b16 %v1139
    %v1908 = vunpack.c.h.b16 %v1139
    %v1909 = vunpack.c.l.b16 %v1140
    %v1910 = vunpack.c.h.b16 %v1140
    %v1911 = vunpack.c.l.b16 %v1141
    %v1912 = vunpack.c.h.b16 %v1141
    %v1913 = vunpack.c.l.b16 %v1142
    %v1914 = vunpack.c.h.b16 %v1142
    %v1915 = vunpack.c.l.b16 %v1143
    %v1916 = vunpack.c.h.b16 %v1143
    %v1917 = vunpack.c.l.b16 %v1144
    %v1918 = vunpack.c.h.b16 %v1144
    %v1919 = vunpack.c.l.b16 %v1145
    %v1920 = vunpack.c.h.b16 %v1145
    %v1921 = vunpack.c.l.b16 %v1146
    %v1922 = vunpack.c.h.b16 %v1146
    %v1923 = vunpack.c.l.b16 %v1147
    %v1924 = vunpack.c.h.b16 %v1147
    %v1925 = vunpack.c.l.b16 %v1148
    %v1926 = vunpack.c.h.b16 %v1148
    %v1927 = vunpack.c.l.b16 %v1149
    %v1928 = vunpack.c.h.b16 %v1149
    %v1929 = vunpack.c.l.b16 %v1150
    %v1930 = vunpack.c.h.b16 %v1150
    %v1931 = vunpack.c.l.b16 %v1151
    %v1932 = vunpack.c.h.b16 %v1151
    %v1933 = vunpack.c.l.b16 %v1152
    %v1934 = vunpack.c.h.b16 %v1152
    %v1935 = vunpack.c.l.b16 %v1153
    %v1936 = vunpack.c.h.b16 %v1153
    %v1937 = vunpack.c.l.b16 %v1154
    %v1938 = vunpack.c.h.b16 %v1154
    %v1939 = vunpack.c.l.b16 %v1155
    %v1940 = vunpack.c.h.b16 %v1155
    %v1941 = vunpack.c.l.b16 %v1156
    %v1942 = vunpack.c.h.b16 %v1156
    %v1943 = vunpack.c.l.b16 %v1157
    %v1944 = vunpack.c.h.b16 %v1157
    %v1945 = vunpack.c.l.b16 %v1158
    %v1946 = vunpack.c.h.b16 %v1158
    %v1947 = vunpack.c.l.b16 %v1159
    %v1948 = vunpack.c.h.b16 %v1159
    %v1949 = vunpack.c.l.b16 %v1160
    %v1950 = vunpack.c.h.b16 %v1160
    %v1951 = vunpack.c.l.b16 %v1161
    %v1952 = vunpack.c.h.b16 %v1161
    %v1953 = vunpack.c.l.b16 %v1162
    %v1954 = vunpack.c.h.b16 %v1162
    %v1955 = vunpack.c.l.b16 %v1163
    %v1956 = vunpack.c.h.b16 %v1163
    %v1957 = vunpack.c.l.b16 %v1164
    %v1958 = vunpack.c.h.b16 %v1164
    %v1959 = vunpack.c.l.b16 %v1165
    %v1960 = vunpack.c.h.b16 %v1165
    %v1961 = vunpack.c.l.b16 %v1166
    %v1962 = vunpack.c.h.b16 %v1166
    %v1963 = vunpack.c.l.b16 %v1167
    %v1964 = vunpack.c.h.b16 %v1167
    %v1965 = vunpack.c.l.b16 %v1168
    %v1966 = vunpack.c.h.b16 %v1168
    %v1967 = vunpack.c.l.b16 %v1169
    %v1968 = vunpack.c.h.b16 %v1169
    %v1969 = vunpack.c.l.b16 %v1170
    %v1970 = vunpack.c.h.b16 %v1170
    %v1971 = vunpack.c.l.b16 %v1171
    %v1972 = vunpack.c.h.b16 %v1171
    %v1973 = vunpack.c.l.b16 %v1172
    %v1974 = vunpack.c.h.b16 %v1172
    %v1975 = vunpack.c.l.b16 %v1173
    %v1976 = vunpack.c.h.b16 %v1173
    %v1977 = vunpack.c.l.b16 %v1174
    %v1978 = vunpack.c.h.b16 %v1174
    %v1979 = vunpack.c.l.b16 %v1175
    %v1980 = vunpack.c.h.b16 %v1175
    %v1981 = vunpack.c.l.b16 %v1176
    %v1982 = vunpack.c.h.b16 %v1176
    %v1983 = vunpack.c.l.b16 %v1177
    %v1984 = vunpack.c.h.b16 %v1177
    %v1985 = vunpack.c.l.b16 %v1178
    %v1986 = vunpack.c.h.b16 %v1178
    %v1987 = vunpack.c.l.b16 %v1179
    %v1988 = vunpack.c.h.b16 %v1179
    %v1989 = vunpack.c.l.b16 %v1180
    %v1990 = vunpack.c.h.b16 %v1180
    %v1991 = vpack.c.b16 %v1469, %v1451
    %v1992 = vpack.c.b16 %v1470, %v1452
    %v1993 = vpack.c.b16 %v1471, %v1453
    %v1994 = vpack.c.b16 %v1472, %v1454
    %v1995 = vpack.c.b16 %v1473, %v1455
    %v1996 = vpack.c.b16 %v1474, %v1456
    %v1997 = vpack.c.b16 %v1475, %v1457
    %v1998 = vpack.c.b16 %v1476, %v1458
    %v1999 = vpack.c.b16 %v1477, %v1459
    %v2000 = vpack.c.b16 %v1478, %v1460
    %v2001 = vpack.c.b16 %v1479, %v1461
    %v2002 = vpack.c.b16 %v1480, %v1462
    %v2003 = vpack.c.b16 %v1481, %v1463
    %v2004 = vpack.c.b16 %v1482, %v1464
    %v2005 = vpack.c.b16 %v1483, %v1465
    %v2006 = vpack.c.b16 %v1484, %v1466
    %v2007 = vpack.c.b16 %v1485, %v1467
    %v2008 = vpack.c.b16 %v1486, %v1468
    %v2009 = vpack.c.b16 %v1505, %v1487
    %v2010 = vpack.c.b16 %v1506, %v1488
    %v2011 = vpack.c.b16 %v1507, %v1489
    %v2012 = vpack.c.b16 %v1508, %v1490
    %v2013 = vpack.c.b16 %v1509, %v1491
    %v2014 = vpack.c.b16 %v1510, %v1492
    %v2015 = vpack.c.b16 %v1511, %v1493
    %v2016 = vpack.c.b16 %v1512, %v1494
    %v2017 = vpack.c.b16 %v1513, %v1495
    %v2018 = vpack.c.b16 %v1514, %v1496
    %v2019 = vpack.c.b16 %v1515, %v1497
    %v2020 = vpack.c.b16 %v1516, %v1498
    %v2021 = vpack.c.b16 %v1517, %v1499
    %v2022 = vpack.c.b16 %v1518, %v1500
    %v2023 = vpack.c.b16 %v1519, %v1501
    %v2024 = vpack.c.b16 %v1520, %v1502
    %v2025 = vpack.c.b16 %v1521, %v1503
    %v2026 = vpack.c.b16 %v1522, %v1504
    %v2027 = vpack.c.b16 %v1541, %v1523
    %v2028 = vpack.c.b16 %v1542, %v1524
    %v2029 = vpack.c.b16 %v1543, %v1525
    %v2030 = vpack.c.b16 %v1544, %v1526
    %v2031 = vpack.c.b16 %v1545, %v1527
    %v2032 = vpack.c.b16 %v1546, %v1528
    %v2033 = vpack.c.b16 %v1547, %v1529
    %v2034 = vpack.c.b16 %v1548, %v1530
    %v2035 = vpack.c.b16 %v1549, %v1531
    %v2036 = vpack.c.b16 %v1550, %v1532
    %v2037 = vpack.c.b16 %v1551, %v1533
    %v2038 = vpack.c.b16 %v1552, %v1534
    %v2039 = vpack.c.b16 %v1553, %v1535
    %v2040 = vpack.c.b16 %v1554, %v1536
    %v2041 = vpack.c.b16 %v1555, %v1537
    %v2042 = vpack.c.b16 %v1556, %v1538
    %v2043 = vpack.c.b16 %v1557, %v1539
    %v2044 = vpack.c.b16 %v1558, %v1540
    %v2045 = vpack.c.b16 %v1577, %v1559
    %v2046 = vpack.c.b16 %v1578, %v1560
    %v2047 = vpack.c.b16 %v1579, %v1561
    %v2048 = vpack.c.b16 %v1580, %v1562
    %v2049 = vpack.c.b16 %v1581, %v1563
    %v2050 = vpack.c.b16 %v1582, %v1564
    %v2051 = vpack.c.b16 %v1583, %v1565
    %v2052 = vpack.c.b16 %v1584, %v1566
    %v2053 = vpack.c.b16 %v1585, %v1567
    %v2054 = vpack.c.b16 %v1586, %v1568
    %v2055 = vpack.c.b16 %v1587, %v1569
    %v2056 = vpack.c.b16 %v1588, %v1570
    %v2057 = vpack.c.b16 %v1589, %v1571
    %v2058 = vpack.c.b16 %v1590, %v1572
    %v2059 = vpack.c.b16 %v1591, %v1573
    %v2060 = vpack.c.b16 %v1592, %v1574
    %v2061 = vpack.c.b16 %v1593, %v1575
    %v2062 = vpack.c.b16 %v1594, %v1576
    %v2063 = vpack.c.b16 %v1613, %v1595
    %v2064 = vpack.c.b16 %v1614, %v1596
    %v2065 = vpack.c.b16 %v1615, %v1597
    %v2066 = vpack.c.b16 %v1616, %v1598
    %v2067 = vpack.c.b16 %v1617, %v1599
    %v2068 = vpack.c.b16 %v1618, %v1600
    %v2069 = vpack.c.b16 %v1619, %v1601
    %v2070 = vpack.c.b16 %v1620, %v1602
    %v2071 = vpack.c.b16 %v1621, %v1603
    %v2072 = vpack.c.b16 %v1622, %v1604
    %v2073 = vpack.c.b16 %v1623, %v1605
    %v2074 = vpack.c.b16 %v1624, %v1606
    %v2075 = vpack.c.b16 %v1625, %v1607
    %v2076 = vpack.c.b16 %v1626, %v1608
    %v2077 = vpack.c.b16 %v1627, %v1609
    %v2078 = vpack.c.b16 %v1628, %v1610
    %v2079 = vpack.c.b16 %v1629, %v1611
    %v2080 = vpack.c.b16 %v1630, %v1612
    %v2081 = vpack.c.b16 %v1649, %v1631
    %v2082 = vpack.c.b16 %v1650, %v1632
    %v2083 = vpack.c.b16 %v1651, %v1633
    %v2084 = vpack.c.b16 %v1652, %v1634
    %v2085 = vpack.c.b16 %v1653, %v1635
    %v2086 = vpack.c.b16 %v1654, %v1636
    %v2087 = vpack.c.b16 %v1655, %v1637
    %v2088 = vpack.c.b16 %v1656, %v1638
    %v2089 = vpack.c.b16 %v1657, %v1639
    %v2090 = vpack.c.b16 %v1658, %v1640
    %v2091 = vpack.c.b16 %v1659, %v1641
    %v2092 = vpack.c.b16 %v1660, %v1642
    %v2093 = vpack.c.b16 %v1661, %v1643
    %v2094 = vpack.c.b16 %v1662, %v1644
    %v2095 = vpack.c.b16 %v1663, %v1645
    %v2096 = vpack.c.b16 %v1664, %v1646
    %v2097 = vpack.c.b16 %v1665, %v1647
    %v2098 = vpack.c.b16 %v1666, %v1648
    %v2099 = vpack.c.b16 %v1685, %v1667
    %v2100 = vpack.c.b16 %v1686, %v1668
    %v2101 = vpack.c.b16 %v1687, %v1669
    %v2102 = vpack.c.b16 %v1688, %v1670
    %v2103 = vpack.c.b16 %v1689, %v1671
    %v2104 = vpack.c.b16 %v1690, %v1672
    %v2105 = vpack.c.b16 %v1691, %v1673
    %v2106 = vpack.c.b16 %v1692, %v1674
    %v2107 = vpack.c.b16 %v1693, %v1675
    %v2108 = vpack.c.b16 %v1694, %v1676
    %v2109 = vpack.c.b16 %v1695, %v1677
    %v2110 = vpack.c.b16 %v1696, %v1678
    %v2111 = vpack.c.b16 %v1697, %v1679
    %v2112 = vpack.c.b16 %v1698, %v1680
    %v2113 = vpack.c.b16 %v1699, %v1681
    %v2114 = vpack.c.b16 %v1700, %v1682
    %v2115 = vpack.c.b16 %v1701, %v1683
    %v2116 = vpack.c.b16 %v1702, %v1684
    %v2117 = vpack.c.b16 %v1721, %v1703
    %v2118 = vpack.c.b16 %v1722, %v1704
    %v2119 = vpack.c.b16 %v1723, %v1705
    %v2120 = vpack.c.b16 %v1724, %v1706
    %v2121 = vpack.c.b16 %v1725, %v1707
    %v2122 = vpack.c.b16 %v1726, %v1708
    %v2123 = vpack.c.b16 %v1727, %v1709
    %v2124 = vpack.c.b16 %v1728, %v1710
    %v2125 = vpack.c.b16 %v1729, %v1711
    %v2126 = vpack.c.b16 %v1730, %v1712
    %v2127 = vpack.c.b16 %v1731, %v1713
    %v2128 = vpack.c.b16 %v1732, %v1714
    %v2129 = vpack.c.b16 %v1733, %v1715
    %v2130 = vpack.c.b16 %v1734, %v1716
    %v2131 = vpack.c.b16 %v1735, %v1717
    %v2132 = vpack.c.b16 %v1736, %v1718
    %v2133 = vpack.c.b16 %v1737, %v1719
    %v2134 = vpack.c.b16 %v1738, %v1720
    %v2135 = vpack.c.b16 %v1757, %v1739
    %v2136 = vpack.c.b16 %v1758, %v1740
    %v2137 = vpack.c.b16 %v1759, %v1741
    %v2138 = vpack.c.b16 %v1760, %v1742
    %v2139 = vpack.c.b16 %v1761, %v1743
    %v2140 = vpack.c.b16 %v1762, %v1744
    %v2141 = vpack.c.b16 %v1763, %v1745
    %v2142 = vpack.c.b16 %v1764, %v1746
    %v2143 = vpack.c.b16 %v1765, %v1747
    %v2144 = vpack.c.b16 %v1766, %v1748
    %v2145 = vpack.c.b16 %v1767, %v1749
    %v2146 = vpack.c.b16 %v1768, %v1750
    %v2147 = vpack.c.b16 %v1769, %v1751
    %v2148 = vpack.c.b16 %v1770, %v1752
    %v2149 = vpack.c.b16 %v1771, %v1753
    %v2150 = vpack.c.b16 %v1772, %v1754
    %v2151 = vpack.c.b16 %v1773, %v1755
    %v2152 = vpack.c.b16 %v1774, %v1756
    %v2153 = vpack.c.b16 %v1793, %v1775
    %v2154 = vpack.c.b16 %v1794, %v1776
    %v2155 = vpack.c.b16 %v1795, %v1777
    %v2156 = vpack.c.b16 %v1796, %v1778
    %v2157 = vpack.c.b16 %v1797, %v1779
    %v2158 = vpack.c.b16 %v1798, %v1780
    %v2159 = vpack.c.b16 %v1799, %v1781
    %v2160 = vpack.c.b16 %v1800, %v1782
    %v2161 = vpack.c.b16 %v1801, %v1783
    %v2162 = vpack.c.b16 %v1802, %v1784
    %v2163 = vpack.c.b16 %v1803, %v1785
    %v2164 = vpack.c.b16 %v1804, %v1786
    %v2165 = vpack.c.b16 %v1805, %v1787
    %v2166 = vpack.c.b16 %v1806, %v1788
    %v2167 = vpack.c.b16 %v1807, %v1789
    %v2168 = vpack.c.b16 %v1808, %v1790
    %v2169 = vpack.c.b16 %v1809, %v1791
    %v2170 = vpack.c.b16 %v1810, %v1792
    %v2171 = vpack.c.b16 %v1829, %v1811
    %v2172 = vpack.c.b16 %v1830, %v1812
    %v2173 = vpack.c.b16 %v1831, %v1813
    %v2174 = vpack.c.b16 %v1832, %v1814
    %v2175 = vpack.c.b16 %v1833, %v1815
    %v2176 = vpack.c.b16 %v1834, %v1816
    %v2177 = vpack.c.b16 %v1835, %v1817
    %v2178 = vpack.c.b16 %v1836, %v1818
    %v2179 = vpack.c.b16 %v1837, %v1819
    %v2180 = vpack.c.b16 %v1838, %v1820
    %v2181 = vpack.c.b16 %v1839, %v1821
    %v2182 = vpack.c.b16 %v1840, %v1822
    %v2183 = vpack.c.b16 %v1841, %v1823
    %v2184 = vpack.c.b16 %v1842, %v1824
    %v2185 = vpack.c.b16 %v1843, %v1825
    %v2186 = vpack.c.b16 %v1844, %v1826
    %v2187 = vpack.c.b16 %v1845, %v1827
    %v2188 = vpack.c.b16 %v1846, %v1828
    %v2189 = vpack.c.b16 %v1865, %v1847
    %v2190 = vpack.c.b16 %v1866, %v1848
    %v2191 = vpack.c.b16 %v1867, %v1849
    %v2192 = vpack.c.b16 %v1868, %v1850
    %v2193 = vpack.c.b16 %v1869, %v1851
    %v2194 = vpack.c.b16 %v1870, %v1852
    %v2195 = vpack.c.b16 %v1871, %v1853
    %v2196 = vpack.c.b16 %v1872, %v1854
    %v2197 = vpack.c.b16 %v1873, %v1855
    %v2198 = vpack.c.b16 %v1874, %v1856
    %v2199 = vpack.c.b16 %v1875, %v1857
    %v2200 = vpack.c.b16 %v1876, %v1858
    %v2201 = vpack.c.b16 %v1877, %v1859
    %v2202 = vpack.c.b16 %v1878, %v1860
    %v2203 = vpack.c.b16 %v1879, %v1861
    %v2204 = vpack.c.b16 %v1880, %v1862
    %v2205 = vpack.c.b16 %v1881, %v1863
    %v2206 = vpack.c.b16 %v1882, %v1864
    %v2207 = vpack.c.b16 %v1901, %v1883
    %v2208 = vpack.c.b16 %v1902, %v1884
    %v2209 = vpack.c.b16 %v1903, %v1885
    %v2210 = vpack.c.b16 %v1904, %v1886
    %v2211 = vpack.c.b16 %v1905, %v1887
    %v2212 = vpack.c.b16 %v1906, %v1888
    %v2213 = vpack.c.b16 %v1907, %v1889
    %v2214 = vpack.c.b16 %v1908, %v1890
    %v2215 = vpack.c.b16 %v1909, %v1891
    %v2216 = vpack.c.b16 %v1910, %v1892
    %v2217 = vpack.c.b16 %v1911, %v1893
    %v2218 = vpack.c.b16 %v1912, %v1894
    %v2219 = vpack.c.b16 %v1913, %v1895
    %v2220 = vpack.c.b16 %v1914, %v1896
    %v2221 = vpack.c.b16 %v1915, %v1897
    %v2222 = vpack.c.b16 %v1916, %v1898
    %v2223 = vpack.c.b16 %v1917, %v1899
    %v2224 = vpack.c.b16 %v1918, %v1900
    %v2225 = vpack.c.b16 %v1937, %v1919
    %v2226 = vpack.c.b16 %v1938, %v1920
    %v2227 = vpack.c.b16 %v1939, %v1921
    %v2228 = vpack.c.b16 %v1940, %v1922
    %v2229 = vpack.c.b16 %v1941, %v1923
    %v2230 = vpack.c.b16 %v1942, %v1924
    %v2231 = vpack.c.b16 %v1943, %v1925
    %v2232 = vpack.c.b16 %v1944, %v1926
    %v2233 = vpack.c.b16 %v1945, %v1927
    %v2234 = vpack.c.b16 %v1946, %v1928
    %v2235 = vpack.c.b16 %v1947, %v1929
    %v2236 = vpack.c.b16 %v1948, %v1930
    %v2237 = vpack.c.b16 %v1949, %v1931
    %v2238 = vpack.c.b16 %v1950, %v1932
    %v2239 = vpack.c.b16 %v1951, %v1933
    %v2240 = vpack.c.b16 %v1952, %v1934
    %v2241 = vpack.c.b16 %v1953, %v1935
    %v2242 = vpack.c.b16 %v1954, %v1936
    %v2243 = vpack.c.b16 %v1973, %v1955
    %v2244 = vpack.c.b16 %v1974, %v1956
    %v2245 = vpack.c.b16 %v1975, %v1957
    %v2246 = vpack.c.b16 %v1976, %v1958
    %v2247 = vpack.c.b16 %v1977, %v1959
    %v2248 = vpack.c.b16 %v1978, %v1960
    %v2249 = vpack.c.b16 %v1979, %v1961
    %v2250 = vpack.c.b16 %v1980, %v1962
    %v2251 = vpack.c.b16 %v1981, %v1963
    %v2252 = vpack.c.b16 %v1982, %v1964
    %v2253 = vpack.c.b16 %v1983, %v1965
    %v2254 = vpack.c.b16 %v1984, %v1966
    %v2255 = vpack.c.b16 %v1985, %v1967
    %v2256 = vpack.c.b16 %v1986, %v1968
    %v2257 = vpack.c.b16 %v1987, %v1969
    %v2258 = vpack.c.b16 %v1988, %v1970
    %v2259 = vpack.c.b16 %v1989, %v1971
    %v2260 = vpack.c.b16 %v1990, %v1972
    %v2532 = vsel %vm332, %v910, 0
    %2534 = vmatpush.bf16.msra.mxu0 %v2117
    %2535 = vmatpush.bf16.msra.mxu0 %v2099
    %2536 = vmatpush.bf16.msra.mxu0 %v2081
    %2537 = vmatpush.bf16.msra.mxu0 %v2063
    %2538 = vmatpush.bf16.msra.mxu0 %v2045
    %2539 = vmatpush.bf16.msra.mxu0 %v2027
    %2540 = vmatpush.bf16.msra.mxu0 %v2009
    %2541 = vmatpush.bf16.msra.mxu0 %v1991
    %2542 = vmatmul.bf16.gmra.mxu0 %v909
    %v2543 = vpop.f32.mrf.mxu0
    %v2544 = vadd.f32 0.0, %v2543
    %v2545 = vpop.f32.mrf.mxu0
    %2546 = vdwg.mxu0
    %2547 = vmatpush.bf16.msra.mxu0 0
    %2548 = vmatpush.bf16.msra.mxu0 %v2243
    %2549 = vmatpush.bf16.msra.mxu0 %v2225
    %2550 = vmatpush.bf16.msra.mxu0 %v2207
    %2551 = vmatpush.bf16.msra.mxu0 %v2189
    %2552 = vmatpush.bf16.msra.mxu0 %v2171
    %2553 = vmatpush.bf16.msra.mxu0 %v2153
    %2554 = vmatpush.bf16.msra.mxu0 %v2135
    %2555 = vmatmul.bf16.gmra.mxu0 %v2532
    %v2556 = vpop.f32.mrf.mxu0
    %v2557 = vadd.f32 %v2544, %v2556
    %v2558 = vpop.f32.mrf.mxu0
    %2559 = vdwg.mxu0
    %2560 = vmatpush.bf16.msra.mxu0 %v2118
    %2561 = vmatpush.bf16.msra.mxu0 %v2100
    %2562 = vmatpush.bf16.msra.mxu0 %v2082
    %2563 = vmatpush.bf16.msra.mxu0 %v2064
    %2564 = vmatpush.bf16.msra.mxu0 %v2046
    %2565 = vmatpush.bf16.msra.mxu0 %v2028
    %2566 = vmatpush.bf16.msra.mxu0 %v2010
    %2567 = vmatpush.bf16.msra.mxu0 %v1992
    %2568 = vmatmul.bf16.gmra.mxu0 %v909
    %v2569 = vpop.f32.mrf.mxu0
    %v2570 = vadd.f32 0.0, %v2569
    %v2571 = vpop.f32.mrf.mxu0
    %2572 = vdwg.mxu0
    %2573 = vmatpush.bf16.msra.mxu0 0
    %2574 = vmatpush.bf16.msra.mxu0 %v2244
    %2575 = vmatpush.bf16.msra.mxu0 %v2226
    %2576 = vmatpush.bf16.msra.mxu0 %v2208
    %2577 = vmatpush.bf16.msra.mxu0 %v2190
    %2578 = vmatpush.bf16.msra.mxu0 %v2172
    %2579 = vmatpush.bf16.msra.mxu0 %v2154
    %2580 = vmatpush.bf16.msra.mxu0 %v2136
    %2581 = vmatmul.bf16.gmra.mxu0 %v2532
    %v2582 = vpop.f32.mrf.mxu0
    %v2583 = vadd.f32 %v2570, %v2582
    %v2584 = vpop.f32.mrf.mxu0
    %2585 = vdwg.mxu0
    %2586 = vmatpush.bf16.msra.mxu0 %v2119
    %2587 = vmatpush.bf16.msra.mxu0 %v2101
    %2588 = vmatpush.bf16.msra.mxu0 %v2083
    %2589 = vmatpush.bf16.msra.mxu0 %v2065
    %2590 = vmatpush.bf16.msra.mxu0 %v2047
    %2591 = vmatpush.bf16.msra.mxu0 %v2029
    %2592 = vmatpush.bf16.msra.mxu0 %v2011
    %2593 = vmatpush.bf16.msra.mxu0 %v1993
    %2594 = vmatmul.bf16.gmra.mxu0 %v909
    %v2595 = vpop.f32.mrf.mxu0
    %v2596 = vadd.f32 0.0, %v2595
    %v2597 = vpop.f32.mrf.mxu0
    %2598 = vdwg.mxu0
    %2599 = vmatpush.bf16.msra.mxu0 0
    %2600 = vmatpush.bf16.msra.mxu0 %v2245
    %2601 = vmatpush.bf16.msra.mxu0 %v2227
    %2602 = vmatpush.bf16.msra.mxu0 %v2209
    %2603 = vmatpush.bf16.msra.mxu0 %v2191
    %2604 = vmatpush.bf16.msra.mxu0 %v2173
    %2605 = vmatpush.bf16.msra.mxu0 %v2155
    %2606 = vmatpush.bf16.msra.mxu0 %v2137
    %2607 = vmatmul.bf16.gmra.mxu0 %v2532
    %v2608 = vpop.f32.mrf.mxu0
    %v2609 = vadd.f32 %v2596, %v2608
    %v2610 = vpop.f32.mrf.mxu0
    %2611 = vdwg.mxu0
    %2612 = vmatpush.bf16.msra.mxu0 %v2120
    %2613 = vmatpush.bf16.msra.mxu0 %v2102
    %2614 = vmatpush.bf16.msra.mxu0 %v2084
    %2615 = vmatpush.bf16.msra.mxu0 %v2066
    %2616 = vmatpush.bf16.msra.mxu0 %v2048
    %2617 = vmatpush.bf16.msra.mxu0 %v2030
    %2618 = vmatpush.bf16.msra.mxu0 %v2012
    %2619 = vmatpush.bf16.msra.mxu0 %v1994
    %2620 = vmatmul.bf16.gmra.mxu0 %v909
    %v2621 = vpop.f32.mrf.mxu0
    %v2622 = vadd.f32 0.0, %v2621
    %v2623 = vpop.f32.mrf.mxu0
    %2624 = vdwg.mxu0
    %2625 = vmatpush.bf16.msra.mxu0 0
    %2626 = vmatpush.bf16.msra.mxu0 %v2246
    %2627 = vmatpush.bf16.msra.mxu0 %v2228
    %2628 = vmatpush.bf16.msra.mxu0 %v2210
    %2629 = vmatpush.bf16.msra.mxu0 %v2192
    %2630 = vmatpush.bf16.msra.mxu0 %v2174
    %2631 = vmatpush.bf16.msra.mxu0 %v2156
    %2632 = vmatpush.bf16.msra.mxu0 %v2138
    %2633 = vmatmul.bf16.gmra.mxu0 %v2532
    %v2634 = vpop.f32.mrf.mxu0
    %v2635 = vadd.f32 %v2622, %v2634
    %v2636 = vpop.f32.mrf.mxu0
    %2637 = vdwg.mxu0
    %2638 = vmatpush.bf16.msra.mxu0 %v2121
    %2639 = vmatpush.bf16.msra.mxu0 %v2103
    %2640 = vmatpush.bf16.msra.mxu0 %v2085
    %2641 = vmatpush.bf16.msra.mxu0 %v2067
    %2642 = vmatpush.bf16.msra.mxu0 %v2049
    %2643 = vmatpush.bf16.msra.mxu0 %v2031
    %2644 = vmatpush.bf16.msra.mxu0 %v2013
    %2645 = vmatpush.bf16.msra.mxu0 %v1995
    %2646 = vmatmul.bf16.gmra.mxu0 %v909
    %v2647 = vpop.f32.mrf.mxu0
    %v2648 = vadd.f32 0.0, %v2647
    %v2649 = vpop.f32.mrf.mxu0
    %2650 = vdwg.mxu0
    %2651 = vmatpush.bf16.msra.mxu0 0
    %2652 = vmatpush.bf16.msra.mxu0 %v2247
    %2653 = vmatpush.bf16.msra.mxu0 %v2229
    %2654 = vmatpush.bf16.msra.mxu0 %v2211
    %2655 = vmatpush.bf16.msra.mxu0 %v2193
    %2656 = vmatpush.bf16.msra.mxu0 %v2175
    %2657 = vmatpush.bf16.msra.mxu0 %v2157
    %2658 = vmatpush.bf16.msra.mxu0 %v2139
    %2659 = vmatmul.bf16.gmra.mxu0 %v2532
    %v2660 = vpop.f32.mrf.mxu0
    %v2661 = vadd.f32 %v2648, %v2660
    %v2662 = vpop.f32.mrf.mxu0
    %2663 = vdwg.mxu0
    %2664 = vmatpush.bf16.msra.mxu0 %v2122
    %2665 = vmatpush.bf16.msra.mxu0 %v2104
    %2666 = vmatpush.bf16.msra.mxu0 %v2086
    %2667 = vmatpush.bf16.msra.mxu0 %v2068
    %2668 = vmatpush.bf16.msra.mxu0 %v2050
    %2669 = vmatpush.bf16.msra.mxu0 %v2032
    %2670 = vmatpush.bf16.msra.mxu0 %v2014
    %2671 = vmatpush.bf16.msra.mxu0 %v1996
    %2672 = vmatmul.bf16.gmra.mxu0 %v909
    %v2673 = vpop.f32.mrf.mxu0
    %v2674 = vadd.f32 0.0, %v2673
    %v2675 = vpop.f32.mrf.mxu0
    %2676 = vdwg.mxu0
    %2677 = vmatpush.bf16.msra.mxu0 0
    %2678 = vmatpush.bf16.msra.mxu0 %v2248
    %2679 = vmatpush.bf16.msra.mxu0 %v2230
    %2680 = vmatpush.bf16.msra.mxu0 %v2212
    %2681 = vmatpush.bf16.msra.mxu0 %v2194
    %2682 = vmatpush.bf16.msra.mxu0 %v2176
    %2683 = vmatpush.bf16.msra.mxu0 %v2158
    %2684 = vmatpush.bf16.msra.mxu0 %v2140
    %2685 = vmatmul.bf16.gmra.mxu0 %v2532
    %v2686 = vpop.f32.mrf.mxu0
    %v2687 = vadd.f32 %v2674, %v2686
    %v2688 = vpop.f32.mrf.mxu0
    %2689 = vdwg.mxu0
    %2690 = vmatpush.bf16.msra.mxu0 %v2123
    %2691 = vmatpush.bf16.msra.mxu0 %v2105
    %2692 = vmatpush.bf16.msra.mxu0 %v2087
    %2693 = vmatpush.bf16.msra.mxu0 %v2069
    %2694 = vmatpush.bf16.msra.mxu0 %v2051
    %2695 = vmatpush.bf16.msra.mxu0 %v2033
    %2696 = vmatpush.bf16.msra.mxu0 %v2015
    %2697 = vmatpush.bf16.msra.mxu0 %v1997
    %2698 = vmatmul.bf16.gmra.mxu0 %v909
    %v2699 = vpop.f32.mrf.mxu0
    %v2700 = vadd.f32 0.0, %v2699
    %v2701 = vpop.f32.mrf.mxu0
    %2702 = vdwg.mxu0
    %2703 = vmatpush.bf16.msra.mxu0 0
    %2704 = vmatpush.bf16.msra.mxu0 %v2249
    %2705 = vmatpush.bf16.msra.mxu0 %v2231
    %2706 = vmatpush.bf16.msra.mxu0 %v2213
    %2707 = vmatpush.bf16.msra.mxu0 %v2195
    %2708 = vmatpush.bf16.msra.mxu0 %v2177
    %2709 = vmatpush.bf16.msra.mxu0 %v2159
    %2710 = vmatpush.bf16.msra.mxu0 %v2141
    %2711 = vmatmul.bf16.gmra.mxu0 %v2532
    %v2712 = vpop.f32.mrf.mxu0
    %v2713 = vadd.f32 %v2700, %v2712
    %v2714 = vpop.f32.mrf.mxu0
    %2715 = vdwg.mxu0
    %2716 = vmatpush.bf16.msra.mxu0 %v2124
    %2717 = vmatpush.bf16.msra.mxu0 %v2106
    %2718 = vmatpush.bf16.msra.mxu0 %v2088
    %2719 = vmatpush.bf16.msra.mxu0 %v2070
    %2720 = vmatpush.bf16.msra.mxu0 %v2052
    %2721 = vmatpush.bf16.msra.mxu0 %v2034
    %2722 = vmatpush.bf16.msra.mxu0 %v2016
    %2723 = vmatpush.bf16.msra.mxu0 %v1998
    %2724 = vmatmul.bf16.gmra.mxu0 %v909
    %v2725 = vpop.f32.mrf.mxu0
    %v2726 = vadd.f32 0.0, %v2725
    %v2727 = vpop.f32.mrf.mxu0
    %2728 = vdwg.mxu0
    %2729 = vmatpush.bf16.msra.mxu0 0
    %2730 = vmatpush.bf16.msra.mxu0 %v2250
    %2731 = vmatpush.bf16.msra.mxu0 %v2232
    %2732 = vmatpush.bf16.msra.mxu0 %v2214
    %2733 = vmatpush.bf16.msra.mxu0 %v2196
    %2734 = vmatpush.bf16.msra.mxu0 %v2178
    %2735 = vmatpush.bf16.msra.mxu0 %v2160
    %2736 = vmatpush.bf16.msra.mxu0 %v2142
    %2737 = vmatmul.bf16.gmra.mxu0 %v2532
    %v2738 = vpop.f32.mrf.mxu0
    %v2739 = vadd.f32 %v2726, %v2738
    %v2740 = vpop.f32.mrf.mxu0
    %2741 = vdwg.mxu0
    %2742 = vmatpush.bf16.msra.mxu0 %v2125
    %2743 = vmatpush.bf16.msra.mxu0 %v2107
    %2744 = vmatpush.bf16.msra.mxu0 %v2089
    %2745 = vmatpush.bf16.msra.mxu0 %v2071
    %2746 = vmatpush.bf16.msra.mxu0 %v2053
    %2747 = vmatpush.bf16.msra.mxu0 %v2035
    %2748 = vmatpush.bf16.msra.mxu0 %v2017
    %2749 = vmatpush.bf16.msra.mxu0 %v1999
    %2750 = vmatmul.bf16.gmra.mxu0 %v909
    %v2751 = vpop.f32.mrf.mxu0
    %v2752 = vadd.f32 0.0, %v2751
    %v2753 = vpop.f32.mrf.mxu0
    %2754 = vdwg.mxu0
    %2755 = vmatpush.bf16.msra.mxu0 0
    %2756 = vmatpush.bf16.msra.mxu0 %v2251
    %2757 = vmatpush.bf16.msra.mxu0 %v2233
    %2758 = vmatpush.bf16.msra.mxu0 %v2215
    %2759 = vmatpush.bf16.msra.mxu0 %v2197
    %2760 = vmatpush.bf16.msra.mxu0 %v2179
    %2761 = vmatpush.bf16.msra.mxu0 %v2161
    %2762 = vmatpush.bf16.msra.mxu0 %v2143
    %2763 = vmatmul.bf16.gmra.mxu0 %v2532
    %v2764 = vpop.f32.mrf.mxu0
    %v2765 = vadd.f32 %v2752, %v2764
    %v2766 = vpop.f32.mrf.mxu0
    %2767 = vdwg.mxu0
    %2768 = vmatpush.bf16.msra.mxu0 %v2126
    %2769 = vmatpush.bf16.msra.mxu0 %v2108
    %2770 = vmatpush.bf16.msra.mxu0 %v2090
    %2771 = vmatpush.bf16.msra.mxu0 %v2072
    %2772 = vmatpush.bf16.msra.mxu0 %v2054
    %2773 = vmatpush.bf16.msra.mxu0 %v2036
    %2774 = vmatpush.bf16.msra.mxu0 %v2018
    %2775 = vmatpush.bf16.msra.mxu0 %v2000
    %2776 = vmatmul.bf16.gmra.mxu0 %v909
    %v2777 = vpop.f32.mrf.mxu0
    %v2778 = vadd.f32 0.0, %v2777
    %v2779 = vpop.f32.mrf.mxu0
    %2780 = vdwg.mxu0
    %2781 = vmatpush.bf16.msra.mxu0 0
    %2782 = vmatpush.bf16.msra.mxu0 %v2252
    %2783 = vmatpush.bf16.msra.mxu0 %v2234
    %2784 = vmatpush.bf16.msra.mxu0 %v2216
    %2785 = vmatpush.bf16.msra.mxu0 %v2198
    %2786 = vmatpush.bf16.msra.mxu0 %v2180
    %2787 = vmatpush.bf16.msra.mxu0 %v2162
    %2788 = vmatpush.bf16.msra.mxu0 %v2144
    %2789 = vmatmul.bf16.gmra.mxu0 %v2532
    %v2790 = vpop.f32.mrf.mxu0
    %v2791 = vadd.f32 %v2778, %v2790
    %v2792 = vpop.f32.mrf.mxu0
    %2793 = vdwg.mxu0
    %2794 = vmatpush.bf16.msra.mxu0 %v2127
    %2795 = vmatpush.bf16.msra.mxu0 %v2109
    %2796 = vmatpush.bf16.msra.mxu0 %v2091
    %2797 = vmatpush.bf16.msra.mxu0 %v2073
    %2798 = vmatpush.bf16.msra.mxu0 %v2055
    %2799 = vmatpush.bf16.msra.mxu0 %v2037
    %2800 = vmatpush.bf16.msra.mxu0 %v2019
    %2801 = vmatpush.bf16.msra.mxu0 %v2001
    %2802 = vmatmul.bf16.gmra.mxu0 %v909
    %v2803 = vpop.f32.mrf.mxu0
    %v2804 = vadd.f32 0.0, %v2803
    %v2805 = vpop.f32.mrf.mxu0
    %2806 = vdwg.mxu0
    %2807 = vmatpush.bf16.msra.mxu0 0
    %2808 = vmatpush.bf16.msra.mxu0 %v2253
    %2809 = vmatpush.bf16.msra.mxu0 %v2235
    %2810 = vmatpush.bf16.msra.mxu0 %v2217
    %2811 = vmatpush.bf16.msra.mxu0 %v2199
    %2812 = vmatpush.bf16.msra.mxu0 %v2181
    %2813 = vmatpush.bf16.msra.mxu0 %v2163
    %2814 = vmatpush.bf16.msra.mxu0 %v2145
    %2815 = vmatmul.bf16.gmra.mxu0 %v2532
    %v2816 = vpop.f32.mrf.mxu0
    %v2817 = vadd.f32 %v2804, %v2816
    %v2818 = vpop.f32.mrf.mxu0
    %2819 = vdwg.mxu0
    %2820 = vmatpush.bf16.msra.mxu0 %v2128
    %2821 = vmatpush.bf16.msra.mxu0 %v2110
    %2822 = vmatpush.bf16.msra.mxu0 %v2092
    %2823 = vmatpush.bf16.msra.mxu0 %v2074
    %2824 = vmatpush.bf16.msra.mxu0 %v2056
    %2825 = vmatpush.bf16.msra.mxu0 %v2038
    %2826 = vmatpush.bf16.msra.mxu0 %v2020
    %2827 = vmatpush.bf16.msra.mxu0 %v2002
    %2828 = vmatmul.bf16.gmra.mxu0 %v909
    %v2829 = vpop.f32.mrf.mxu0
    %v2830 = vadd.f32 0.0, %v2829
    %v2831 = vpop.f32.mrf.mxu0
    %2832 = vdwg.mxu0
    %2833 = vmatpush.bf16.msra.mxu0 0
    %2834 = vmatpush.bf16.msra.mxu0 %v2254
    %2835 = vmatpush.bf16.msra.mxu0 %v2236
    %2836 = vmatpush.bf16.msra.mxu0 %v2218
    %2837 = vmatpush.bf16.msra.mxu0 %v2200
    %2838 = vmatpush.bf16.msra.mxu0 %v2182
    %2839 = vmatpush.bf16.msra.mxu0 %v2164
    %2840 = vmatpush.bf16.msra.mxu0 %v2146
    %2841 = vmatmul.bf16.gmra.mxu0 %v2532
    %v2842 = vpop.f32.mrf.mxu0
    %v2843 = vadd.f32 %v2830, %v2842
    %v2844 = vpop.f32.mrf.mxu0
    %2845 = vdwg.mxu0
    %2846 = vmatpush.bf16.msra.mxu0 %v2129
    %2847 = vmatpush.bf16.msra.mxu0 %v2111
    %2848 = vmatpush.bf16.msra.mxu0 %v2093
    %2849 = vmatpush.bf16.msra.mxu0 %v2075
    %2850 = vmatpush.bf16.msra.mxu0 %v2057
    %2851 = vmatpush.bf16.msra.mxu0 %v2039
    %2852 = vmatpush.bf16.msra.mxu0 %v2021
    %2853 = vmatpush.bf16.msra.mxu0 %v2003
    %2854 = vmatmul.bf16.gmra.mxu0 %v909
    %v2855 = vpop.f32.mrf.mxu0
    %v2856 = vadd.f32 0.0, %v2855
    %v2857 = vpop.f32.mrf.mxu0
    %2858 = vdwg.mxu0
    %2859 = vmatpush.bf16.msra.mxu0 0
    %2860 = vmatpush.bf16.msra.mxu0 %v2255
    %2861 = vmatpush.bf16.msra.mxu0 %v2237
    %2862 = vmatpush.bf16.msra.mxu0 %v2219
    %2863 = vmatpush.bf16.msra.mxu0 %v2201
    %2864 = vmatpush.bf16.msra.mxu0 %v2183
    %2865 = vmatpush.bf16.msra.mxu0 %v2165
    %2866 = vmatpush.bf16.msra.mxu0 %v2147
    %2867 = vmatmul.bf16.gmra.mxu0 %v2532
    %v2868 = vpop.f32.mrf.mxu0
    %v2869 = vadd.f32 %v2856, %v2868
    %v2870 = vpop.f32.mrf.mxu0
    %2871 = vdwg.mxu0
    %2872 = vmatpush.bf16.msra.mxu0 %v2130
    %2873 = vmatpush.bf16.msra.mxu0 %v2112
    %2874 = vmatpush.bf16.msra.mxu0 %v2094
    %2875 = vmatpush.bf16.msra.mxu0 %v2076
    %2876 = vmatpush.bf16.msra.mxu0 %v2058
    %2877 = vmatpush.bf16.msra.mxu0 %v2040
    %2878 = vmatpush.bf16.msra.mxu0 %v2022
    %2879 = vmatpush.bf16.msra.mxu0 %v2004
    %2880 = vmatmul.bf16.gmra.mxu0 %v909
    %v2881 = vpop.f32.mrf.mxu0
    %v2882 = vadd.f32 0.0, %v2881
    %v2883 = vpop.f32.mrf.mxu0
    %2884 = vdwg.mxu0
    %2885 = vmatpush.bf16.msra.mxu0 0
    %2886 = vmatpush.bf16.msra.mxu0 %v2256
    %2887 = vmatpush.bf16.msra.mxu0 %v2238
    %2888 = vmatpush.bf16.msra.mxu0 %v2220
    %2889 = vmatpush.bf16.msra.mxu0 %v2202
    %2890 = vmatpush.bf16.msra.mxu0 %v2184
    %2891 = vmatpush.bf16.msra.mxu0 %v2166
    %2892 = vmatpush.bf16.msra.mxu0 %v2148
    %2893 = vmatmul.bf16.gmra.mxu0 %v2532
    %v2894 = vpop.f32.mrf.mxu0
    %v2895 = vadd.f32 %v2882, %v2894
    %v2896 = vpop.f32.mrf.mxu0
    %2897 = vdwg.mxu0
    %2898 = vmatpush.bf16.msra.mxu0 %v2131
    %2899 = vmatpush.bf16.msra.mxu0 %v2113
    %2900 = vmatpush.bf16.msra.mxu0 %v2095
    %2901 = vmatpush.bf16.msra.mxu0 %v2077
    %2902 = vmatpush.bf16.msra.mxu0 %v2059
    %2903 = vmatpush.bf16.msra.mxu0 %v2041
    %2904 = vmatpush.bf16.msra.mxu0 %v2023
    %2905 = vmatpush.bf16.msra.mxu0 %v2005
    %2906 = vmatmul.bf16.gmra.mxu0 %v909
    %v2907 = vpop.f32.mrf.mxu0
    %v2908 = vadd.f32 0.0, %v2907
    %v2909 = vpop.f32.mrf.mxu0
    %2910 = vdwg.mxu0
    %2911 = vmatpush.bf16.msra.mxu0 0
    %2912 = vmatpush.bf16.msra.mxu0 %v2257
    %2913 = vmatpush.bf16.msra.mxu0 %v2239
    %2914 = vmatpush.bf16.msra.mxu0 %v2221
    %2915 = vmatpush.bf16.msra.mxu0 %v2203
    %2916 = vmatpush.bf16.msra.mxu0 %v2185
    %2917 = vmatpush.bf16.msra.mxu0 %v2167
    %2918 = vmatpush.bf16.msra.mxu0 %v2149
    %2919 = vmatmul.bf16.gmra.mxu0 %v2532
    %v2920 = vpop.f32.mrf.mxu0
    %v2921 = vadd.f32 %v2908, %v2920
    %v2922 = vpop.f32.mrf.mxu0
    %2923 = vdwg.mxu0
    %2924 = vmatpush.bf16.msra.mxu0 %v2132
    %2925 = vmatpush.bf16.msra.mxu0 %v2114
    %2926 = vmatpush.bf16.msra.mxu0 %v2096
    %2927 = vmatpush.bf16.msra.mxu0 %v2078
    %2928 = vmatpush.bf16.msra.mxu0 %v2060
    %2929 = vmatpush.bf16.msra.mxu0 %v2042
    %2930 = vmatpush.bf16.msra.mxu0 %v2024
    %2931 = vmatpush.bf16.msra.mxu0 %v2006
    %2932 = vmatmul.bf16.gmra.mxu0 %v909
    %v2933 = vpop.f32.mrf.mxu0
    %v2934 = vadd.f32 0.0, %v2933
    %v2935 = vpop.f32.mrf.mxu0
    %2936 = vdwg.mxu0
    %2937 = vmatpush.bf16.msra.mxu0 0
    %2938 = vmatpush.bf16.msra.mxu0 %v2258
    %2939 = vmatpush.bf16.msra.mxu0 %v2240
    %2940 = vmatpush.bf16.msra.mxu0 %v2222
    %2941 = vmatpush.bf16.msra.mxu0 %v2204
    %2942 = vmatpush.bf16.msra.mxu0 %v2186
    %2943 = vmatpush.bf16.msra.mxu0 %v2168
    %2944 = vmatpush.bf16.msra.mxu0 %v2150
    %2945 = vmatmul.bf16.gmra.mxu0 %v2532
    %v2946 = vpop.f32.mrf.mxu0
    %v2947 = vadd.f32 %v2934, %v2946
    %v2948 = vpop.f32.mrf.mxu0
    %2949 = vdwg.mxu0
    %2950 = vmatpush.bf16.msra.mxu0 %v2133
    %2951 = vmatpush.bf16.msra.mxu0 %v2115
    %2952 = vmatpush.bf16.msra.mxu0 %v2097
    %2953 = vmatpush.bf16.msra.mxu0 %v2079
    %2954 = vmatpush.bf16.msra.mxu0 %v2061
    %2955 = vmatpush.bf16.msra.mxu0 %v2043
    %2956 = vmatpush.bf16.msra.mxu0 %v2025
    %2957 = vmatpush.bf16.msra.mxu0 %v2007
    %2958 = vmatmul.bf16.gmra.mxu0 %v909
    %v2959 = vpop.f32.mrf.mxu0
    %v2960 = vadd.f32 0.0, %v2959
    %v2961 = vpop.f32.mrf.mxu0
    %2962 = vdwg.mxu0
    %2963 = vmatpush.bf16.msra.mxu0 0
    %2964 = vmatpush.bf16.msra.mxu0 %v2259
    %2965 = vmatpush.bf16.msra.mxu0 %v2241
    %2966 = vmatpush.bf16.msra.mxu0 %v2223
    %2967 = vmatpush.bf16.msra.mxu0 %v2205
    %2968 = vmatpush.bf16.msra.mxu0 %v2187
    %2969 = vmatpush.bf16.msra.mxu0 %v2169
    %2970 = vmatpush.bf16.msra.mxu0 %v2151
    %2971 = vmatmul.bf16.gmra.mxu0 %v2532
    %v2972 = vpop.f32.mrf.mxu0
    %v2973 = vadd.f32 %v2960, %v2972
    %v2974 = vpop.f32.mrf.mxu0
    %2975 = vdwg.mxu0
    %2976 = vmatpush.bf16.msra.mxu0 %v2134
    %2977 = vmatpush.bf16.msra.mxu0 %v2116
    %2978 = vmatpush.bf16.msra.mxu0 %v2098
    %2979 = vmatpush.bf16.msra.mxu0 %v2080
    %2980 = vmatpush.bf16.msra.mxu0 %v2062
    %2981 = vmatpush.bf16.msra.mxu0 %v2044
    %2982 = vmatpush.bf16.msra.mxu0 %v2026
    %2983 = vmatpush.bf16.msra.mxu0 %v2008
    %2984 = vmatmul.bf16.gmra.mxu0 %v909
    %v2985 = vpop.f32.mrf.mxu0
    %v2986 = vadd.f32 0.0, %v2985
    %v2987 = vpop.f32.mrf.mxu0
    %2988 = vdwg.mxu0
    %2989 = vmatpush.bf16.msra.mxu0 0
    %2990 = vmatpush.bf16.msra.mxu0 %v2260
    %2991 = vmatpush.bf16.msra.mxu0 %v2242
    %2992 = vmatpush.bf16.msra.mxu0 %v2224
    %2993 = vmatpush.bf16.msra.mxu0 %v2206
    %2994 = vmatpush.bf16.msra.mxu0 %v2188
    %2995 = vmatpush.bf16.msra.mxu0 %v2170
    %2996 = vmatpush.bf16.msra.mxu0 %v2152
    %2997 = vmatmul.bf16.gmra.mxu0 %v2532
    %v2998 = vpop.f32.mrf.mxu0
    %v2999 = vadd.f32 %v2986, %v2998
    %v3000 = vpop.f32.mrf.mxu0
    %3001 = vdwg.mxu0
    %v3272 = vunpack.c.l.b16 %v639
    %v3273 = vunpack.c.h.b16 %v639
    %v3274 = vunpack.c.l.b16 %v640
    %v3275 = vunpack.c.h.b16 %v640
    %v3276 = vunpack.c.l.b16 %v641
    %v3277 = vunpack.c.h.b16 %v641
    %v3278 = vunpack.c.l.b16 %v642
    %v3279 = vunpack.c.h.b16 %v642
    %v3280 = vunpack.c.l.b16 %v643
    %v3281 = vunpack.c.h.b16 %v643
    %v3282 = vunpack.c.l.b16 %v644
    %v3283 = vunpack.c.h.b16 %v644
    %v3284 = vunpack.c.l.b16 %v645
    %v3285 = vunpack.c.h.b16 %v645
    %v3286 = vunpack.c.l.b16 %v646
    %v3287 = vunpack.c.h.b16 %v646
    %v3288 = vunpack.c.l.b16 %v647
    %v3289 = vunpack.c.h.b16 %v647
    %v3290 = vunpack.c.l.b16 %v648
    %v3291 = vunpack.c.h.b16 %v648
    %v3292 = vunpack.c.l.b16 %v649
    %v3293 = vunpack.c.h.b16 %v649
    %v3294 = vunpack.c.l.b16 %v650
    %v3295 = vunpack.c.h.b16 %v650
    %v3296 = vunpack.c.l.b16 %v651
    %v3297 = vunpack.c.h.b16 %v651
    %v3298 = vunpack.c.l.b16 %v652
    %v3299 = vunpack.c.h.b16 %v652
    %v3300 = vunpack.c.l.b16 %v653
    %v3301 = vunpack.c.h.b16 %v653
    %v3302 = vunpack.c.l.b16 %v654
    %v3303 = vunpack.c.h.b16 %v654
    %v3304 = vunpack.c.l.b16 %v655
    %v3305 = vunpack.c.h.b16 %v655
    %v3306 = vunpack.c.l.b16 %v656
    %v3307 = vunpack.c.h.b16 %v656
    %v3308 = vunpack.c.l.b16 %v657
    %v3309 = vunpack.c.h.b16 %v657
    %v3310 = vunpack.c.l.b16 %v658
    %v3311 = vunpack.c.h.b16 %v658
    %v3312 = vunpack.c.l.b16 %v659
    %v3313 = vunpack.c.h.b16 %v659
    %v3314 = vunpack.c.l.b16 %v660
    %v3315 = vunpack.c.h.b16 %v660
    %v3316 = vunpack.c.l.b16 %v661
    %v3317 = vunpack.c.h.b16 %v661
    %v3318 = vunpack.c.l.b16 %v662
    %v3319 = vunpack.c.h.b16 %v662
    %v3320 = vunpack.c.l.b16 %v663
    %v3321 = vunpack.c.h.b16 %v663
    %v3322 = vunpack.c.l.b16 %v664
    %v3323 = vunpack.c.h.b16 %v664
    %v3324 = vunpack.c.l.b16 %v665
    %v3325 = vunpack.c.h.b16 %v665
    %v3326 = vunpack.c.l.b16 %v666
    %v3327 = vunpack.c.h.b16 %v666
    %v3328 = vunpack.c.l.b16 %v667
    %v3329 = vunpack.c.h.b16 %v667
    %v3330 = vunpack.c.l.b16 %v668
    %v3331 = vunpack.c.h.b16 %v668
    %v3332 = vunpack.c.l.b16 %v669
    %v3333 = vunpack.c.h.b16 %v669
    %v3334 = vunpack.c.l.b16 %v670
    %v3335 = vunpack.c.h.b16 %v670
    %v3336 = vunpack.c.l.b16 %v671
    %v3337 = vunpack.c.h.b16 %v671
    %v3338 = vunpack.c.l.b16 %v672
    %v3339 = vunpack.c.h.b16 %v672
    %v3340 = vunpack.c.l.b16 %v673
    %v3341 = vunpack.c.h.b16 %v673
    %v3342 = vunpack.c.l.b16 %v674
    %v3343 = vunpack.c.h.b16 %v674
    %v3344 = vunpack.c.l.b16 %v675
    %v3345 = vunpack.c.h.b16 %v675
    %v3346 = vunpack.c.l.b16 %v676
    %v3347 = vunpack.c.h.b16 %v676
    %v3348 = vunpack.c.l.b16 %v677
    %v3349 = vunpack.c.h.b16 %v677
    %v3350 = vunpack.c.l.b16 %v678
    %v3351 = vunpack.c.h.b16 %v678
    %v3352 = vunpack.c.l.b16 %v679
    %v3353 = vunpack.c.h.b16 %v679
    %v3354 = vunpack.c.l.b16 %v680
    %v3355 = vunpack.c.h.b16 %v680
    %v3356 = vunpack.c.l.b16 %v681
    %v3357 = vunpack.c.h.b16 %v681
    %v3358 = vunpack.c.l.b16 %v682
    %v3359 = vunpack.c.h.b16 %v682
    %v3360 = vunpack.c.l.b16 %v683
    %v3361 = vunpack.c.h.b16 %v683
    %v3362 = vunpack.c.l.b16 %v684
    %v3363 = vunpack.c.h.b16 %v684
    %v3364 = vunpack.c.l.b16 %v685
    %v3365 = vunpack.c.h.b16 %v685
    %v3366 = vunpack.c.l.b16 %v686
    %v3367 = vunpack.c.h.b16 %v686
    %v3368 = vunpack.c.l.b16 %v687
    %v3369 = vunpack.c.h.b16 %v687
    %v3370 = vunpack.c.l.b16 %v688
    %v3371 = vunpack.c.h.b16 %v688
    %v3372 = vunpack.c.l.b16 %v689
    %v3373 = vunpack.c.h.b16 %v689
    %v3374 = vunpack.c.l.b16 %v690
    %v3375 = vunpack.c.h.b16 %v690
    %v3376 = vunpack.c.l.b16 %v691
    %v3377 = vunpack.c.h.b16 %v691
    %v3378 = vunpack.c.l.b16 %v692
    %v3379 = vunpack.c.h.b16 %v692
    %v3380 = vunpack.c.l.b16 %v693
    %v3381 = vunpack.c.h.b16 %v693
    %v3382 = vunpack.c.l.b16 %v694
    %v3383 = vunpack.c.h.b16 %v694
    %v3384 = vunpack.c.l.b16 %v695
    %v3385 = vunpack.c.h.b16 %v695
    %v3386 = vunpack.c.l.b16 %v696
    %v3387 = vunpack.c.h.b16 %v696
    %v3388 = vunpack.c.l.b16 %v697
    %v3389 = vunpack.c.h.b16 %v697
    %v3390 = vunpack.c.l.b16 %v698
    %v3391 = vunpack.c.h.b16 %v698
    %v3392 = vunpack.c.l.b16 %v699
    %v3393 = vunpack.c.h.b16 %v699
    %v3394 = vunpack.c.l.b16 %v700
    %v3395 = vunpack.c.h.b16 %v700
    %v3396 = vunpack.c.l.b16 %v701
    %v3397 = vunpack.c.h.b16 %v701
    %v3398 = vunpack.c.l.b16 %v702
    %v3399 = vunpack.c.h.b16 %v702
    %v3400 = vunpack.c.l.b16 %v703
    %v3401 = vunpack.c.h.b16 %v703
    %v3402 = vunpack.c.l.b16 %v704
    %v3403 = vunpack.c.h.b16 %v704
    %v3404 = vunpack.c.l.b16 %v705
    %v3405 = vunpack.c.h.b16 %v705
    %v3406 = vunpack.c.l.b16 %v706
    %v3407 = vunpack.c.h.b16 %v706
    %v3408 = vunpack.c.l.b16 %v707
    %v3409 = vunpack.c.h.b16 %v707
    %v3410 = vunpack.c.l.b16 %v708
    %v3411 = vunpack.c.h.b16 %v708
    %v3412 = vunpack.c.l.b16 %v709
    %v3413 = vunpack.c.h.b16 %v709
    %v3414 = vunpack.c.l.b16 %v710
    %v3415 = vunpack.c.h.b16 %v710
    %v3416 = vunpack.c.l.b16 %v711
    %v3417 = vunpack.c.h.b16 %v711
    %v3418 = vunpack.c.l.b16 %v712
    %v3419 = vunpack.c.h.b16 %v712
    %v3420 = vunpack.c.l.b16 %v713
    %v3421 = vunpack.c.h.b16 %v713
    %v3422 = vunpack.c.l.b16 %v714
    %v3423 = vunpack.c.h.b16 %v714
    %v3424 = vunpack.c.l.b16 %v715
    %v3425 = vunpack.c.h.b16 %v715
    %v3426 = vunpack.c.l.b16 %v716
    %v3427 = vunpack.c.h.b16 %v716
    %v3428 = vunpack.c.l.b16 %v717
    %v3429 = vunpack.c.h.b16 %v717
    %v3430 = vunpack.c.l.b16 %v718
    %v3431 = vunpack.c.h.b16 %v718
    %v3432 = vunpack.c.l.b16 %v719
    %v3433 = vunpack.c.h.b16 %v719
    %v3434 = vunpack.c.l.b16 %v720
    %v3435 = vunpack.c.h.b16 %v720
    %v3436 = vunpack.c.l.b16 %v721
    %v3437 = vunpack.c.h.b16 %v721
    %v3438 = vunpack.c.l.b16 %v722
    %v3439 = vunpack.c.h.b16 %v722
    %v3440 = vunpack.c.l.b16 %v723
    %v3441 = vunpack.c.h.b16 %v723
    %v3442 = vunpack.c.l.b16 %v724
    %v3443 = vunpack.c.h.b16 %v724
    %v3444 = vunpack.c.l.b16 %v725
    %v3445 = vunpack.c.h.b16 %v725
    %v3446 = vunpack.c.l.b16 %v726
    %v3447 = vunpack.c.h.b16 %v726
    %v3448 = vunpack.c.l.b16 %v727
    %v3449 = vunpack.c.h.b16 %v727
    %v3450 = vunpack.c.l.b16 %v728
    %v3451 = vunpack.c.h.b16 %v728
    %v3452 = vunpack.c.l.b16 %v729
    %v3453 = vunpack.c.h.b16 %v729
    %v3454 = vunpack.c.l.b16 %v730
    %v3455 = vunpack.c.h.b16 %v730
    %v3456 = vunpack.c.l.b16 %v731
    %v3457 = vunpack.c.h.b16 %v731
    %v3458 = vunpack.c.l.b16 %v732
    %v3459 = vunpack.c.h.b16 %v732
    %v3460 = vunpack.c.l.b16 %v733
    %v3461 = vunpack.c.h.b16 %v733
    %v3462 = vunpack.c.l.b16 %v734
    %v3463 = vunpack.c.h.b16 %v734
    %v3464 = vunpack.c.l.b16 %v735
    %v3465 = vunpack.c.h.b16 %v735
    %v3466 = vunpack.c.l.b16 %v736
    %v3467 = vunpack.c.h.b16 %v736
    %v3468 = vunpack.c.l.b16 %v737
    %v3469 = vunpack.c.h.b16 %v737
    %v3470 = vunpack.c.l.b16 %v738
    %v3471 = vunpack.c.h.b16 %v738
    %v3472 = vunpack.c.l.b16 %v739
    %v3473 = vunpack.c.h.b16 %v739
    %v3474 = vunpack.c.l.b16 %v740
    %v3475 = vunpack.c.h.b16 %v740
    %v3476 = vunpack.c.l.b16 %v741
    %v3477 = vunpack.c.h.b16 %v741
    %v3478 = vunpack.c.l.b16 %v742
    %v3479 = vunpack.c.h.b16 %v742
    %v3480 = vunpack.c.l.b16 %v743
    %v3481 = vunpack.c.h.b16 %v743
    %v3482 = vunpack.c.l.b16 %v744
    %v3483 = vunpack.c.h.b16 %v744
    %v3484 = vunpack.c.l.b16 %v745
    %v3485 = vunpack.c.h.b16 %v745
    %v3486 = vunpack.c.l.b16 %v746
    %v3487 = vunpack.c.h.b16 %v746
    %v3488 = vunpack.c.l.b16 %v747
    %v3489 = vunpack.c.h.b16 %v747
    %v3490 = vunpack.c.l.b16 %v748
    %v3491 = vunpack.c.h.b16 %v748
    %v3492 = vunpack.c.l.b16 %v749
    %v3493 = vunpack.c.h.b16 %v749
    %v3494 = vunpack.c.l.b16 %v750
    %v3495 = vunpack.c.h.b16 %v750
    %v3496 = vunpack.c.l.b16 %v751
    %v3497 = vunpack.c.h.b16 %v751
    %v3498 = vunpack.c.l.b16 %v752
    %v3499 = vunpack.c.h.b16 %v752
    %v3500 = vunpack.c.l.b16 %v753
    %v3501 = vunpack.c.h.b16 %v753
    %v3502 = vunpack.c.l.b16 %v754
    %v3503 = vunpack.c.h.b16 %v754
    %v3504 = vunpack.c.l.b16 %v755
    %v3505 = vunpack.c.h.b16 %v755
    %v3506 = vunpack.c.l.b16 %v756
    %v3507 = vunpack.c.h.b16 %v756
    %v3508 = vunpack.c.l.b16 %v757
    %v3509 = vunpack.c.h.b16 %v757
    %v3510 = vunpack.c.l.b16 %v758
    %v3511 = vunpack.c.h.b16 %v758
    %v3512 = vunpack.c.l.b16 %v759
    %v3513 = vunpack.c.h.b16 %v759
    %v3514 = vunpack.c.l.b16 %v760
    %v3515 = vunpack.c.h.b16 %v760
    %v3516 = vunpack.c.l.b16 %v761
    %v3517 = vunpack.c.h.b16 %v761
    %v3518 = vunpack.c.l.b16 %v762
    %v3519 = vunpack.c.h.b16 %v762
    %v3520 = vunpack.c.l.b16 %v763
    %v3521 = vunpack.c.h.b16 %v763
    %v3522 = vunpack.c.l.b16 %v764
    %v3523 = vunpack.c.h.b16 %v764
    %v3524 = vunpack.c.l.b16 %v765
    %v3525 = vunpack.c.h.b16 %v765
    %v3526 = vunpack.c.l.b16 %v766
    %v3527 = vunpack.c.h.b16 %v766
    %v3528 = vunpack.c.l.b16 %v767
    %v3529 = vunpack.c.h.b16 %v767
    %v3530 = vunpack.c.l.b16 %v768
    %v3531 = vunpack.c.h.b16 %v768
    %v3532 = vunpack.c.l.b16 %v769
    %v3533 = vunpack.c.h.b16 %v769
    %v3534 = vunpack.c.l.b16 %v770
    %v3535 = vunpack.c.h.b16 %v770
    %v3536 = vunpack.c.l.b16 %v771
    %v3537 = vunpack.c.h.b16 %v771
    %v3538 = vunpack.c.l.b16 %v772
    %v3539 = vunpack.c.h.b16 %v772
    %v3540 = vunpack.c.l.b16 %v773
    %v3541 = vunpack.c.h.b16 %v773
    %v3542 = vunpack.c.l.b16 %v774
    %v3543 = vunpack.c.h.b16 %v774
    %v3544 = vunpack.c.l.b16 %v775
    %v3545 = vunpack.c.h.b16 %v775
    %v3546 = vunpack.c.l.b16 %v776
    %v3547 = vunpack.c.h.b16 %v776
    %v3548 = vunpack.c.l.b16 %v777
    %v3549 = vunpack.c.h.b16 %v777
    %v3550 = vunpack.c.l.b16 %v778
    %v3551 = vunpack.c.h.b16 %v778
    %v3552 = vunpack.c.l.b16 %v779
    %v3553 = vunpack.c.h.b16 %v779
    %v3554 = vunpack.c.l.b16 %v780
    %v3555 = vunpack.c.h.b16 %v780
    %v3556 = vunpack.c.l.b16 %v781
    %v3557 = vunpack.c.h.b16 %v781
    %v3558 = vunpack.c.l.b16 %v782
    %v3559 = vunpack.c.h.b16 %v782
    %v3560 = vunpack.c.l.b16 %v783
    %v3561 = vunpack.c.h.b16 %v783
    %v3562 = vunpack.c.l.b16 %v784
    %v3563 = vunpack.c.h.b16 %v784
    %v3564 = vunpack.c.l.b16 %v785
    %v3565 = vunpack.c.h.b16 %v785
    %v3566 = vunpack.c.l.b16 %v786
    %v3567 = vunpack.c.h.b16 %v786
    %v3568 = vunpack.c.l.b16 %v787
    %v3569 = vunpack.c.h.b16 %v787
    %v3570 = vunpack.c.l.b16 %v788
    %v3571 = vunpack.c.h.b16 %v788
    %v3572 = vunpack.c.l.b16 %v789
    %v3573 = vunpack.c.h.b16 %v789
    %v3574 = vunpack.c.l.b16 %v790
    %v3575 = vunpack.c.h.b16 %v790
    %v3576 = vunpack.c.l.b16 %v791
    %v3577 = vunpack.c.h.b16 %v791
    %v3578 = vunpack.c.l.b16 %v792
    %v3579 = vunpack.c.h.b16 %v792
    %v3580 = vunpack.c.l.b16 %v793
    %v3581 = vunpack.c.h.b16 %v793
    %v3582 = vunpack.c.l.b16 %v794
    %v3583 = vunpack.c.h.b16 %v794
    %v3584 = vunpack.c.l.b16 %v795
    %v3585 = vunpack.c.h.b16 %v795
    %v3586 = vunpack.c.l.b16 %v796
    %v3587 = vunpack.c.h.b16 %v796
    %v3588 = vunpack.c.l.b16 %v797
    %v3589 = vunpack.c.h.b16 %v797
    %v3590 = vunpack.c.l.b16 %v798
    %v3591 = vunpack.c.h.b16 %v798
    %v3592 = vunpack.c.l.b16 %v799
    %v3593 = vunpack.c.h.b16 %v799
    %v3594 = vunpack.c.l.b16 %v800
    %v3595 = vunpack.c.h.b16 %v800
    %v3596 = vunpack.c.l.b16 %v801
    %v3597 = vunpack.c.h.b16 %v801
    %v3598 = vunpack.c.l.b16 %v802
    %v3599 = vunpack.c.h.b16 %v802
    %v3600 = vunpack.c.l.b16 %v803
    %v3601 = vunpack.c.h.b16 %v803
    %v3602 = vunpack.c.l.b16 %v804
    %v3603 = vunpack.c.h.b16 %v804
    %v3604 = vunpack.c.l.b16 %v805
    %v3605 = vunpack.c.h.b16 %v805
    %v3606 = vunpack.c.l.b16 %v806
    %v3607 = vunpack.c.h.b16 %v806
    %v3608 = vunpack.c.l.b16 %v807
    %v3609 = vunpack.c.h.b16 %v807
    %v3610 = vunpack.c.l.b16 %v808
    %v3611 = vunpack.c.h.b16 %v808
    %v3612 = vunpack.c.l.b16 %v809
    %v3613 = vunpack.c.h.b16 %v809
    %v3614 = vunpack.c.l.b16 %v810
    %v3615 = vunpack.c.h.b16 %v810
    %v3616 = vunpack.c.l.b16 %v811
    %v3617 = vunpack.c.h.b16 %v811
    %v3618 = vunpack.c.l.b16 %v812
    %v3619 = vunpack.c.h.b16 %v812
    %v3620 = vunpack.c.l.b16 %v813
    %v3621 = vunpack.c.h.b16 %v813
    %v3622 = vunpack.c.l.b16 %v814
    %v3623 = vunpack.c.h.b16 %v814
    %v3624 = vunpack.c.l.b16 %v815
    %v3625 = vunpack.c.h.b16 %v815
    %v3626 = vunpack.c.l.b16 %v816
    %v3627 = vunpack.c.h.b16 %v816
    %v3628 = vunpack.c.l.b16 %v817
    %v3629 = vunpack.c.h.b16 %v817
    %v3630 = vunpack.c.l.b16 %v818
    %v3631 = vunpack.c.h.b16 %v818
    %v3632 = vunpack.c.l.b16 %v819
    %v3633 = vunpack.c.h.b16 %v819
    %v3634 = vunpack.c.l.b16 %v820
    %v3635 = vunpack.c.h.b16 %v820
    %v3636 = vunpack.c.l.b16 %v821
    %v3637 = vunpack.c.h.b16 %v821
    %v3638 = vunpack.c.l.b16 %v822
    %v3639 = vunpack.c.h.b16 %v822
    %v3640 = vunpack.c.l.b16 %v823
    %v3641 = vunpack.c.h.b16 %v823
    %v3642 = vunpack.c.l.b16 %v824
    %v3643 = vunpack.c.h.b16 %v824
    %v3644 = vunpack.c.l.b16 %v825
    %v3645 = vunpack.c.h.b16 %v825
    %v3646 = vunpack.c.l.b16 %v826
    %v3647 = vunpack.c.h.b16 %v826
    %v3648 = vunpack.c.l.b16 %v827
    %v3649 = vunpack.c.h.b16 %v827
    %v3650 = vunpack.c.l.b16 %v828
    %v3651 = vunpack.c.h.b16 %v828
    %v3652 = vunpack.c.l.b16 %v829
    %v3653 = vunpack.c.h.b16 %v829
    %v3654 = vunpack.c.l.b16 %v830
    %v3655 = vunpack.c.h.b16 %v830
    %v3656 = vunpack.c.l.b16 %v831
    %v3657 = vunpack.c.h.b16 %v831
    %v3658 = vunpack.c.l.b16 %v832
    %v3659 = vunpack.c.h.b16 %v832
    %v3660 = vunpack.c.l.b16 %v833
    %v3661 = vunpack.c.h.b16 %v833
    %v3662 = vunpack.c.l.b16 %v834
    %v3663 = vunpack.c.h.b16 %v834
    %v3664 = vunpack.c.l.b16 %v835
    %v3665 = vunpack.c.h.b16 %v835
    %v3666 = vunpack.c.l.b16 %v836
    %v3667 = vunpack.c.h.b16 %v836
    %v3668 = vunpack.c.l.b16 %v837
    %v3669 = vunpack.c.h.b16 %v837
    %v3670 = vunpack.c.l.b16 %v838
    %v3671 = vunpack.c.h.b16 %v838
    %v3672 = vunpack.c.l.b16 %v839
    %v3673 = vunpack.c.h.b16 %v839
    %v3674 = vunpack.c.l.b16 %v840
    %v3675 = vunpack.c.h.b16 %v840
    %v3676 = vunpack.c.l.b16 %v841
    %v3677 = vunpack.c.h.b16 %v841
    %v3678 = vunpack.c.l.b16 %v842
    %v3679 = vunpack.c.h.b16 %v842
    %v3680 = vunpack.c.l.b16 %v843
    %v3681 = vunpack.c.h.b16 %v843
    %v3682 = vunpack.c.l.b16 %v844
    %v3683 = vunpack.c.h.b16 %v844
    %v3684 = vunpack.c.l.b16 %v845
    %v3685 = vunpack.c.h.b16 %v845
    %v3686 = vunpack.c.l.b16 %v846
    %v3687 = vunpack.c.h.b16 %v846
    %v3688 = vunpack.c.l.b16 %v847
    %v3689 = vunpack.c.h.b16 %v847
    %v3690 = vunpack.c.l.b16 %v848
    %v3691 = vunpack.c.h.b16 %v848
    %v3692 = vunpack.c.l.b16 %v849
    %v3693 = vunpack.c.h.b16 %v849
    %v3694 = vunpack.c.l.b16 %v850
    %v3695 = vunpack.c.h.b16 %v850
    %v3696 = vunpack.c.l.b16 %v851
    %v3697 = vunpack.c.h.b16 %v851
    %v3698 = vunpack.c.l.b16 %v852
    %v3699 = vunpack.c.h.b16 %v852
    %v3700 = vunpack.c.l.b16 %v853
    %v3701 = vunpack.c.h.b16 %v853
    %v3702 = vunpack.c.l.b16 %v854
    %v3703 = vunpack.c.h.b16 %v854
    %v3704 = vunpack.c.l.b16 %v855
    %v3705 = vunpack.c.h.b16 %v855
    %v3706 = vunpack.c.l.b16 %v856
    %v3707 = vunpack.c.h.b16 %v856
    %v3708 = vunpack.c.l.b16 %v857
    %v3709 = vunpack.c.h.b16 %v857
    %v3710 = vunpack.c.l.b16 %v858
    %v3711 = vunpack.c.h.b16 %v858
    %v3712 = vunpack.c.l.b16 %v859
    %v3713 = vunpack.c.h.b16 %v859
    %v3714 = vunpack.c.l.b16 %v860
    %v3715 = vunpack.c.h.b16 %v860
    %v3716 = vunpack.c.l.b16 %v861
    %v3717 = vunpack.c.h.b16 %v861
    %v3718 = vunpack.c.l.b16 %v862
    %v3719 = vunpack.c.h.b16 %v862
    %v3720 = vunpack.c.l.b16 %v863
    %v3721 = vunpack.c.h.b16 %v863
    %v3722 = vunpack.c.l.b16 %v864
    %v3723 = vunpack.c.h.b16 %v864
    %v3724 = vunpack.c.l.b16 %v865
    %v3725 = vunpack.c.h.b16 %v865
    %v3726 = vunpack.c.l.b16 %v866
    %v3727 = vunpack.c.h.b16 %v866
    %v3728 = vunpack.c.l.b16 %v867
    %v3729 = vunpack.c.h.b16 %v867
    %v3730 = vunpack.c.l.b16 %v868
    %v3731 = vunpack.c.h.b16 %v868
    %v3732 = vunpack.c.l.b16 %v869
    %v3733 = vunpack.c.h.b16 %v869
    %v3734 = vunpack.c.l.b16 %v870
    %v3735 = vunpack.c.h.b16 %v870
    %v3736 = vunpack.c.l.b16 %v871
    %v3737 = vunpack.c.h.b16 %v871
    %v3738 = vunpack.c.l.b16 %v872
    %v3739 = vunpack.c.h.b16 %v872
    %v3740 = vunpack.c.l.b16 %v873
    %v3741 = vunpack.c.h.b16 %v873
    %v3742 = vunpack.c.l.b16 %v874
    %v3743 = vunpack.c.h.b16 %v874
    %v3744 = vunpack.c.l.b16 %v875
    %v3745 = vunpack.c.h.b16 %v875
    %v3746 = vunpack.c.l.b16 %v876
    %v3747 = vunpack.c.h.b16 %v876
    %v3748 = vunpack.c.l.b16 %v877
    %v3749 = vunpack.c.h.b16 %v877
    %v3750 = vunpack.c.l.b16 %v878
    %v3751 = vunpack.c.h.b16 %v878
    %v3752 = vunpack.c.l.b16 %v879
    %v3753 = vunpack.c.h.b16 %v879
    %v3754 = vunpack.c.l.b16 %v880
    %v3755 = vunpack.c.h.b16 %v880
    %v3756 = vunpack.c.l.b16 %v881
    %v3757 = vunpack.c.h.b16 %v881
    %v3758 = vunpack.c.l.b16 %v882
    %v3759 = vunpack.c.h.b16 %v882
    %v3760 = vunpack.c.l.b16 %v883
    %v3761 = vunpack.c.h.b16 %v883
    %v3762 = vunpack.c.l.b16 %v884
    %v3763 = vunpack.c.h.b16 %v884
    %v3764 = vunpack.c.l.b16 %v885
    %v3765 = vunpack.c.h.b16 %v885
    %v3766 = vunpack.c.l.b16 %v886
    %v3767 = vunpack.c.h.b16 %v886
    %v3768 = vunpack.c.l.b16 %v887
    %v3769 = vunpack.c.h.b16 %v887
    %v3770 = vunpack.c.l.b16 %v888
    %v3771 = vunpack.c.h.b16 %v888
    %v3772 = vunpack.c.l.b16 %v889
    %v3773 = vunpack.c.h.b16 %v889
    %v3774 = vunpack.c.l.b16 %v890
    %v3775 = vunpack.c.h.b16 %v890
    %v3776 = vunpack.c.l.b16 %v891
    %v3777 = vunpack.c.h.b16 %v891
    %v3778 = vunpack.c.l.b16 %v892
    %v3779 = vunpack.c.h.b16 %v892
    %v3780 = vunpack.c.l.b16 %v893
    %v3781 = vunpack.c.h.b16 %v893
    %v3782 = vunpack.c.l.b16 %v894
    %v3783 = vunpack.c.h.b16 %v894
    %v3784 = vunpack.c.l.b16 %v895
    %v3785 = vunpack.c.h.b16 %v895
    %v3786 = vunpack.c.l.b16 %v896
    %v3787 = vunpack.c.h.b16 %v896
    %v3788 = vunpack.c.l.b16 %v897
    %v3789 = vunpack.c.h.b16 %v897
    %v3790 = vunpack.c.l.b16 %v898
    %v3791 = vunpack.c.h.b16 %v898
    %v3792 = vunpack.c.l.b16 %v899
    %v3793 = vunpack.c.h.b16 %v899
    %v3794 = vunpack.c.l.b16 %v900
    %v3795 = vunpack.c.h.b16 %v900
    %v3796 = vunpack.c.l.b16 %v901
    %v3797 = vunpack.c.h.b16 %v901
    %v3798 = vunpack.c.l.b16 %v902
    %v3799 = vunpack.c.h.b16 %v902
    %v3800 = vunpack.c.l.b16 %v903
    %v3801 = vunpack.c.h.b16 %v903
    %v3802 = vunpack.c.l.b16 %v904
    %v3803 = vunpack.c.h.b16 %v904
    %v3804 = vunpack.c.l.b16 %v905
    %v3805 = vunpack.c.h.b16 %v905
    %v3806 = vunpack.c.l.b16 %v906
    %v3807 = vunpack.c.h.b16 %v906
    %v3808 = vunpack.c.l.b16 %v907
    %v3809 = vunpack.c.h.b16 %v907
    %v3810 = vunpack.c.l.b16 %v908
    %v3811 = vunpack.c.h.b16 %v908
    %v3812 = vpack.c.b16 %v3290, %v3272
    %v3813 = vpack.c.b16 %v3291, %v3273
    %v3814 = vpack.c.b16 %v3292, %v3274
    %v3815 = vpack.c.b16 %v3293, %v3275
    %v3816 = vpack.c.b16 %v3294, %v3276
    %v3817 = vpack.c.b16 %v3295, %v3277
    %v3818 = vpack.c.b16 %v3296, %v3278
    %v3819 = vpack.c.b16 %v3297, %v3279
    %v3820 = vpack.c.b16 %v3298, %v3280
    %v3821 = vpack.c.b16 %v3299, %v3281
    %v3822 = vpack.c.b16 %v3300, %v3282
    %v3823 = vpack.c.b16 %v3301, %v3283
    %v3824 = vpack.c.b16 %v3302, %v3284
    %v3825 = vpack.c.b16 %v3303, %v3285
    %v3826 = vpack.c.b16 %v3304, %v3286
    %v3827 = vpack.c.b16 %v3305, %v3287
    %v3828 = vpack.c.b16 %v3306, %v3288
    %v3829 = vpack.c.b16 %v3307, %v3289
    %v3830 = vpack.c.b16 %v3326, %v3308
    %v3831 = vpack.c.b16 %v3327, %v3309
    %v3832 = vpack.c.b16 %v3328, %v3310
    %v3833 = vpack.c.b16 %v3329, %v3311
    %v3834 = vpack.c.b16 %v3330, %v3312
    %v3835 = vpack.c.b16 %v3331, %v3313
    %v3836 = vpack.c.b16 %v3332, %v3314
    %v3837 = vpack.c.b16 %v3333, %v3315
    %v3838 = vpack.c.b16 %v3334, %v3316
    %v3839 = vpack.c.b16 %v3335, %v3317
    %v3840 = vpack.c.b16 %v3336, %v3318
    %v3841 = vpack.c.b16 %v3337, %v3319
    %v3842 = vpack.c.b16 %v3338, %v3320
    %v3843 = vpack.c.b16 %v3339, %v3321
    %v3844 = vpack.c.b16 %v3340, %v3322
    %v3845 = vpack.c.b16 %v3341, %v3323
    %v3846 = vpack.c.b16 %v3342, %v3324
    %v3847 = vpack.c.b16 %v3343, %v3325
    %v3848 = vpack.c.b16 %v3362, %v3344
    %v3849 = vpack.c.b16 %v3363, %v3345
    %v3850 = vpack.c.b16 %v3364, %v3346
    %v3851 = vpack.c.b16 %v3365, %v3347
    %v3852 = vpack.c.b16 %v3366, %v3348
    %v3853 = vpack.c.b16 %v3367, %v3349
    %v3854 = vpack.c.b16 %v3368, %v3350
    %v3855 = vpack.c.b16 %v3369, %v3351
    %v3856 = vpack.c.b16 %v3370, %v3352
    %v3857 = vpack.c.b16 %v3371, %v3353
    %v3858 = vpack.c.b16 %v3372, %v3354
    %v3859 = vpack.c.b16 %v3373, %v3355
    %v3860 = vpack.c.b16 %v3374, %v3356
    %v3861 = vpack.c.b16 %v3375, %v3357
    %v3862 = vpack.c.b16 %v3376, %v3358
    %v3863 = vpack.c.b16 %v3377, %v3359
    %v3864 = vpack.c.b16 %v3378, %v3360
    %v3865 = vpack.c.b16 %v3379, %v3361
    %v3866 = vpack.c.b16 %v3398, %v3380
    %v3867 = vpack.c.b16 %v3399, %v3381
    %v3868 = vpack.c.b16 %v3400, %v3382
    %v3869 = vpack.c.b16 %v3401, %v3383
    %v3870 = vpack.c.b16 %v3402, %v3384
    %v3871 = vpack.c.b16 %v3403, %v3385
    %v3872 = vpack.c.b16 %v3404, %v3386
    %v3873 = vpack.c.b16 %v3405, %v3387
    %v3874 = vpack.c.b16 %v3406, %v3388
    %v3875 = vpack.c.b16 %v3407, %v3389
    %v3876 = vpack.c.b16 %v3408, %v3390
    %v3877 = vpack.c.b16 %v3409, %v3391
    %v3878 = vpack.c.b16 %v3410, %v3392
    %v3879 = vpack.c.b16 %v3411, %v3393
    %v3880 = vpack.c.b16 %v3412, %v3394
    %v3881 = vpack.c.b16 %v3413, %v3395
    %v3882 = vpack.c.b16 %v3414, %v3396
    %v3883 = vpack.c.b16 %v3415, %v3397
    %v3884 = vpack.c.b16 %v3434, %v3416
    %v3885 = vpack.c.b16 %v3435, %v3417
    %v3886 = vpack.c.b16 %v3436, %v3418
    %v3887 = vpack.c.b16 %v3437, %v3419
    %v3888 = vpack.c.b16 %v3438, %v3420
    %v3889 = vpack.c.b16 %v3439, %v3421
    %v3890 = vpack.c.b16 %v3440, %v3422
    %v3891 = vpack.c.b16 %v3441, %v3423
    %v3892 = vpack.c.b16 %v3442, %v3424
    %v3893 = vpack.c.b16 %v3443, %v3425
    %v3894 = vpack.c.b16 %v3444, %v3426
    %v3895 = vpack.c.b16 %v3445, %v3427
    %v3896 = vpack.c.b16 %v3446, %v3428
    %v3897 = vpack.c.b16 %v3447, %v3429
    %v3898 = vpack.c.b16 %v3448, %v3430
    %v3899 = vpack.c.b16 %v3449, %v3431
    %v3900 = vpack.c.b16 %v3450, %v3432
    %v3901 = vpack.c.b16 %v3451, %v3433
    %v3902 = vpack.c.b16 %v3470, %v3452
    %v3903 = vpack.c.b16 %v3471, %v3453
    %v3904 = vpack.c.b16 %v3472, %v3454
    %v3905 = vpack.c.b16 %v3473, %v3455
    %v3906 = vpack.c.b16 %v3474, %v3456
    %v3907 = vpack.c.b16 %v3475, %v3457
    %v3908 = vpack.c.b16 %v3476, %v3458
    %v3909 = vpack.c.b16 %v3477, %v3459
    %v3910 = vpack.c.b16 %v3478, %v3460
    %v3911 = vpack.c.b16 %v3479, %v3461
    %v3912 = vpack.c.b16 %v3480, %v3462
    %v3913 = vpack.c.b16 %v3481, %v3463
    %v3914 = vpack.c.b16 %v3482, %v3464
    %v3915 = vpack.c.b16 %v3483, %v3465
    %v3916 = vpack.c.b16 %v3484, %v3466
    %v3917 = vpack.c.b16 %v3485, %v3467
    %v3918 = vpack.c.b16 %v3486, %v3468
    %v3919 = vpack.c.b16 %v3487, %v3469
    %v3920 = vpack.c.b16 %v3506, %v3488
    %v3921 = vpack.c.b16 %v3507, %v3489
    %v3922 = vpack.c.b16 %v3508, %v3490
    %v3923 = vpack.c.b16 %v3509, %v3491
    %v3924 = vpack.c.b16 %v3510, %v3492
    %v3925 = vpack.c.b16 %v3511, %v3493
    %v3926 = vpack.c.b16 %v3512, %v3494
    %v3927 = vpack.c.b16 %v3513, %v3495
    %v3928 = vpack.c.b16 %v3514, %v3496
    %v3929 = vpack.c.b16 %v3515, %v3497
    %v3930 = vpack.c.b16 %v3516, %v3498
    %v3931 = vpack.c.b16 %v3517, %v3499
    %v3932 = vpack.c.b16 %v3518, %v3500
    %v3933 = vpack.c.b16 %v3519, %v3501
    %v3934 = vpack.c.b16 %v3520, %v3502
    %v3935 = vpack.c.b16 %v3521, %v3503
    %v3936 = vpack.c.b16 %v3522, %v3504
    %v3937 = vpack.c.b16 %v3523, %v3505
    %v3938 = vpack.c.b16 %v3542, %v3524
    %v3939 = vpack.c.b16 %v3543, %v3525
    %v3940 = vpack.c.b16 %v3544, %v3526
    %v3941 = vpack.c.b16 %v3545, %v3527
    %v3942 = vpack.c.b16 %v3546, %v3528
    %v3943 = vpack.c.b16 %v3547, %v3529
    %v3944 = vpack.c.b16 %v3548, %v3530
    %v3945 = vpack.c.b16 %v3549, %v3531
    %v3946 = vpack.c.b16 %v3550, %v3532
    %v3947 = vpack.c.b16 %v3551, %v3533
    %v3948 = vpack.c.b16 %v3552, %v3534
    %v3949 = vpack.c.b16 %v3553, %v3535
    %v3950 = vpack.c.b16 %v3554, %v3536
    %v3951 = vpack.c.b16 %v3555, %v3537
    %v3952 = vpack.c.b16 %v3556, %v3538
    %v3953 = vpack.c.b16 %v3557, %v3539
    %v3954 = vpack.c.b16 %v3558, %v3540
    %v3955 = vpack.c.b16 %v3559, %v3541
    %v3956 = vpack.c.b16 %v3578, %v3560
    %v3957 = vpack.c.b16 %v3579, %v3561
    %v3958 = vpack.c.b16 %v3580, %v3562
    %v3959 = vpack.c.b16 %v3581, %v3563
    %v3960 = vpack.c.b16 %v3582, %v3564
    %v3961 = vpack.c.b16 %v3583, %v3565
    %v3962 = vpack.c.b16 %v3584, %v3566
    %v3963 = vpack.c.b16 %v3585, %v3567
    %v3964 = vpack.c.b16 %v3586, %v3568
    %v3965 = vpack.c.b16 %v3587, %v3569
    %v3966 = vpack.c.b16 %v3588, %v3570
    %v3967 = vpack.c.b16 %v3589, %v3571
    %v3968 = vpack.c.b16 %v3590, %v3572
    %v3969 = vpack.c.b16 %v3591, %v3573
    %v3970 = vpack.c.b16 %v3592, %v3574
    %v3971 = vpack.c.b16 %v3593, %v3575
    %v3972 = vpack.c.b16 %v3594, %v3576
    %v3973 = vpack.c.b16 %v3595, %v3577
    %v3974 = vpack.c.b16 %v3614, %v3596
    %v3975 = vpack.c.b16 %v3615, %v3597
    %v3976 = vpack.c.b16 %v3616, %v3598
    %v3977 = vpack.c.b16 %v3617, %v3599
    %v3978 = vpack.c.b16 %v3618, %v3600
    %v3979 = vpack.c.b16 %v3619, %v3601
    %v3980 = vpack.c.b16 %v3620, %v3602
    %v3981 = vpack.c.b16 %v3621, %v3603
    %v3982 = vpack.c.b16 %v3622, %v3604
    %v3983 = vpack.c.b16 %v3623, %v3605
    %v3984 = vpack.c.b16 %v3624, %v3606
    %v3985 = vpack.c.b16 %v3625, %v3607
    %v3986 = vpack.c.b16 %v3626, %v3608
    %v3987 = vpack.c.b16 %v3627, %v3609
    %v3988 = vpack.c.b16 %v3628, %v3610
    %v3989 = vpack.c.b16 %v3629, %v3611
    %v3990 = vpack.c.b16 %v3630, %v3612
    %v3991 = vpack.c.b16 %v3631, %v3613
    %v3992 = vpack.c.b16 %v3650, %v3632
    %v3993 = vpack.c.b16 %v3651, %v3633
    %v3994 = vpack.c.b16 %v3652, %v3634
    %v3995 = vpack.c.b16 %v3653, %v3635
    %v3996 = vpack.c.b16 %v3654, %v3636
    %v3997 = vpack.c.b16 %v3655, %v3637
    %v3998 = vpack.c.b16 %v3656, %v3638
    %v3999 = vpack.c.b16 %v3657, %v3639
    %v4000 = vpack.c.b16 %v3658, %v3640
    %v4001 = vpack.c.b16 %v3659, %v3641
    %v4002 = vpack.c.b16 %v3660, %v3642
    %v4003 = vpack.c.b16 %v3661, %v3643
    %v4004 = vpack.c.b16 %v3662, %v3644
    %v4005 = vpack.c.b16 %v3663, %v3645
    %v4006 = vpack.c.b16 %v3664, %v3646
    %v4007 = vpack.c.b16 %v3665, %v3647
    %v4008 = vpack.c.b16 %v3666, %v3648
    %v4009 = vpack.c.b16 %v3667, %v3649
    %v4010 = vpack.c.b16 %v3686, %v3668
    %v4011 = vpack.c.b16 %v3687, %v3669
    %v4012 = vpack.c.b16 %v3688, %v3670
    %v4013 = vpack.c.b16 %v3689, %v3671
    %v4014 = vpack.c.b16 %v3690, %v3672
    %v4015 = vpack.c.b16 %v3691, %v3673
    %v4016 = vpack.c.b16 %v3692, %v3674
    %v4017 = vpack.c.b16 %v3693, %v3675
    %v4018 = vpack.c.b16 %v3694, %v3676
    %v4019 = vpack.c.b16 %v3695, %v3677
    %v4020 = vpack.c.b16 %v3696, %v3678
    %v4021 = vpack.c.b16 %v3697, %v3679
    %v4022 = vpack.c.b16 %v3698, %v3680
    %v4023 = vpack.c.b16 %v3699, %v3681
    %v4024 = vpack.c.b16 %v3700, %v3682
    %v4025 = vpack.c.b16 %v3701, %v3683
    %v4026 = vpack.c.b16 %v3702, %v3684
    %v4027 = vpack.c.b16 %v3703, %v3685
    %v4028 = vpack.c.b16 %v3722, %v3704
    %v4029 = vpack.c.b16 %v3723, %v3705
    %v4030 = vpack.c.b16 %v3724, %v3706
    %v4031 = vpack.c.b16 %v3725, %v3707
    %v4032 = vpack.c.b16 %v3726, %v3708
    %v4033 = vpack.c.b16 %v3727, %v3709
    %v4034 = vpack.c.b16 %v3728, %v3710
    %v4035 = vpack.c.b16 %v3729, %v3711
    %v4036 = vpack.c.b16 %v3730, %v3712
    %v4037 = vpack.c.b16 %v3731, %v3713
    %v4038 = vpack.c.b16 %v3732, %v3714
    %v4039 = vpack.c.b16 %v3733, %v3715
    %v4040 = vpack.c.b16 %v3734, %v3716
    %v4041 = vpack.c.b16 %v3735, %v3717
    %v4042 = vpack.c.b16 %v3736, %v3718
    %v4043 = vpack.c.b16 %v3737, %v3719
    %v4044 = vpack.c.b16 %v3738, %v3720
    %v4045 = vpack.c.b16 %v3739, %v3721
    %v4046 = vpack.c.b16 %v3758, %v3740
    %v4047 = vpack.c.b16 %v3759, %v3741
    %v4048 = vpack.c.b16 %v3760, %v3742
    %v4049 = vpack.c.b16 %v3761, %v3743
    %v4050 = vpack.c.b16 %v3762, %v3744
    %v4051 = vpack.c.b16 %v3763, %v3745
    %v4052 = vpack.c.b16 %v3764, %v3746
    %v4053 = vpack.c.b16 %v3765, %v3747
    %v4054 = vpack.c.b16 %v3766, %v3748
    %v4055 = vpack.c.b16 %v3767, %v3749
    %v4056 = vpack.c.b16 %v3768, %v3750
    %v4057 = vpack.c.b16 %v3769, %v3751
    %v4058 = vpack.c.b16 %v3770, %v3752
    %v4059 = vpack.c.b16 %v3771, %v3753
    %v4060 = vpack.c.b16 %v3772, %v3754
    %v4061 = vpack.c.b16 %v3773, %v3755
    %v4062 = vpack.c.b16 %v3774, %v3756
    %v4063 = vpack.c.b16 %v3775, %v3757
    %v4064 = vpack.c.b16 %v3794, %v3776
    %v4065 = vpack.c.b16 %v3795, %v3777
    %v4066 = vpack.c.b16 %v3796, %v3778
    %v4067 = vpack.c.b16 %v3797, %v3779
    %v4068 = vpack.c.b16 %v3798, %v3780
    %v4069 = vpack.c.b16 %v3799, %v3781
    %v4070 = vpack.c.b16 %v3800, %v3782
    %v4071 = vpack.c.b16 %v3801, %v3783
    %v4072 = vpack.c.b16 %v3802, %v3784
    %v4073 = vpack.c.b16 %v3803, %v3785
    %v4074 = vpack.c.b16 %v3804, %v3786
    %v4075 = vpack.c.b16 %v3805, %v3787
    %v4076 = vpack.c.b16 %v3806, %v3788
    %v4077 = vpack.c.b16 %v3807, %v3789
    %v4078 = vpack.c.b16 %v3808, %v3790
    %v4079 = vpack.c.b16 %v3809, %v3791
    %v4080 = vpack.c.b16 %v3810, %v3792
    %v4081 = vpack.c.b16 %v3811, %v3793
    %v4353 = vsel %vm332, %v638, 0
    %4355 = vmatpush.bf16.msra.mxu0 %v3938
    %4356 = vmatpush.bf16.msra.mxu0 %v3920
    %4357 = vmatpush.bf16.msra.mxu0 %v3902
    %4358 = vmatpush.bf16.msra.mxu0 %v3884
    %4359 = vmatpush.bf16.msra.mxu0 %v3866
    %4360 = vmatpush.bf16.msra.mxu0 %v3848
    %4361 = vmatpush.bf16.msra.mxu0 %v3830
    %4362 = vmatpush.bf16.msra.mxu0 %v3812
    %4363 = vmatmul.bf16.gmra.mxu0 %v637
    %v4364 = vpop.f32.mrf.mxu0
    %v4365 = vadd.f32 %v2557, %v4364
    %v4366 = vpop.f32.mrf.mxu0
    %4367 = vdwg.mxu0
    %4368 = vmatpush.bf16.msra.mxu0 0
    %4369 = vmatpush.bf16.msra.mxu0 %v4064
    %4370 = vmatpush.bf16.msra.mxu0 %v4046
    %4371 = vmatpush.bf16.msra.mxu0 %v4028
    %4372 = vmatpush.bf16.msra.mxu0 %v4010
    %4373 = vmatpush.bf16.msra.mxu0 %v3992
    %4374 = vmatpush.bf16.msra.mxu0 %v3974
    %4375 = vmatpush.bf16.msra.mxu0 %v3956
    %4376 = vmatmul.bf16.gmra.mxu0 %v4353
    %v4377 = vpop.f32.mrf.mxu0
    %v4378 = vadd.f32 %v4365, %v4377
    %v4379 = vpop.f32.mrf.mxu0
    %4380 = vdwg.mxu0
    %4381 = vmatpush.bf16.msra.mxu0 %v3939
    %4382 = vmatpush.bf16.msra.mxu0 %v3921
    %4383 = vmatpush.bf16.msra.mxu0 %v3903
    %4384 = vmatpush.bf16.msra.mxu0 %v3885
    %4385 = vmatpush.bf16.msra.mxu0 %v3867
    %4386 = vmatpush.bf16.msra.mxu0 %v3849
    %4387 = vmatpush.bf16.msra.mxu0 %v3831
    %4388 = vmatpush.bf16.msra.mxu0 %v3813
    %4389 = vmatmul.bf16.gmra.mxu0 %v637
    %v4390 = vpop.f32.mrf.mxu0
    %v4391 = vadd.f32 %v2583, %v4390
    %v4392 = vpop.f32.mrf.mxu0
    %4393 = vdwg.mxu0
    %4394 = vmatpush.bf16.msra.mxu0 0
    %4395 = vmatpush.bf16.msra.mxu0 %v4065
    %4396 = vmatpush.bf16.msra.mxu0 %v4047
    %4397 = vmatpush.bf16.msra.mxu0 %v4029
    %4398 = vmatpush.bf16.msra.mxu0 %v4011
    %4399 = vmatpush.bf16.msra.mxu0 %v3993
    %4400 = vmatpush.bf16.msra.mxu0 %v3975
    %4401 = vmatpush.bf16.msra.mxu0 %v3957
    %4402 = vmatmul.bf16.gmra.mxu0 %v4353
    %v4403 = vpop.f32.mrf.mxu0
    %v4404 = vadd.f32 %v4391, %v4403
    %v4405 = vpop.f32.mrf.mxu0
    %4406 = vdwg.mxu0
    %4407 = vmatpush.bf16.msra.mxu0 %v3940
    %4408 = vmatpush.bf16.msra.mxu0 %v3922
    %4409 = vmatpush.bf16.msra.mxu0 %v3904
    %4410 = vmatpush.bf16.msra.mxu0 %v3886
    %4411 = vmatpush.bf16.msra.mxu0 %v3868
    %4412 = vmatpush.bf16.msra.mxu0 %v3850
    %4413 = vmatpush.bf16.msra.mxu0 %v3832
    %4414 = vmatpush.bf16.msra.mxu0 %v3814
    %4415 = vmatmul.bf16.gmra.mxu0 %v637
    %v4416 = vpop.f32.mrf.mxu0
    %v4417 = vadd.f32 %v2609, %v4416
    %v4418 = vpop.f32.mrf.mxu0
    %4419 = vdwg.mxu0
    %4420 = vmatpush.bf16.msra.mxu0 0
    %4421 = vmatpush.bf16.msra.mxu0 %v4066
    %4422 = vmatpush.bf16.msra.mxu0 %v4048
    %4423 = vmatpush.bf16.msra.mxu0 %v4030
    %4424 = vmatpush.bf16.msra.mxu0 %v4012
    %4425 = vmatpush.bf16.msra.mxu0 %v3994
    %4426 = vmatpush.bf16.msra.mxu0 %v3976
    %4427 = vmatpush.bf16.msra.mxu0 %v3958
    %4428 = vmatmul.bf16.gmra.mxu0 %v4353
    %v4429 = vpop.f32.mrf.mxu0
    %v4430 = vadd.f32 %v4417, %v4429
    %v4431 = vpop.f32.mrf.mxu0
    %4432 = vdwg.mxu0
    %4433 = vmatpush.bf16.msra.mxu0 %v3941
    %4434 = vmatpush.bf16.msra.mxu0 %v3923
    %4435 = vmatpush.bf16.msra.mxu0 %v3905
    %4436 = vmatpush.bf16.msra.mxu0 %v3887
    %4437 = vmatpush.bf16.msra.mxu0 %v3869
    %4438 = vmatpush.bf16.msra.mxu0 %v3851
    %4439 = vmatpush.bf16.msra.mxu0 %v3833
    %4440 = vmatpush.bf16.msra.mxu0 %v3815
    %4441 = vmatmul.bf16.gmra.mxu0 %v637
    %v4442 = vpop.f32.mrf.mxu0
    %v4443 = vadd.f32 %v2635, %v4442
    %v4444 = vpop.f32.mrf.mxu0
    %4445 = vdwg.mxu0
    %4446 = vmatpush.bf16.msra.mxu0 0
    %4447 = vmatpush.bf16.msra.mxu0 %v4067
    %4448 = vmatpush.bf16.msra.mxu0 %v4049
    %4449 = vmatpush.bf16.msra.mxu0 %v4031
    %4450 = vmatpush.bf16.msra.mxu0 %v4013
    %4451 = vmatpush.bf16.msra.mxu0 %v3995
    %4452 = vmatpush.bf16.msra.mxu0 %v3977
    %4453 = vmatpush.bf16.msra.mxu0 %v3959
    %4454 = vmatmul.bf16.gmra.mxu0 %v4353
    %v4455 = vpop.f32.mrf.mxu0
    %v4456 = vadd.f32 %v4443, %v4455
    %v4457 = vpop.f32.mrf.mxu0
    %4458 = vdwg.mxu0
    %4459 = vmatpush.bf16.msra.mxu0 %v3942
    %4460 = vmatpush.bf16.msra.mxu0 %v3924
    %4461 = vmatpush.bf16.msra.mxu0 %v3906
    %4462 = vmatpush.bf16.msra.mxu0 %v3888
    %4463 = vmatpush.bf16.msra.mxu0 %v3870
    %4464 = vmatpush.bf16.msra.mxu0 %v3852
    %4465 = vmatpush.bf16.msra.mxu0 %v3834
    %4466 = vmatpush.bf16.msra.mxu0 %v3816
    %4467 = vmatmul.bf16.gmra.mxu0 %v637
    %v4468 = vpop.f32.mrf.mxu0
    %v4469 = vadd.f32 %v2661, %v4468
    %v4470 = vpop.f32.mrf.mxu0
    %4471 = vdwg.mxu0
    %4472 = vmatpush.bf16.msra.mxu0 0
    %4473 = vmatpush.bf16.msra.mxu0 %v4068
    %4474 = vmatpush.bf16.msra.mxu0 %v4050
    %4475 = vmatpush.bf16.msra.mxu0 %v4032
    %4476 = vmatpush.bf16.msra.mxu0 %v4014
    %4477 = vmatpush.bf16.msra.mxu0 %v3996
    %4478 = vmatpush.bf16.msra.mxu0 %v3978
    %4479 = vmatpush.bf16.msra.mxu0 %v3960
    %4480 = vmatmul.bf16.gmra.mxu0 %v4353
    %v4481 = vpop.f32.mrf.mxu0
    %v4482 = vadd.f32 %v4469, %v4481
    %v4483 = vpop.f32.mrf.mxu0
    %4484 = vdwg.mxu0
    %4485 = vmatpush.bf16.msra.mxu0 %v3943
    %4486 = vmatpush.bf16.msra.mxu0 %v3925
    %4487 = vmatpush.bf16.msra.mxu0 %v3907
    %4488 = vmatpush.bf16.msra.mxu0 %v3889
    %4489 = vmatpush.bf16.msra.mxu0 %v3871
    %4490 = vmatpush.bf16.msra.mxu0 %v3853
    %4491 = vmatpush.bf16.msra.mxu0 %v3835
    %4492 = vmatpush.bf16.msra.mxu0 %v3817
    %4493 = vmatmul.bf16.gmra.mxu0 %v637
    %v4494 = vpop.f32.mrf.mxu0
    %v4495 = vadd.f32 %v2687, %v4494
    %v4496 = vpop.f32.mrf.mxu0
    %4497 = vdwg.mxu0
    %4498 = vmatpush.bf16.msra.mxu0 0
    %4499 = vmatpush.bf16.msra.mxu0 %v4069
    %4500 = vmatpush.bf16.msra.mxu0 %v4051
    %4501 = vmatpush.bf16.msra.mxu0 %v4033
    %4502 = vmatpush.bf16.msra.mxu0 %v4015
    %4503 = vmatpush.bf16.msra.mxu0 %v3997
    %4504 = vmatpush.bf16.msra.mxu0 %v3979
    %4505 = vmatpush.bf16.msra.mxu0 %v3961
    %4506 = vmatmul.bf16.gmra.mxu0 %v4353
    %v4507 = vpop.f32.mrf.mxu0
    %v4508 = vadd.f32 %v4495, %v4507
    %v4509 = vpop.f32.mrf.mxu0
    %4510 = vdwg.mxu0
    %4511 = vmatpush.bf16.msra.mxu0 %v3944
    %4512 = vmatpush.bf16.msra.mxu0 %v3926
    %4513 = vmatpush.bf16.msra.mxu0 %v3908
    %4514 = vmatpush.bf16.msra.mxu0 %v3890
    %4515 = vmatpush.bf16.msra.mxu0 %v3872
    %4516 = vmatpush.bf16.msra.mxu0 %v3854
    %4517 = vmatpush.bf16.msra.mxu0 %v3836
    %4518 = vmatpush.bf16.msra.mxu0 %v3818
    %4519 = vmatmul.bf16.gmra.mxu0 %v637
    %v4520 = vpop.f32.mrf.mxu0
    %v4521 = vadd.f32 %v2713, %v4520
    %v4522 = vpop.f32.mrf.mxu0
    %4523 = vdwg.mxu0
    %4524 = vmatpush.bf16.msra.mxu0 0
    %4525 = vmatpush.bf16.msra.mxu0 %v4070
    %4526 = vmatpush.bf16.msra.mxu0 %v4052
    %4527 = vmatpush.bf16.msra.mxu0 %v4034
    %4528 = vmatpush.bf16.msra.mxu0 %v4016
    %4529 = vmatpush.bf16.msra.mxu0 %v3998
    %4530 = vmatpush.bf16.msra.mxu0 %v3980
    %4531 = vmatpush.bf16.msra.mxu0 %v3962
    %4532 = vmatmul.bf16.gmra.mxu0 %v4353
    %v4533 = vpop.f32.mrf.mxu0
    %v4534 = vadd.f32 %v4521, %v4533
    %v4535 = vpop.f32.mrf.mxu0
    %4536 = vdwg.mxu0
    %4537 = vmatpush.bf16.msra.mxu0 %v3945
    %4538 = vmatpush.bf16.msra.mxu0 %v3927
    %4539 = vmatpush.bf16.msra.mxu0 %v3909
    %4540 = vmatpush.bf16.msra.mxu0 %v3891
    %4541 = vmatpush.bf16.msra.mxu0 %v3873
    %4542 = vmatpush.bf16.msra.mxu0 %v3855
    %4543 = vmatpush.bf16.msra.mxu0 %v3837
    %4544 = vmatpush.bf16.msra.mxu0 %v3819
    %4545 = vmatmul.bf16.gmra.mxu0 %v637
    %v4546 = vpop.f32.mrf.mxu0
    %v4547 = vadd.f32 %v2739, %v4546
    %v4548 = vpop.f32.mrf.mxu0
    %4549 = vdwg.mxu0
    %4550 = vmatpush.bf16.msra.mxu0 0
    %4551 = vmatpush.bf16.msra.mxu0 %v4071
    %4552 = vmatpush.bf16.msra.mxu0 %v4053
    %4553 = vmatpush.bf16.msra.mxu0 %v4035
    %4554 = vmatpush.bf16.msra.mxu0 %v4017
    %4555 = vmatpush.bf16.msra.mxu0 %v3999
    %4556 = vmatpush.bf16.msra.mxu0 %v3981
    %4557 = vmatpush.bf16.msra.mxu0 %v3963
    %4558 = vmatmul.bf16.gmra.mxu0 %v4353
    %v4559 = vpop.f32.mrf.mxu0
    %v4560 = vadd.f32 %v4547, %v4559
    %v4561 = vpop.f32.mrf.mxu0
    %4562 = vdwg.mxu0
    %4563 = vmatpush.bf16.msra.mxu0 %v3946
    %4564 = vmatpush.bf16.msra.mxu0 %v3928
    %4565 = vmatpush.bf16.msra.mxu0 %v3910
    %4566 = vmatpush.bf16.msra.mxu0 %v3892
    %4567 = vmatpush.bf16.msra.mxu0 %v3874
    %4568 = vmatpush.bf16.msra.mxu0 %v3856
    %4569 = vmatpush.bf16.msra.mxu0 %v3838
    %4570 = vmatpush.bf16.msra.mxu0 %v3820
    %4571 = vmatmul.bf16.gmra.mxu0 %v637
    %v4572 = vpop.f32.mrf.mxu0
    %v4573 = vadd.f32 %v2765, %v4572
    %v4574 = vpop.f32.mrf.mxu0
    %4575 = vdwg.mxu0
    %4576 = vmatpush.bf16.msra.mxu0 0
    %4577 = vmatpush.bf16.msra.mxu0 %v4072
    %4578 = vmatpush.bf16.msra.mxu0 %v4054
    %4579 = vmatpush.bf16.msra.mxu0 %v4036
    %4580 = vmatpush.bf16.msra.mxu0 %v4018
    %4581 = vmatpush.bf16.msra.mxu0 %v4000
    %4582 = vmatpush.bf16.msra.mxu0 %v3982
    %4583 = vmatpush.bf16.msra.mxu0 %v3964
    %4584 = vmatmul.bf16.gmra.mxu0 %v4353
    %v4585 = vpop.f32.mrf.mxu0
    %v4586 = vadd.f32 %v4573, %v4585
    %v4587 = vpop.f32.mrf.mxu0
    %4588 = vdwg.mxu0
    %4589 = vmatpush.bf16.msra.mxu0 %v3947
    %4590 = vmatpush.bf16.msra.mxu0 %v3929
    %4591 = vmatpush.bf16.msra.mxu0 %v3911
    %4592 = vmatpush.bf16.msra.mxu0 %v3893
    %4593 = vmatpush.bf16.msra.mxu0 %v3875
    %4594 = vmatpush.bf16.msra.mxu0 %v3857
    %4595 = vmatpush.bf16.msra.mxu0 %v3839
    %4596 = vmatpush.bf16.msra.mxu0 %v3821
    %4597 = vmatmul.bf16.gmra.mxu0 %v637
    %v4598 = vpop.f32.mrf.mxu0
    %v4599 = vadd.f32 %v2791, %v4598
    %v4600 = vpop.f32.mrf.mxu0
    %4601 = vdwg.mxu0
    %4602 = vmatpush.bf16.msra.mxu0 0
    %4603 = vmatpush.bf16.msra.mxu0 %v4073
    %4604 = vmatpush.bf16.msra.mxu0 %v4055
    %4605 = vmatpush.bf16.msra.mxu0 %v4037
    %4606 = vmatpush.bf16.msra.mxu0 %v4019
    %4607 = vmatpush.bf16.msra.mxu0 %v4001
    %4608 = vmatpush.bf16.msra.mxu0 %v3983
    %4609 = vmatpush.bf16.msra.mxu0 %v3965
    %4610 = vmatmul.bf16.gmra.mxu0 %v4353
    %v4611 = vpop.f32.mrf.mxu0
    %v4612 = vadd.f32 %v4599, %v4611
    %v4613 = vpop.f32.mrf.mxu0
    %4614 = vdwg.mxu0
    %4615 = vmatpush.bf16.msra.mxu0 %v3948
    %4616 = vmatpush.bf16.msra.mxu0 %v3930
    %4617 = vmatpush.bf16.msra.mxu0 %v3912
    %4618 = vmatpush.bf16.msra.mxu0 %v3894
    %4619 = vmatpush.bf16.msra.mxu0 %v3876
    %4620 = vmatpush.bf16.msra.mxu0 %v3858
    %4621 = vmatpush.bf16.msra.mxu0 %v3840
    %4622 = vmatpush.bf16.msra.mxu0 %v3822
    %4623 = vmatmul.bf16.gmra.mxu0 %v637
    %v4624 = vpop.f32.mrf.mxu0
    %v4625 = vadd.f32 %v2817, %v4624
    %v4626 = vpop.f32.mrf.mxu0
    %4627 = vdwg.mxu0
    %4628 = vmatpush.bf16.msra.mxu0 0
    %4629 = vmatpush.bf16.msra.mxu0 %v4074
    %4630 = vmatpush.bf16.msra.mxu0 %v4056
    %4631 = vmatpush.bf16.msra.mxu0 %v4038
    %4632 = vmatpush.bf16.msra.mxu0 %v4020
    %4633 = vmatpush.bf16.msra.mxu0 %v4002
    %4634 = vmatpush.bf16.msra.mxu0 %v3984
    %4635 = vmatpush.bf16.msra.mxu0 %v3966
    %4636 = vmatmul.bf16.gmra.mxu0 %v4353
    %v4637 = vpop.f32.mrf.mxu0
    %v4638 = vadd.f32 %v4625, %v4637
    %v4639 = vpop.f32.mrf.mxu0
    %4640 = vdwg.mxu0
    %4641 = vmatpush.bf16.msra.mxu0 %v3949
    %4642 = vmatpush.bf16.msra.mxu0 %v3931
    %4643 = vmatpush.bf16.msra.mxu0 %v3913
    %4644 = vmatpush.bf16.msra.mxu0 %v3895
    %4645 = vmatpush.bf16.msra.mxu0 %v3877
    %4646 = vmatpush.bf16.msra.mxu0 %v3859
    %4647 = vmatpush.bf16.msra.mxu0 %v3841
    %4648 = vmatpush.bf16.msra.mxu0 %v3823
    %4649 = vmatmul.bf16.gmra.mxu0 %v637
    %v4650 = vpop.f32.mrf.mxu0
    %v4651 = vadd.f32 %v2843, %v4650
    %v4652 = vpop.f32.mrf.mxu0
    %4653 = vdwg.mxu0
    %4654 = vmatpush.bf16.msra.mxu0 0
    %4655 = vmatpush.bf16.msra.mxu0 %v4075
    %4656 = vmatpush.bf16.msra.mxu0 %v4057
    %4657 = vmatpush.bf16.msra.mxu0 %v4039
    %4658 = vmatpush.bf16.msra.mxu0 %v4021
    %4659 = vmatpush.bf16.msra.mxu0 %v4003
    %4660 = vmatpush.bf16.msra.mxu0 %v3985
    %4661 = vmatpush.bf16.msra.mxu0 %v3967
    %4662 = vmatmul.bf16.gmra.mxu0 %v4353
    %v4663 = vpop.f32.mrf.mxu0
    %v4664 = vadd.f32 %v4651, %v4663
    %v4665 = vpop.f32.mrf.mxu0
    %4666 = vdwg.mxu0
    %4667 = vmatpush.bf16.msra.mxu0 %v3950
    %4668 = vmatpush.bf16.msra.mxu0 %v3932
    %4669 = vmatpush.bf16.msra.mxu0 %v3914
    %4670 = vmatpush.bf16.msra.mxu0 %v3896
    %4671 = vmatpush.bf16.msra.mxu0 %v3878
    %4672 = vmatpush.bf16.msra.mxu0 %v3860
    %4673 = vmatpush.bf16.msra.mxu0 %v3842
    %4674 = vmatpush.bf16.msra.mxu0 %v3824
    %4675 = vmatmul.bf16.gmra.mxu0 %v637
    %v4676 = vpop.f32.mrf.mxu0
    %v4677 = vadd.f32 %v2869, %v4676
    %v4678 = vpop.f32.mrf.mxu0
    %4679 = vdwg.mxu0
    %4680 = vmatpush.bf16.msra.mxu0 0
    %4681 = vmatpush.bf16.msra.mxu0 %v4076
    %4682 = vmatpush.bf16.msra.mxu0 %v4058
    %4683 = vmatpush.bf16.msra.mxu0 %v4040
    %4684 = vmatpush.bf16.msra.mxu0 %v4022
    %4685 = vmatpush.bf16.msra.mxu0 %v4004
    %4686 = vmatpush.bf16.msra.mxu0 %v3986
    %4687 = vmatpush.bf16.msra.mxu0 %v3968
    %4688 = vmatmul.bf16.gmra.mxu0 %v4353
    %v4689 = vpop.f32.mrf.mxu0
    %v4690 = vadd.f32 %v4677, %v4689
    %v4691 = vpop.f32.mrf.mxu0
    %4692 = vdwg.mxu0
    %4693 = vmatpush.bf16.msra.mxu0 %v3951
    %4694 = vmatpush.bf16.msra.mxu0 %v3933
    %4695 = vmatpush.bf16.msra.mxu0 %v3915
    %4696 = vmatpush.bf16.msra.mxu0 %v3897
    %4697 = vmatpush.bf16.msra.mxu0 %v3879
    %4698 = vmatpush.bf16.msra.mxu0 %v3861
    %4699 = vmatpush.bf16.msra.mxu0 %v3843
    %4700 = vmatpush.bf16.msra.mxu0 %v3825
    %4701 = vmatmul.bf16.gmra.mxu0 %v637
    %v4702 = vpop.f32.mrf.mxu0
    %v4703 = vadd.f32 %v2895, %v4702
    %v4704 = vpop.f32.mrf.mxu0
    %4705 = vdwg.mxu0
    %4706 = vmatpush.bf16.msra.mxu0 0
    %4707 = vmatpush.bf16.msra.mxu0 %v4077
    %4708 = vmatpush.bf16.msra.mxu0 %v4059
    %4709 = vmatpush.bf16.msra.mxu0 %v4041
    %4710 = vmatpush.bf16.msra.mxu0 %v4023
    %4711 = vmatpush.bf16.msra.mxu0 %v4005
    %4712 = vmatpush.bf16.msra.mxu0 %v3987
    %4713 = vmatpush.bf16.msra.mxu0 %v3969
    %4714 = vmatmul.bf16.gmra.mxu0 %v4353
    %v4715 = vpop.f32.mrf.mxu0
    %v4716 = vadd.f32 %v4703, %v4715
    %v4717 = vpop.f32.mrf.mxu0
    %4718 = vdwg.mxu0
    %4719 = vmatpush.bf16.msra.mxu0 %v3952
    %4720 = vmatpush.bf16.msra.mxu0 %v3934
    %4721 = vmatpush.bf16.msra.mxu0 %v3916
    %4722 = vmatpush.bf16.msra.mxu0 %v3898
    %4723 = vmatpush.bf16.msra.mxu0 %v3880
    %4724 = vmatpush.bf16.msra.mxu0 %v3862
    %4725 = vmatpush.bf16.msra.mxu0 %v3844
    %4726 = vmatpush.bf16.msra.mxu0 %v3826
    %4727 = vmatmul.bf16.gmra.mxu0 %v637
    %v4728 = vpop.f32.mrf.mxu0
    %v4729 = vadd.f32 %v2921, %v4728
    %v4730 = vpop.f32.mrf.mxu0
    %4731 = vdwg.mxu0
    %4732 = vmatpush.bf16.msra.mxu0 0
    %4733 = vmatpush.bf16.msra.mxu0 %v4078
    %4734 = vmatpush.bf16.msra.mxu0 %v4060
    %4735 = vmatpush.bf16.msra.mxu0 %v4042
    %4736 = vmatpush.bf16.msra.mxu0 %v4024
    %4737 = vmatpush.bf16.msra.mxu0 %v4006
    %4738 = vmatpush.bf16.msra.mxu0 %v3988
    %4739 = vmatpush.bf16.msra.mxu0 %v3970
    %4740 = vmatmul.bf16.gmra.mxu0 %v4353
    %v4741 = vpop.f32.mrf.mxu0
    %v4742 = vadd.f32 %v4729, %v4741
    %v4743 = vpop.f32.mrf.mxu0
    %4744 = vdwg.mxu0
    %4745 = vmatpush.bf16.msra.mxu0 %v3953
    %4746 = vmatpush.bf16.msra.mxu0 %v3935
    %4747 = vmatpush.bf16.msra.mxu0 %v3917
    %4748 = vmatpush.bf16.msra.mxu0 %v3899
    %4749 = vmatpush.bf16.msra.mxu0 %v3881
    %4750 = vmatpush.bf16.msra.mxu0 %v3863
    %4751 = vmatpush.bf16.msra.mxu0 %v3845
    %4752 = vmatpush.bf16.msra.mxu0 %v3827
    %4753 = vmatmul.bf16.gmra.mxu0 %v637
    %v4754 = vpop.f32.mrf.mxu0
    %v4755 = vadd.f32 %v2947, %v4754
    %v4756 = vpop.f32.mrf.mxu0
    %4757 = vdwg.mxu0
    %4758 = vmatpush.bf16.msra.mxu0 0
    %4759 = vmatpush.bf16.msra.mxu0 %v4079
    %4760 = vmatpush.bf16.msra.mxu0 %v4061
    %4761 = vmatpush.bf16.msra.mxu0 %v4043
    %4762 = vmatpush.bf16.msra.mxu0 %v4025
    %4763 = vmatpush.bf16.msra.mxu0 %v4007
    %4764 = vmatpush.bf16.msra.mxu0 %v3989
    %4765 = vmatpush.bf16.msra.mxu0 %v3971
    %4766 = vmatmul.bf16.gmra.mxu0 %v4353
    %v4767 = vpop.f32.mrf.mxu0
    %v4768 = vadd.f32 %v4755, %v4767
    %v4769 = vpop.f32.mrf.mxu0
    %4770 = vdwg.mxu0
    %4771 = vmatpush.bf16.msra.mxu0 %v3954
    %4772 = vmatpush.bf16.msra.mxu0 %v3936
    %4773 = vmatpush.bf16.msra.mxu0 %v3918
    %4774 = vmatpush.bf16.msra.mxu0 %v3900
    %4775 = vmatpush.bf16.msra.mxu0 %v3882
    %4776 = vmatpush.bf16.msra.mxu0 %v3864
    %4777 = vmatpush.bf16.msra.mxu0 %v3846
    %4778 = vmatpush.bf16.msra.mxu0 %v3828
    %4779 = vmatmul.bf16.gmra.mxu0 %v637
    %v4780 = vpop.f32.mrf.mxu0
    %v4781 = vadd.f32 %v2973, %v4780
    %v4782 = vpop.f32.mrf.mxu0
    %4783 = vdwg.mxu0
    %4784 = vmatpush.bf16.msra.mxu0 0
    %4785 = vmatpush.bf16.msra.mxu0 %v4080
    %4786 = vmatpush.bf16.msra.mxu0 %v4062
    %4787 = vmatpush.bf16.msra.mxu0 %v4044
    %4788 = vmatpush.bf16.msra.mxu0 %v4026
    %4789 = vmatpush.bf16.msra.mxu0 %v4008
    %4790 = vmatpush.bf16.msra.mxu0 %v3990
    %4791 = vmatpush.bf16.msra.mxu0 %v3972
    %4792 = vmatmul.bf16.gmra.mxu0 %v4353
    %v4793 = vpop.f32.mrf.mxu0
    %v4794 = vadd.f32 %v4781, %v4793
    %v4795 = vpop.f32.mrf.mxu0
    %4796 = vdwg.mxu0
    %4797 = vmatpush.bf16.msra.mxu0 %v3955
    %4798 = vmatpush.bf16.msra.mxu0 %v3937
    %4799 = vmatpush.bf16.msra.mxu0 %v3919
    %4800 = vmatpush.bf16.msra.mxu0 %v3901
    %4801 = vmatpush.bf16.msra.mxu0 %v3883
    %4802 = vmatpush.bf16.msra.mxu0 %v3865
    %4803 = vmatpush.bf16.msra.mxu0 %v3847
    %4804 = vmatpush.bf16.msra.mxu0 %v3829
    %4805 = vmatmul.bf16.gmra.mxu0 %v637
    %v4806 = vpop.f32.mrf.mxu0
    %v4807 = vadd.f32 %v2999, %v4806
    %v4808 = vpop.f32.mrf.mxu0
    %4809 = vdwg.mxu0
    %4810 = vmatpush.bf16.msra.mxu0 0
    %4811 = vmatpush.bf16.msra.mxu0 %v4081
    %4812 = vmatpush.bf16.msra.mxu0 %v4063
    %4813 = vmatpush.bf16.msra.mxu0 %v4045
    %4814 = vmatpush.bf16.msra.mxu0 %v4027
    %4815 = vmatpush.bf16.msra.mxu0 %v4009
    %4816 = vmatpush.bf16.msra.mxu0 %v3991
    %4817 = vmatpush.bf16.msra.mxu0 %v3973
    %4818 = vmatmul.bf16.gmra.mxu0 %v4353
    %v4819 = vpop.f32.mrf.mxu0
    %v4820 = vadd.f32 %v4807, %v4819
    %v4821 = vpop.f32.mrf.mxu0
    %4822 = vdwg.mxu0
    %v4823 = vld [vmem:[#allocation11] sm:$0xff]
    %v4824 = vld [vmem:[#allocation11 + $0x8] sm:$0xff]
    %v4825 = vld [vmem:[#allocation11 + $0x10] sm:$0x3]
    %v4829 = vperm.slane %v4823, 0
    %v4830 = vperm.slane %v4823, 1
    %v4831 = vperm.slane %v4823, 2
    %v4832 = vperm.slane %v4823, 3
    %v4833 = vperm.slane %v4823, 4
    %v4834 = vperm.slane %v4823, 5
    %v4835 = vperm.slane %v4823, 6
    %v4836 = vperm.slane %v4823, 7
    %v4837 = vperm.slane %v4824, 0
    %v4838 = vperm.slane %v4824, 1
    %v4839 = vperm.slane %v4824, 2
    %v4840 = vperm.slane %v4824, 3
    %v4841 = vperm.slane %v4824, 4
    %v4842 = vperm.slane %v4824, 5
    %v4843 = vperm.slane %v4824, 6
    %v4844 = vperm.slane %v4824, 7
    %v4845 = vperm.slane %v4825, 0
    %v4846 = vperm.slane %v4825, 1
    %v4865 = vadd.f32 %v4378, %v4829
    %v4866 = vadd.f32 %v4404, %v4830
    %v4867 = vadd.f32 %v4430, %v4831
    %v4868 = vadd.f32 %v4456, %v4832
    %v4869 = vadd.f32 %v4482, %v4833
    %v4870 = vadd.f32 %v4508, %v4834
    %v4871 = vadd.f32 %v4534, %v4835
    %v4872 = vadd.f32 %v4560, %v4836
    %v4873 = vadd.f32 %v4586, %v4837
    %v4874 = vadd.f32 %v4612, %v4838
    %v4875 = vadd.f32 %v4638, %v4839
    %v4876 = vadd.f32 %v4664, %v4840
    %v4877 = vadd.f32 %v4690, %v4841
    %v4878 = vadd.f32 %v4716, %v4842
    %v4879 = vadd.f32 %v4742, %v4843
    %v4880 = vadd.f32 %v4768, %v4844
    %v4881 = vadd.f32 %v4794, %v4845
    %v4882 = vadd.f32 %v4820, %v4846
    %v4883 = vxor.u32 %v4865, 2147483648
    %v4884 = vxor.u32 %v4866, 2147483648
    %v4885 = vxor.u32 %v4867, 2147483648
    %v4886 = vxor.u32 %v4868, 2147483648
    %v4887 = vxor.u32 %v4869, 2147483648
    %v4888 = vxor.u32 %v4870, 2147483648
    %v4889 = vmul.f32 %v4883, 1.442695
    %v4890 = vpow.pop %v4889
    %v4891 = vmul.f32 %v4884, 1.442695
    %v4892 = vpow.pop %v4891
    %v4893 = vmul.f32 %v4885, 1.442695
    %v4894 = vpow.pop %v4893
    %v4895 = vmul.f32 %v4886, 1.442695
    %v4896 = vpow.pop %v4895
    %v4897 = vmul.f32 %v4887, 1.442695
    %v4898 = vpow.pop %v4897
    %v4899 = vmul.f32 %v4888, 1.442695
    %v4900 = vpow.pop %v4899
    %v4901 = vadd.f32 %v4890, 1.0
    %v4902 = vadd.f32 %v4892, 1.0
    %v4903 = vadd.f32 %v4894, 1.0
    %v4904 = vadd.f32 %v4896, 1.0
    %v4905 = vadd.f32 %v4898, 1.0
    %v4906 = vadd.f32 %v4900, 1.0
    %v4907 = vrcp.pop %v4901
    %v4908 = vmul.f32 %v4901, %v4907
    %v4909 = vsub.f32 1.0, %v4908
    %v4910 = vmul.f32 %v4907, %v4909
    %v4911 = vadd.f32 %v4907, %v4910
    %vm4912 = vweird.f32 %v4901
    %vm4913 = vweird.f32 %v4907
    %vm4914 = vmor %vm4912, %vm4913
    %v4915 = vsel %vm4914, %v4907, %v4911
    %v4916 = vand.u32 2147483647, %v4901
    %vm4917 = vcmp.eq.f32.partialorder %v4916, 8.507059e+37
    %v4918 = vand.u32 %v4901, 2147483648
    %v4919 = vor.u32 1.1754944e-38, %v4918
    %v4920 = vsel %vm4917, %v4919, %v4915
    %v4921 = vmul.f32 1.0, %v4920
    %v4922 = vrcp.pop %v4902
    %v4923 = vmul.f32 %v4902, %v4922
    %v4924 = vsub.f32 1.0, %v4923
    %v4925 = vmul.f32 %v4922, %v4924
    %v4926 = vadd.f32 %v4922, %v4925
    %vm4927 = vweird.f32 %v4902
    %vm4928 = vweird.f32 %v4922
    %vm4929 = vmor %vm4927, %vm4928
    %v4930 = vsel %vm4929, %v4922, %v4926
    %v4931 = vand.u32 2147483647, %v4902
    %vm4932 = vcmp.eq.f32.partialorder %v4931, 8.507059e+37
    %v4933 = vand.u32 %v4902, 2147483648
    %v4934 = vor.u32 1.1754944e-38, %v4933
    %v4935 = vsel %vm4932, %v4934, %v4930
    %v4936 = vmul.f32 1.0, %v4935
    %v4937 = vrcp.pop %v4903
    %v4938 = vmul.f32 %v4903, %v4937
    %v4939 = vsub.f32 1.0, %v4938
    %v4940 = vmul.f32 %v4937, %v4939
    %v4941 = vadd.f32 %v4937, %v4940
    %vm4942 = vweird.f32 %v4903
    %vm4943 = vweird.f32 %v4937
    %vm4944 = vmor %vm4942, %vm4943
    %v4945 = vsel %vm4944, %v4937, %v4941
    %v4946 = vand.u32 2147483647, %v4903
    %vm4947 = vcmp.eq.f32.partialorder %v4946, 8.507059e+37
    %v4948 = vand.u32 %v4903, 2147483648
    %v4949 = vor.u32 1.1754944e-38, %v4948
    %v4950 = vsel %vm4947, %v4949, %v4945
    %v4951 = vmul.f32 1.0, %v4950
    %v4952 = vrcp.pop %v4904
    %v4953 = vmul.f32 %v4904, %v4952
    %v4954 = vsub.f32 1.0, %v4953
    %v4955 = vmul.f32 %v4952, %v4954
    %v4956 = vadd.f32 %v4952, %v4955
    %vm4957 = vweird.f32 %v4904
    %vm4958 = vweird.f32 %v4952
    %vm4959 = vmor %vm4957, %vm4958
    %v4960 = vsel %vm4959, %v4952, %v4956
    %v4961 = vand.u32 2147483647, %v4904
    %vm4962 = vcmp.eq.f32.partialorder %v4961, 8.507059e+37
    %v4963 = vand.u32 %v4904, 2147483648
    %v4964 = vor.u32 1.1754944e-38, %v4963
    %v4965 = vsel %vm4962, %v4964, %v4960
    %v4966 = vmul.f32 1.0, %v4965
    %v4967 = vrcp.pop %v4905
    %v4968 = vmul.f32 %v4905, %v4967
    %v4969 = vsub.f32 1.0, %v4968
    %v4970 = vmul.f32 %v4967, %v4969
    %v4971 = vadd.f32 %v4967, %v4970
    %vm4972 = vweird.f32 %v4905
    %vm4973 = vweird.f32 %v4967
    %vm4974 = vmor %vm4972, %vm4973
    %v4975 = vsel %vm4974, %v4967, %v4971
    %v4976 = vand.u32 2147483647, %v4905
    %vm4977 = vcmp.eq.f32.partialorder %v4976, 8.507059e+37
    %v4978 = vand.u32 %v4905, 2147483648
    %v4979 = vor.u32 1.1754944e-38, %v4978
    %v4980 = vsel %vm4977, %v4979, %v4975
    %v4981 = vmul.f32 1.0, %v4980
    %v4982 = vrcp.pop %v4906
    %v4983 = vmul.f32 %v4906, %v4982
    %v4984 = vsub.f32 1.0, %v4983
    %v4985 = vmul.f32 %v4982, %v4984
    %v4986 = vadd.f32 %v4982, %v4985
    %vm4987 = vweird.f32 %v4906
    %vm4988 = vweird.f32 %v4982
    %vm4989 = vmor %vm4987, %vm4988
    %v4990 = vsel %vm4989, %v4982, %v4986
    %v4991 = vand.u32 2147483647, %v4906
    %vm4992 = vcmp.eq.f32.partialorder %v4991, 8.507059e+37
    %v4993 = vand.u32 %v4906, 2147483648
    %v4994 = vor.u32 1.1754944e-38, %v4993
    %v4995 = vsel %vm4992, %v4994, %v4990
    %v4996 = vmul.f32 1.0, %v4995
    %v4997 = vtanh.pop %v4871
    %v4998 = vtanh.pop %v4872
    %v4999 = vtanh.pop %v4873
    %v5000 = vtanh.pop %v4874
    %v5001 = vtanh.pop %v4875
    %v5002 = vtanh.pop %v4876
    %v5003 = vxor.u32 %v4877, 2147483648
    %v5004 = vxor.u32 %v4878, 2147483648
    %v5005 = vxor.u32 %v4879, 2147483648
    %v5006 = vxor.u32 %v4880, 2147483648
    %v5007 = vxor.u32 %v4881, 2147483648
    %v5008 = vxor.u32 %v4882, 2147483648
    %v5009 = vmul.f32 %v5003, 1.442695
    %v5010 = vpow.pop %v5009
    %v5011 = vmul.f32 %v5004, 1.442695
    %v5012 = vpow.pop %v5011
    %v5013 = vmul.f32 %v5005, 1.442695
    %v5014 = vpow.pop %v5013
    %v5015 = vmul.f32 %v5006, 1.442695
    %v5016 = vpow.pop %v5015
    %v5017 = vmul.f32 %v5007, 1.442695
    %v5018 = vpow.pop %v5017
    %v5019 = vmul.f32 %v5008, 1.442695
    %v5020 = vpow.pop %v5019
    %v5021 = vadd.f32 %v5010, 1.0
    %v5022 = vadd.f32 %v5012, 1.0
    %v5023 = vadd.f32 %v5014, 1.0
    %v5024 = vadd.f32 %v5016, 1.0
    %v5025 = vadd.f32 %v5018, 1.0
    %v5026 = vadd.f32 %v5020, 1.0
    %v5027 = vrcp.pop %v5021
    %v5028 = vmul.f32 %v5021, %v5027
    %v5029 = vsub.f32 1.0, %v5028
    %v5030 = vmul.f32 %v5027, %v5029
    %v5031 = vadd.f32 %v5027, %v5030
    %vm5032 = vweird.f32 %v5021
    %vm5033 = vweird.f32 %v5027
    %vm5034 = vmor %vm5032, %vm5033
    %v5035 = vsel %vm5034, %v5027, %v5031
    %v5036 = vand.u32 2147483647, %v5021
    %vm5037 = vcmp.eq.f32.partialorder %v5036, 8.507059e+37
    %v5038 = vand.u32 %v5021, 2147483648
    %v5039 = vor.u32 1.1754944e-38, %v5038
    %v5040 = vsel %vm5037, %v5039, %v5035
    %v5041 = vmul.f32 1.0, %v5040
    %v5042 = vrcp.pop %v5022
    %v5043 = vmul.f32 %v5022, %v5042
    %v5044 = vsub.f32 1.0, %v5043
    %v5045 = vmul.f32 %v5042, %v5044
    %v5046 = vadd.f32 %v5042, %v5045
    %vm5047 = vweird.f32 %v5022
    %vm5048 = vweird.f32 %v5042
    %vm5049 = vmor %vm5047, %vm5048
    %v5050 = vsel %vm5049, %v5042, %v5046
    %v5051 = vand.u32 2147483647, %v5022
    %vm5052 = vcmp.eq.f32.partialorder %v5051, 8.507059e+37
    %v5053 = vand.u32 %v5022, 2147483648
    %v5054 = vor.u32 1.1754944e-38, %v5053
    %v5055 = vsel %vm5052, %v5054, %v5050
    %v5056 = vmul.f32 1.0, %v5055
    %v5057 = vrcp.pop %v5023
    %v5058 = vmul.f32 %v5023, %v5057
    %v5059 = vsub.f32 1.0, %v5058
    %v5060 = vmul.f32 %v5057, %v5059
    %v5061 = vadd.f32 %v5057, %v5060
    %vm5062 = vweird.f32 %v5023
    %vm5063 = vweird.f32 %v5057
    %vm5064 = vmor %vm5062, %vm5063
    %v5065 = vsel %vm5064, %v5057, %v5061
    %v5066 = vand.u32 2147483647, %v5023
    %vm5067 = vcmp.eq.f32.partialorder %v5066, 8.507059e+37
    %v5068 = vand.u32 %v5023, 2147483648
    %v5069 = vor.u32 1.1754944e-38, %v5068
    %v5070 = vsel %vm5067, %v5069, %v5065
    %v5071 = vmul.f32 1.0, %v5070
    %v5072 = vrcp.pop %v5024
    %v5073 = vmul.f32 %v5024, %v5072
    %v5074 = vsub.f32 1.0, %v5073
    %v5075 = vmul.f32 %v5072, %v5074
    %v5076 = vadd.f32 %v5072, %v5075
    %vm5077 = vweird.f32 %v5024
    %vm5078 = vweird.f32 %v5072
    %vm5079 = vmor %vm5077, %vm5078
    %v5080 = vsel %vm5079, %v5072, %v5076
    %v5081 = vand.u32 2147483647, %v5024
    %vm5082 = vcmp.eq.f32.partialorder %v5081, 8.507059e+37
    %v5083 = vand.u32 %v5024, 2147483648
    %v5084 = vor.u32 1.1754944e-38, %v5083
    %v5085 = vsel %vm5082, %v5084, %v5080
    %v5086 = vmul.f32 1.0, %v5085
    %v5087 = vrcp.pop %v5025
    %v5088 = vmul.f32 %v5025, %v5087
    %v5089 = vsub.f32 1.0, %v5088
    %v5090 = vmul.f32 %v5087, %v5089
    %v5091 = vadd.f32 %v5087, %v5090
    %vm5092 = vweird.f32 %v5025
    %vm5093 = vweird.f32 %v5087
    %vm5094 = vmor %vm5092, %vm5093
    %v5095 = vsel %vm5094, %v5087, %v5091
    %v5096 = vand.u32 2147483647, %v5025
    %vm5097 = vcmp.eq.f32.partialorder %v5096, 8.507059e+37
    %v5098 = vand.u32 %v5025, 2147483648
    %v5099 = vor.u32 1.1754944e-38, %v5098
    %v5100 = vsel %vm5097, %v5099, %v5095
    %v5101 = vmul.f32 1.0, %v5100
    %v5102 = vrcp.pop %v5026
    %v5103 = vmul.f32 %v5026, %v5102
    %v5104 = vsub.f32 1.0, %v5103
    %v5105 = vmul.f32 %v5102, %v5104
    %v5106 = vadd.f32 %v5102, %v5105
    %vm5107 = vweird.f32 %v5026
    %vm5108 = vweird.f32 %v5102
    %vm5109 = vmor %vm5107, %vm5108
    %v5110 = vsel %vm5109, %v5102, %v5106
    %v5111 = vand.u32 2147483647, %v5026
    %vm5112 = vcmp.eq.f32.partialorder %v5111, 8.507059e+37
    %v5113 = vand.u32 %v5026, 2147483648
    %v5114 = vor.u32 1.1754944e-38, %v5113
    %v5115 = vsel %vm5112, %v5114, %v5110
    %v5116 = vmul.f32 1.0, %v5115
    %v5117 = vmul.f32 %v4921, %v4997
    %v5118 = vmul.f32 %v4936, %v4998
    %v5119 = vmul.f32 %v4951, %v4999
    %v5120 = vmul.f32 %v4966, %v5000
    %v5121 = vmul.f32 %v4981, %v5001
    %v5122 = vmul.f32 %v4996, %v5002
    %v5123 = vtanh.pop %v5117
    %v5124 = vtanh.pop %v5118
    %v5125 = vtanh.pop %v5119
    %v5126 = vtanh.pop %v5120
    %v5127 = vtanh.pop %v5121
    %v5128 = vtanh.pop %v5122
    %v5129 = vmul.f32 %v5041, %v5123
    %v5130 = vmul.f32 %v5056, %v5124
    %v5131 = vmul.f32 %v5071, %v5125
    %v5132 = vmul.f32 %v5086, %v5126
    %v5133 = vmul.f32 %v5101, %v5127
    %v5134 = vmul.f32 %v5116, %v5128
    %v5135 = vld [vmem:[%s8] sm:$0xff]
    %v5136 = vld [vmem:[%s8 + $0x8] sm:$0xff]
    %v5137 = vld [vmem:[%s8 + $0x10] sm:$0xff]
    %v5138 = vld [vmem:[%s8 + $0x18] sm:$0xff]
    %v5139 = vld [vmem:[%s8 + $0x20] sm:$0xff]
    %v5140 = vld [vmem:[%s8 + $0x28] sm:$0xff]
    %v5141 = vld [vmem:[%s8 + $0x30] sm:$0xff]
    %v5142 = vld [vmem:[%s8 + $0x38] sm:$0xff]
    %v5143 = vld [vmem:[%s8 + $0x40] sm:$0xff]
    %v5144 = vld [vmem:[%s8 + $0x48] sm:$0xff]
    %v5145 = vld [vmem:[%s8 + $0x50] sm:$0xff]
    %v5146 = vld [vmem:[%s8 + $0x58] sm:$0xff]
    %v5147 = vld [vmem:[%s8 + $0x60] sm:$0xff]
    %v5148 = vld [vmem:[%s8 + $0x68] sm:$0xff]
    %v5149 = vld [vmem:[%s8 + $0x70] sm:$0xff]
    %v5150 = vld [vmem:[%s8 + $0x78] sm:$0xff]
    %v5151 = vld [vmem:[%s8 + $0x80] sm:$0xff]
    %v5152 = vld [vmem:[%s8 + $0x88] sm:$0xff]
    %v5153 = vld [vmem:[%s8 + $0x90] sm:$0xff]
    %v5154 = vld [vmem:[%s8 + $0x98] sm:$0xff]
    %v5155 = vld [vmem:[%s8 + $0xa0] sm:$0xff]
    %v5156 = vld [vmem:[%s8 + $0xa8] sm:$0xff]
    %v5157 = vld [vmem:[%s8 + $0xb0] sm:$0xff]
    %v5158 = vld [vmem:[%s8 + $0xb8] sm:$0xff]
    %v5159 = vld [vmem:[%s8 + $0xc0] sm:$0xff]
    %v5160 = vld [vmem:[%s8 + $0xc8] sm:$0xff]
    %v5161 = vld [vmem:[%s8 + $0xd0] sm:$0xff]
    %v5162 = vld [vmem:[%s8 + $0xd8] sm:$0xff]
    %v5163 = vld [vmem:[%s8 + $0xe0] sm:$0xff]
    %v5164 = vld [vmem:[%s8 + $0xe8] sm:$0xff]
    %v5165 = vld [vmem:[%s8 + $0xf0] sm:$0xff]
    %v5166 = vld [vmem:[%s8 + $0xf8] sm:$0xff]
    %v5167 = vld [vmem:[%s8 + $0x100] sm:$0xff]
    %v5168 = vld [vmem:[%s8 + $0x108] sm:$0xff]
    %v5169 = vld [vmem:[%s8 + $0x110] sm:$0xff]
    %v5170 = vld [vmem:[%s8 + $0x118] sm:$0xff]
    %v5171 = vld [vmem:[%s8 + $0x120] sm:$0xff]
    %v5172 = vld [vmem:[%s8 + $0x128] sm:$0xff]
    %v5173 = vld [vmem:[%s8 + $0x130] sm:$0xff]
    %v5174 = vld [vmem:[%s8 + $0x138] sm:$0xff]
    %v5175 = vld [vmem:[%s8 + $0x140] sm:$0xff]
    %v5176 = vld [vmem:[%s8 + $0x148] sm:$0xff]
    %v5177 = vld [vmem:[%s8 + $0x150] sm:$0xff]
    %v5178 = vld [vmem:[%s8 + $0x158] sm:$0xff]
    %v5179 = vld [vmem:[%s8 + $0x160] sm:$0xff]
    %v5180 = vld [vmem:[%s8 + $0x168] sm:$0xff]
    %v5181 = vld [vmem:[%s8 + $0x170] sm:$0xff]
    %v5182 = vld [vmem:[%s8 + $0x178] sm:$0xff]
    %v5183 = vld [vmem:[%s8 + $0x180] sm:$0xff]
    %v5184 = vld [vmem:[%s8 + $0x188] sm:$0xff]
    %v5185 = vld [vmem:[%s8 + $0x190] sm:$0xff]
    %v5186 = vld [vmem:[%s8 + $0x198] sm:$0xff]
    %v5187 = vld [vmem:[%s8 + $0x1a0] sm:$0xff]
    %v5188 = vld [vmem:[%s8 + $0x1a8] sm:$0xff]
    %v5189 = vld [vmem:[%s8 + $0x1b0] sm:$0xff]
    %v5190 = vld [vmem:[%s8 + $0x1b8] sm:$0xff]
    %v5191 = vld [vmem:[%s8 + $0x1c0] sm:$0xff]
    %v5192 = vld [vmem:[%s8 + $0x1c8] sm:$0xff]
    %v5193 = vld [vmem:[%s8 + $0x1d0] sm:$0xff]
    %v5194 = vld [vmem:[%s8 + $0x1d8] sm:$0xff]
    %v5195 = vld [vmem:[%s8 + $0x1e0] sm:$0xff]
    %v5196 = vld [vmem:[%s8 + $0x1e8] sm:$0xff]
    %v5197 = vld [vmem:[%s8 + $0x1f0] sm:$0xff]
    %v5198 = vld [vmem:[%s8 + $0x1f8] sm:$0xff]
    %v5199 = vld [vmem:[%s8 + $0x200] sm:$0xff]
    %v5200 = vld [vmem:[%s8 + $0x208] sm:$0xff]
    %v5201 = vld [vmem:[%s8 + $0x210] sm:$0xff]
    %v5202 = vld [vmem:[%s8 + $0x218] sm:$0xff]
    %v5203 = vld [vmem:[%s8 + $0x220] sm:$0xff]
    %v5204 = vld [vmem:[%s8 + $0x228] sm:$0xff]
    %v5205 = vld [vmem:[%s8 + $0x230] sm:$0xff]
    %v5206 = vld [vmem:[%s8 + $0x238] sm:$0xff]
    %v5207 = vld [vmem:[%s8 + $0x240] sm:$0xff]
    %v5208 = vld [vmem:[%s8 + $0x248] sm:$0xff]
    %v5209 = vld [vmem:[%s8 + $0x250] sm:$0xff]
    %v5210 = vld [vmem:[%s8 + $0x258] sm:$0xff]
    %v5211 = vld [vmem:[%s8 + $0x260] sm:$0xff]
    %v5212 = vld [vmem:[%s8 + $0x268] sm:$0xff]
    %v5213 = vld [vmem:[%s8 + $0x270] sm:$0xff]
    %v5214 = vld [vmem:[%s8 + $0x278] sm:$0xff]
    %v5215 = vld [vmem:[%s8 + $0x280] sm:$0xff]
    %v5216 = vld [vmem:[%s8 + $0x288] sm:$0xff]
    %v5217 = vld [vmem:[%s8 + $0x290] sm:$0xff]
    %v5218 = vld [vmem:[%s8 + $0x298] sm:$0xff]
    %v5219 = vld [vmem:[%s8 + $0x2a0] sm:$0xff]
    %v5220 = vld [vmem:[%s8 + $0x2a8] sm:$0xff]
    %v5221 = vld [vmem:[%s8 + $0x2b0] sm:$0xff]
    %v5222 = vld [vmem:[%s8 + $0x2b8] sm:$0xff]
    %v5223 = vld [vmem:[%s8 + $0x2c0] sm:$0xff]
    %v5224 = vld [vmem:[%s8 + $0x2c8] sm:$0xff]
    %v5225 = vld [vmem:[%s8 + $0x2d0] sm:$0xff]
    %v5226 = vld [vmem:[%s8 + $0x2d8] sm:$0xff]
    %v5227 = vld [vmem:[%s8 + $0x2e0] sm:$0xff]
    %v5228 = vld [vmem:[%s8 + $0x2e8] sm:$0xff]
    %v5229 = vld [vmem:[%s8 + $0x2f0] sm:$0xff]
    %v5230 = vld [vmem:[%s8 + $0x2f8] sm:$0xff]
    %v5231 = vld [vmem:[#allocation13] sm:$0x1]
    %5232 = vmatpush.msra.mxu0 %v5150
    %5233 = vmatpush.msra.mxu0 %v5149
    %5234 = vmatpush.msra.mxu0 %v5148
    %5235 = vmatpush.msra.mxu0 %v5147
    %5236 = vmatpush.msra.mxu0 %v5146
    %5237 = vmatpush.msra.mxu0 %v5145
    %5238 = vmatpush.msra.mxu0 %v5144
    %5239 = vmatpush.msra.mxu0 %v5143
    %5240 = vmatpush.msra.mxu0 %v5142
    %5241 = vmatpush.msra.mxu0 %v5141
    %5242 = vmatpush.msra.mxu0 %v5140
    %5243 = vmatpush.msra.mxu0 %v5139
    %5244 = vmatpush.msra.mxu0 %v5138
    %5245 = vmatpush.msra.mxu0 %v5137
    %5246 = vmatpush.msra.mxu0 %v5136
    %5247 = vmatpush.msra.mxu0 %v5135
    %5248 = vmatmul.f32.gmra.mxu0 %v5129
    %v5249 = vpop.f32.mrf.mxu0
    %v5250 = vadd.f32 %v5231, %v5249
    %5251 = vdwg.mxu0
    %5252 = vmatpush.msra.mxu0 %v5166
    %5253 = vmatpush.msra.mxu0 %v5165
    %5254 = vmatpush.msra.mxu0 %v5164
    %5255 = vmatpush.msra.mxu0 %v5163
    %5256 = vmatpush.msra.mxu0 %v5162
    %5257 = vmatpush.msra.mxu0 %v5161
    %5258 = vmatpush.msra.mxu0 %v5160
    %5259 = vmatpush.msra.mxu0 %v5159
    %5260 = vmatpush.msra.mxu0 %v5158
    %5261 = vmatpush.msra.mxu0 %v5157
    %5262 = vmatpush.msra.mxu0 %v5156
    %5263 = vmatpush.msra.mxu0 %v5155
    %5264 = vmatpush.msra.mxu0 %v5154
    %5265 = vmatpush.msra.mxu0 %v5153
    %5266 = vmatpush.msra.mxu0 %v5152
    %5267 = vmatpush.msra.mxu0 %v5151
    %5268 = vmatmul.f32.gmra.mxu0 %v5130
    %v5269 = vpop.f32.mrf.mxu0
    %v5270 = vadd.f32 %v5250, %v5269
    %5271 = vdwg.mxu0
    %5272 = vmatpush.msra.mxu0 %v5182
    %5273 = vmatpush.msra.mxu0 %v5181
    %5274 = vmatpush.msra.mxu0 %v5180
    %5275 = vmatpush.msra.mxu0 %v5179
    %5276 = vmatpush.msra.mxu0 %v5178
    %5277 = vmatpush.msra.mxu0 %v5177
    %5278 = vmatpush.msra.mxu0 %v5176
    %5279 = vmatpush.msra.mxu0 %v5175
    %5280 = vmatpush.msra.mxu0 %v5174
    %5281 = vmatpush.msra.mxu0 %v5173
    %5282 = vmatpush.msra.mxu0 %v5172
    %5283 = vmatpush.msra.mxu0 %v5171
    %5284 = vmatpush.msra.mxu0 %v5170
    %5285 = vmatpush.msra.mxu0 %v5169
    %5286 = vmatpush.msra.mxu0 %v5168
    %5287 = vmatpush.msra.mxu0 %v5167
    %5288 = vmatmul.f32.gmra.mxu0 %v5131
    %v5289 = vpop.f32.mrf.mxu0
    %v5290 = vadd.f32 %v5270, %v5289
    %5291 = vdwg.mxu0
    %5292 = vmatpush.msra.mxu0 %v5198
    %5293 = vmatpush.msra.mxu0 %v5197
    %5294 = vmatpush.msra.mxu0 %v5196
    %5295 = vmatpush.msra.mxu0 %v5195
    %5296 = vmatpush.msra.mxu0 %v5194
    %5297 = vmatpush.msra.mxu0 %v5193
    %5298 = vmatpush.msra.mxu0 %v5192
    %5299 = vmatpush.msra.mxu0 %v5191
    %5300 = vmatpush.msra.mxu0 %v5190
    %5301 = vmatpush.msra.mxu0 %v5189
    %5302 = vmatpush.msra.mxu0 %v5188
    %5303 = vmatpush.msra.mxu0 %v5187
    %5304 = vmatpush.msra.mxu0 %v5186
    %5305 = vmatpush.msra.mxu0 %v5185
    %5306 = vmatpush.msra.mxu0 %v5184
    %5307 = vmatpush.msra.mxu0 %v5183
    %5308 = vmatmul.f32.gmra.mxu0 %v5132
    %v5309 = vpop.f32.mrf.mxu0
    %v5310 = vadd.f32 %v5290, %v5309
    %5311 = vdwg.mxu0
    %5312 = vmatpush.msra.mxu0 %v5214
    %5313 = vmatpush.msra.mxu0 %v5213
    %5314 = vmatpush.msra.mxu0 %v5212
    %5315 = vmatpush.msra.mxu0 %v5211
    %5316 = vmatpush.msra.mxu0 %v5210
    %5317 = vmatpush.msra.mxu0 %v5209
    %5318 = vmatpush.msra.mxu0 %v5208
    %5319 = vmatpush.msra.mxu0 %v5207
    %5320 = vmatpush.msra.mxu0 %v5206
    %5321 = vmatpush.msra.mxu0 %v5205
    %5322 = vmatpush.msra.mxu0 %v5204
    %5323 = vmatpush.msra.mxu0 %v5203
    %5324 = vmatpush.msra.mxu0 %v5202
    %5325 = vmatpush.msra.mxu0 %v5201
    %5326 = vmatpush.msra.mxu0 %v5200
    %5327 = vmatpush.msra.mxu0 %v5199
    %5328 = vmatmul.f32.gmra.mxu0 %v5133
    %v5329 = vpop.f32.mrf.mxu0
    %v5330 = vadd.f32 %v5310, %v5329
    %5331 = vdwg.mxu0
    %5332 = vmatpush.msra.mxu0 %v5230
    %5333 = vmatpush.msra.mxu0 %v5229
    %5334 = vmatpush.msra.mxu0 %v5228
    %5335 = vmatpush.msra.mxu0 %v5227
    %5336 = vmatpush.msra.mxu0 %v5226
    %5337 = vmatpush.msra.mxu0 %v5225
    %5338 = vmatpush.msra.mxu0 %v5224
    %5339 = vmatpush.msra.mxu0 %v5223
    %5340 = vmatpush.msra.mxu0 %v5222
    %5341 = vmatpush.msra.mxu0 %v5221
    %5342 = vmatpush.msra.mxu0 %v5220
    %5343 = vmatpush.msra.mxu0 %v5219
    %5344 = vmatpush.msra.mxu0 %v5218
    %5345 = vmatpush.msra.mxu0 %v5217
    %5346 = vmatpush.msra.mxu0 %v5216
    %5347 = vmatpush.msra.mxu0 %v5215
    %5348 = vmatmul.f32.gmra.mxu0 %v5134
    %v5349 = vpop.f32.mrf.mxu0
    %v5350 = vadd.f32 %v5330, %v5349
    %5351 = vdwg.mxu0
    %v5352 = vxor.u32 %v5350, 2147483648
    %v5353 = vmul.f32 %v5352, 1.442695
    %v5354 = vpow.pop %v5353
    %v5355 = vadd.f32 %v5354, 1.0
    %v5356 = vrcp.pop %v5355
    %v5357 = vmul.f32 %v5355, %v5356
    %v5358 = vsub.f32 1.0, %v5357
    %v5359 = vmul.f32 %v5356, %v5358
    %v5360 = vadd.f32 %v5356, %v5359
    %vm5361 = vweird.f32 %v5355
    %vm5362 = vweird.f32 %v5356
    %vm5363 = vmor %vm5361, %vm5362
    %v5364 = vsel %vm5363, %v5356, %v5360
    %v5365 = vand.u32 2147483647, %v5355
    %vm5366 = vcmp.eq.f32.partialorder %v5365, 8.507059e+37
    %v5367 = vand.u32 %v5355, 2147483648
    %v5368 = vor.u32 1.1754944e-38, %v5367
    %v5369 = vsel %vm5366, %v5368, %v5364
    %v5370 = vmul.f32 1.0, %v5369
    %vm5371 = vcmask 188416
    %5372 = vst.msk [vmem:[#allocation14] sm:$0x1] %vm5371, %v5370
    %v5373 = vperm.slane %v5370, 0
    %vm5374 = vcmask 195584
    %5375 = vst.msk [vmem:[%s11] sm:$0xff] %vm5374, %v5373
    %5376 = vst.msk [vmem:[%s11 + $0x8] sm:$0xff] %vm5374, %v5373
    %5377 = vst.msk [vmem:[%s11 + $0x10] sm:$0xff] %vm5374, %v5373
    %5378 = vst.msk [vmem:[%s11 + $0x18] sm:$0xff] %vm5374, %v5373
    %5379 = vst.msk [vmem:[%s11 + $0x20] sm:$0xff] %vm5374, %v5373
    %5380 = vst.msk [vmem:[%s11 + $0x28] sm:$0xff] %vm5374, %v5373
    %5381 = vst.msk [vmem:[%s11 + $0x30] sm:$0xff] %vm5374, %v5373
    %5382 = vst.msk [vmem:[%s11 + $0x38] sm:$0xff] %vm5374, %v5373
    %5383 = vst.msk [vmem:[%s11 + $0x40] sm:$0xff] %vm5374, %v5373
    %5384 = vst.msk [vmem:[%s11 + $0x48] sm:$0xff] %vm5374, %v5373
    %5385 = vst.msk [vmem:[%s11 + $0x50] sm:$0xff] %vm5374, %v5373
    %5386 = vst.msk [vmem:[%s11 + $0x58] sm:$0xff] %vm5374, %v5373
    %5387 = vst.msk [vmem:[%s11 + $0x60] sm:$0xff] %vm5374, %v5373
    %5388 = vst.msk [vmem:[%s11 + $0x68] sm:$0xff] %vm5374, %v5373
    %5389 = vst.msk [vmem:[%s11 + $0x70] sm:$0xff] %vm5374, %v5373
    %5390 = vst.msk [vmem:[%s11 + $0x78] sm:$0xff] %vm5374, %v5373
    %5391 = vst.msk [vmem:[%s11 + $0x80] sm:$0xff] %vm5374, %v5373
    %5392 = vst.msk [vmem:[%s11 + $0x88] sm:$0xff] %vm5374, %v5373
    %5393 = vst.msk [vmem:[%s11 + $0x90] sm:$0xff] %vm5374, %v5373
    %5394 = vst.msk [vmem:[%s11 + $0x98] sm:$0xff] %vm5374, %v5373
    %5395 = vst.msk [vmem:[%s11 + $0xa0] sm:$0xff] %vm5374, %v5373
    %5396 = vst.msk [vmem:[%s11 + $0xa8] sm:$0xff] %vm5374, %v5373
    %5397 = vst.msk [vmem:[%s11 + $0xb0] sm:$0xff] %vm5374, %v5373
    %5398 = vst.msk [vmem:[%s11 + $0xb8] sm:$0xff] %vm5374, %v5373
    %5399 = vst.msk [vmem:[%s11 + $0xc0] sm:$0xff] %vm5374, %v5373
    %5400 = vst.msk [vmem:[%s11 + $0xc8] sm:$0xff] %vm5374, %v5373
    %5401 = vst.msk [vmem:[%s11 + $0xd0] sm:$0xff] %vm5374, %v5373
    %5402 = vst.msk [vmem:[%s11 + $0xd8] sm:$0xff] %vm5374, %v5373
    %5403 = vst.msk [vmem:[%s11 + $0xe0] sm:$0xff] %vm5374, %v5373
    %5404 = vst.msk [vmem:[%s11 + $0xe8] sm:$0xff] %vm5374, %v5373
    %5405 = vst.msk [vmem:[%s11 + $0xf0] sm:$0xff] %vm5374, %v5373
    %5406 = vst.msk [vmem:[%s11 + $0xf8] sm:$0xff] %vm5374, %v5373
    %5407 = vst.msk [vmem:[%s11 + $0x100] sm:$0xff] %vm5374, %v5373
    %5408 = vst.msk [vmem:[%s11 + $0x108] sm:$0xff] %vm5374, %v5373
    %5409 = vst.msk [vmem:[%s11 + $0x110] sm:$0xff] %vm5374, %v5373
    %5410 = vst.msk [vmem:[%s11 + $0x118] sm:$0xff] %vm5374, %v5373
    %5411 = vst.msk [vmem:[%s11 + $0x120] sm:$0xff] %vm5374, %v5373
    %5412 = vst.msk [vmem:[%s11 + $0x128] sm:$0xff] %vm5374, %v5373
    %5413 = vst.msk [vmem:[%s11 + $0x130] sm:$0xff] %vm5374, %v5373
    %5414 = vst.msk [vmem:[%s11 + $0x138] sm:$0xff] %vm5374, %v5373
    %5415 = vst.msk [vmem:[%s11 + $0x140] sm:$0xff] %vm5374, %v5373
    %5416 = vst.msk [vmem:[%s11 + $0x148] sm:$0xff] %vm5374, %v5373
    %5417 = vst.msk [vmem:[%s11 + $0x150] sm:$0xff] %vm5374, %v5373
    %5418 = vst.msk [vmem:[%s11 + $0x158] sm:$0xff] %vm5374, %v5373
    %5419 = vst.msk [vmem:[%s11 + $0x160] sm:$0xff] %vm5374, %v5373
    %5420 = vst.msk [vmem:[%s11 + $0x168] sm:$0xff] %vm5374, %v5373
    %5421 = vst.msk [vmem:[%s11 + $0x170] sm:$0xff] %vm5374, %v5373
    %5422 = vst.msk [vmem:[%s11 + $0x178] sm:$0xff] %vm5374, %v5373
    // Predicated region
    $region70: #{pfrnn_forward.1} parent=1 // pred_check
      _
    $region71: #{pfrnn_forward.1} parent=1 // pred_check_branch
      %5424 = sbr.rel (0) target = $region73
    $region72: #{pfrnn_forward.1} parent=1 // pred_region
      %5426 = vsyncadd [#allocation4], 0
      %s5428 = sshll.u32 [#allocation14], 4
      %s5429 = int_to_ptr.vmem [resolvable:$true] %s5428
      %s5430 = sshll.u32 %s10, 4
      %s5431 = int_to_ptr.hbm [resolvable:$true] %s5430
      %5433 = dma.vmem_to_hbm [thread:$0]  %s5429, 16, %s5431, [#allocation4]
    $region73: #{pfrnn_forward.1} parent=1 // pred_fallthru
      _
    // Predicated region
    $region74: #{pfrnn_forward.1} parent=1 // pred_check
      _
    $region75: #{pfrnn_forward.1} parent=1 // pred_check_branch
      %5435 = sbr.rel (0) target = $region77
    $region76: #{pfrnn_forward.1} parent=1 // pred_region
      _
    $region77: #{pfrnn_forward.1} parent=1 // pred_fallthru
      _
    // Predicated region
    $region78: #{pfrnn_forward.1} parent=1 // pred_check
      _
    $region79: #{pfrnn_forward.1} parent=1 // pred_check_branch
      %5437 = sbr.rel (0) target = $region81
    $region80: #{pfrnn_forward.1} parent=1 // pred_region
      %5439 = dma.done [#allocation4], 16
    $region81: #{pfrnn_forward.1} parent=1 // pred_fallthru
      _
    // Predicated region
    $region82: #{pfrnn_forward.1} parent=1 // pred_check
      _
    $region83: #{pfrnn_forward.1} parent=1 // pred_check_branch
      %5441 = sbr.rel (0) target = $region85
    $region84: #{pfrnn_forward.1} parent=1 // pred_region
      _
    $region85: #{pfrnn_forward.1} parent=1 // pred_fallthru
      _
    %5442 = vsyncpa [#allocation3], 1
    %5443 = vsyncpa [#allocation6], 1
    %5444 = vsyncpa [#allocation9], 1
    %5445 = vsyncpa [#allocation12], 1
    %5446 = vsyncpa [#allocation4], 1

</llo_original>
